<compile_context>
chip_gen: v5e
topology: v5e:2x2
jax: 0.10.0
libtpu: 0.0.40
codegen_flags: <defaults>
</compile_context>

<pallas_src>
import jax
import jax.numpy as jnp
from jax import lax
from jax.experimental import pallas as pl
from jax.experimental.pallas import tpu as pltpu


# ----------------------------------------------------------------------------
# Tiling helpers (static, shape-derived)
# ----------------------------------------------------------------------------
def _time_chunk(T, target=16):
    """Largest divisor of T that is <= target (timesteps per grid step)."""
    for d in range(min(T, target), 0, -1):
        if T % d == 0:
            return d
    return 1


def _row_block(n, target=256):
    """Row-block for the dense matmuls: n when small, else the largest
    divisor of n <= target that is a multiple of 8 (sublane-aligned)."""
    if n <= target:
        return n
    for d in range(min(n, target), 7, -1):
        if n % d == 0 and d % 8 == 0:
            return d
    return n


# ----------------------------------------------------------------------------
# Pallas kernels
# ----------------------------------------------------------------------------
def _input_proj_kernel(x_ref, wf_ref, bf_ref, wr_ref, br_ref, gxf_ref, gxr_ref):
    """gates_x = x @ W_ih^T + (b_ih + b_hh) for both directions."""
    x = x_ref[...]
    gxf_ref[...] = (jnp.dot(x, wf_ref[...], preferred_element_type=jnp.float32)
                    + bf_ref[...]).astype(gxf_ref.dtype)
    gxr_ref[...] = (jnp.dot(x, wr_ref[...], preferred_element_type=jnp.float32)
                    + br_ref[...]).astype(gxr_ref.dtype)


def _lstm_recurrent_kernel(gxf_ref, gxr_ref, whf_ref, whr_ref,
                           hf_out_ref, hr_out_ref,
                           hf_st, cf_st, hr_st, cr_st):
    """Bidirectional LSTM recurrence over one chunk of Tc timesteps.

    gx*_ref : (Tc, 4, N, H) precomputed gate pre-activations (bias folded in).
    wh*_ref : (4, H, H) per-gate recurrent weight slabs (h @ slab == h @ W_hh[g]^T).
    """
    @pl.when(pl.program_id(0) == 0)
    def _():
        hf_st[...] = jnp.zeros_like(hf_st)
        cf_st[...] = jnp.zeros_like(cf_st)
        hr_st[...] = jnp.zeros_like(hr_st)
        cr_st[...] = jnp.zeros_like(cr_st)

    Tc = gxf_ref.shape[0]
    whf = whf_ref[...]          # loaded once per chunk, resident in vregs/VMEM
    whr = whr_ref[...]

    def cell(g_pre, h, c, w):
        # g_pre: (4, N, H); w: (4, H, H) -- per-gate slabs, no lane slicing.
        i = jax.nn.sigmoid(g_pre[0] + jnp.dot(h, w[0],
                                              preferred_element_type=jnp.float32))
        f = jax.nn.sigmoid(g_pre[1] + jnp.dot(h, w[1],
                                              preferred_element_type=jnp.float32))
        g = jnp.tanh(g_pre[2] + jnp.dot(h, w[2],
                                        preferred_element_type=jnp.float32))
        o = jax.nn.sigmoid(g_pre[3] + jnp.dot(h, w[3],
                                              preferred_element_type=jnp.float32))
        c_new = f * c + i * g
        h_new = o * jnp.tanh(c_new)
        return h_new, c_new

    def step(i, carry):
        hf, cf, hr, cr = carry
        # forward: local row i == global time c*Tc + i
        hf, cf = cell(gxf_ref[i], hf, cf, whf)
        hf_out_ref[i] = hf.astype(hf_out_ref.dtype)
        # reverse: this grid step holds chunk (C-1-c); walk it back-to-front
        r = Tc - 1 - i
        hr, cr = cell(gxr_ref[r], hr, cr, whr)
        hr_out_ref[r] = hr.astype(hr_out_ref.dtype)
        return hf, cf, hr, cr

    hf, cf, hr, cr = lax.fori_loop(
        0, Tc, step,
        (hf_st[...], cf_st[...], hr_st[...], cr_st[...]),
        unroll=True)

    hf_st[...] = hf
    cf_st[...] = cf
    hr_st[...] = hr
    cr_st[...] = cr


def _fc_kernel(hf_ref, hr_ref, wf_ref, wr_ref, b_ref, out_ref):
    """out = [h_fwd | h_rev] @ W_fc^T + b_fc, split per direction."""
    out_ref[...] = (jnp.dot(hf_ref[...], wf_ref[...],
                            preferred_element_type=jnp.float32)
                    + jnp.dot(hr_ref[...], wr_ref[...],
                              preferred_element_type=jnp.float32)
                    + b_ref[...]).astype(out_ref.dtype)


# ----------------------------------------------------------------------------
# Wrapper
# ----------------------------------------------------------------------------
@jax.jit
def lstm_encoder_forward(x, params):
    """x: (T, N, F) float32 -> (T, N, F) float32."""
    T, N, F = x.shape
    H = params["w_hh_f"].shape[1]          # w_hh_f: (4H, H)
    rows = T * N

    # ---------------- Stage 1: hoisted input projection -----------------
    x_flat = x.reshape(rows, F)
    w_ih_f = params["w_ih_f"].T                                   # (F, 4H)
    w_ih_r = params["w_ih_r"].T                                   # (F, 4H)
    b_f = (params["b_ih_f"] + params["b_hh_f"]).reshape(1, 4 * H)
    b_r = (params["b_ih_r"] + params["b_hh_r"]).reshape(1, 4 * H)

    rb = _row_block(rows)
    const2 = lambda i: (0, 0)

    gxf_flat, gxr_flat = pl.pallas_call(
        _input_proj_kernel,
        out_shape=(jax.ShapeDtypeStruct((rows, 4 * H), jnp.float32),
                   jax.ShapeDtypeStruct((rows, 4 * H), jnp.float32)),
        grid_spec=pltpu.PrefetchScalarGridSpec(
            num_scalar_prefetch=0,
            grid=(rows // rb,),
            in_specs=[
                pl.BlockSpec((rb, F), lambda i: (i, 0)),
                pl.BlockSpec((F, 4 * H), const2),
                pl.BlockSpec((1, 4 * H), const2),
                pl.BlockSpec((F, 4 * H), const2),
                pl.BlockSpec((1, 4 * H), const2),
            ],
            out_specs=[
                pl.BlockSpec((rb, 4 * H), lambda i: (i, 0)),
                pl.BlockSpec((rb, 4 * H), lambda i: (i, 0)),
            ],
        ),
        compiler_params=pltpu.CompilerParams(
            dimension_semantics=("parallel",)),
    )(x_flat, w_ih_f, b_f, w_ih_r, b_r)

    # Layout plumbing (outside the serial loop): (T*N, 4H) -> (T, 4, N, H)
    # so each gate's pre-activation is its own (N, H) slab in the kernel.
    gxf = gxf_flat.reshape(T, N, 4, H).transpose(0, 2, 1, 3)
    gxr = gxr_flat.reshape(T, N, 4, H).transpose(0, 2, 1, 3)

    # Per-gate recurrent weight slabs: (4, H, H) with h @ slab == h @ W_hh[g]^T.
    w_hh_f = params["w_hh_f"].reshape(4, H, H).transpose(0, 2, 1)
    w_hh_r = params["w_hh_r"].reshape(4, H, H).transpose(0, 2, 1)

    # ---------------- Stage 2: chunked bidirectional recurrence ---------
    Tc = _time_chunk(T)
    C = T // Tc

    h_fwd, h_rev = pl.pallas_call(
        _lstm_recurrent_kernel,
        out_shape=(jax.ShapeDtypeStruct((T, N, H), jnp.float32),
                   jax.ShapeDtypeStruct((T, N, H), jnp.float32)),
        grid_spec=pltpu.PrefetchScalarGridSpec(
            num_scalar_prefetch=0,
            grid=(C,),
            in_specs=[
                pl.BlockSpec((Tc, 4, N, H), lambda c: (c, 0, 0, 0)),
                pl.BlockSpec((Tc, 4, N, H), lambda c: (C - 1 - c, 0, 0, 0)),
                pl.BlockSpec((4, H, H), lambda c: (0, 0, 0)),
                pl.BlockSpec((4, H, H), lambda c: (0, 0, 0)),
            ],
            out_specs=[
                pl.BlockSpec((Tc, N, H), lambda c: (c, 0, 0)),
                pl.BlockSpec((Tc, N, H), lambda c: (C - 1 - c, 0, 0)),
            ],
            scratch_shapes=[
                pltpu.VMEM((N, H), jnp.float32),  # h fwd
                pltpu.VMEM((N, H), jnp.float32),  # c fwd
                pltpu.VMEM((N, H), jnp.float32),  # h rev
                pltpu.VMEM((N, H), jnp.float32),  # c rev
            ],
        ),
        compiler_params=pltpu.CompilerParams(
            dimension_semantics=("arbitrary",)),
    )(gxf, gxr, w_hh_f, w_hh_r)

    # ---------------- Stage 3: single FC matmul over all timesteps ------
    hf_flat = h_fwd.reshape(rows, H)
    hr_flat = h_rev.reshape(rows, H)
    w_fc = params["w_fc"]                   # (F, 2H)
    w_fc_f = w_fc[:, :H].T                  # (H, F)
    w_fc_r = w_fc[:, H:].T                  # (H, F)
    b_fc = params["b_fc"].reshape(1, F)

    rbf = _row_block(rows)
    out_flat = pl.pallas_call(
        _fc_kernel,
        out_shape=jax.ShapeDtypeStruct((rows, F), jnp.float32),
        grid_spec=pltpu.PrefetchScalarGridSpec(
            num_scalar_prefetch=0,
            grid=(rows // rbf,),
            in_specs=[
                pl.BlockSpec((rbf, H), lambda i: (i, 0)),
                pl.BlockSpec((rbf, H), lambda i: (i, 0)),
                pl.BlockSpec((H, F), const2),
                pl.BlockSpec((H, F), const2),
                pl.BlockSpec((1, F), const2),
            ],
            out_specs=pl.BlockSpec((rbf, F), lambda i: (i, 0)),
        ),
        compiler_params=pltpu.CompilerParams(
            dimension_semantics=("parallel",)),
    )(hf_flat, hr_flat, w_fc_f, w_fc_r, b_fc)

    return out_flat.reshape(T, N, F)


# ----------------------------------------------------------------------------
# Pure-JAX reference (for correctness check)
# ----------------------------------------------------------------------------
def lstm_encoder_reference(x, params):
    H = params["w_hh_f"].shape[1]
    T, N, F = x.shape

    def make_cell(w_ih, w_hh, b_ih, b_hh):
        def cell(carry, x_t):
            h, c = carry
            gates = x_t @ w_ih.T + h @ w_hh.T + b_ih + b_hh
            i, f, g, o = jnp.split(gates, 4, axis=-1)
            i = jax.nn.sigmoid(i)
            f = jax.nn.sigmoid(f)
            g = jnp.tanh(g)
            o = jax.nn.sigmoid(o)
            c_new = f * c + i * g
            h_new = o * jnp.tanh(c_new)
            return (h_new, c_new), h_new
        return cell

    h0 = jnp.zeros((N, H), jnp.float32)
    c0 = jnp.zeros((N, H), jnp.float32)

    cell_f = make_cell(params["w_ih_f"], params["w_hh_f"],
                       params["b_ih_f"], params["b_hh_f"])
    cell_r = make_cell(params["w_ih_r"], params["w_hh_r"],
                       params["b_ih_r"], params["b_hh_r"])

    _, h_fwd = jax.lax.scan(cell_f, (h0, c0), x)
    _, h_rev = jax.lax.scan(cell_r, (h0, c0), x[::-1])
    h_rev = h_rev[::-1]

    lstm_out = jnp.concatenate([h_fwd, h_rev], axis=-1)  # (T, N, 2H)
    return lstm_out @ params["w_fc"].T + params["b_fc"]


# ----------------------------------------------------------------------------
# Deterministic parameter init + demo
# ----------------------------------------------------------------------------
def init_params(key, num_features, hidden_size):
    F, H = num_features, hidden_size
    ks = jax.random.split(key, 10)
    s = 1.0 / jnp.sqrt(H)  # PyTorch LSTM/Linear-style scale
    u = lambda k, shape: jax.random.uniform(k, shape, jnp.float32, -s, s)
    return {
        # forward direction
        "w_ih_f": u(ks[0], (4 * H, F)),
        "w_hh_f": u(ks[1], (4 * H, H)),
        "b_ih_f": u(ks[2], (4 * H,)),
        "b_hh_f": u(ks[3], (4 * H,)),
        # reverse direction
        "w_ih_r": u(ks[4], (4 * H, F)),
        "w_hh_r": u(ks[5], (4 * H, H)),
        "b_ih_r": u(ks[6], (4 * H,)),
        "b_hh_r": u(ks[7], (4 * H,)),
        # fc: Linear(2H -> F)
        "w_fc": u(ks[8], (F, 2 * H)),
        "b_fc": u(ks[9], (F,)),
    }


if __name__ == "__main__":
    key = jax.random.PRNGKey(0)
    k_x, k_p, k_x2 = jax.random.split(key, 3)

    # Primary small test: (T, N, F, H) = (8, 2, 16, 32) -> single time chunk.
    T, N, F, H = 8, 2, 16, 32
    x = jax.random.normal(k_x, (T, N, F), jnp.float32)
    params = init_params(k_p, F, H)

    out = jax.block_until_ready(lstm_encoder_forward(x, params))
    ref = lstm_encoder_reference(x, params)
    assert out.shape == (T, N, F)
    assert jnp.allclose(out, ref, atol=1e-4, rtol=1e-4), (
        float(jnp.max(jnp.abs(out - ref))))

    # Second test with T=32 -> multiple time chunks (exercises cross-chunk
    # h/c carry and the reversed chunk ordering of the backward direction).
    T2 = 32
    x2 = jax.random.normal(k_x2, (T2, N, F), jnp.float32)
    out2 = jax.block_until_ready(lstm_encoder_forward(x2, params))
    ref2 = lstm_encoder_reference(x2, params)
    assert out2.shape == (T2, N, F)
    assert jnp.allclose(out2, ref2, atol=1e-4, rtol=1e-4), (
        float(jnp.max(jnp.abs(out2 - ref2))))

    print("KERNEL_OK")
</pallas_src>

<mosaic_0001>
module attributes {stable_mosaic.version = 11 : i64} {
  func.func @_input_proj_kernel(%arg0: i32, %arg1: memref<16x16xf32, #tpu.memory_space<vmem>>, %arg2: memref<16x128xf32, #tpu.memory_space<vmem>>, %arg3: memref<1x128xf32, #tpu.memory_space<vmem>>, %arg4: memref<16x128xf32, #tpu.memory_space<vmem>>, %arg5: memref<1x128xf32, #tpu.memory_space<vmem>>, %arg6: memref<16x128xf32, #tpu.memory_space<vmem>>, %arg7: memref<16x128xf32, #tpu.memory_space<vmem>>) attributes {dimension_semantics = [#tpu.dimension_semantics<parallel>], iteration_bounds = array<i64: 1>, scalar_prefetch = 0 : i64, scratch_operands = 0 : i64, tpu.core_type = #tpu.core_type<tc>, window_params = [{transform_indices = @transform_0, window_bounds = array<i64: 16, 16>}, {pipeline_mode = #tpu.pipeline_mode<synchronous>, transform_indices = @transform_1, window_bounds = array<i64: 16, 128>}, {pipeline_mode = #tpu.pipeline_mode<synchronous>, transform_indices = @transform_2, window_bounds = array<i64: 1, 128>}, {pipeline_mode = #tpu.pipeline_mode<synchronous>, transform_indices = @transform_3, window_bounds = array<i64: 16, 128>}, {pipeline_mode = #tpu.pipeline_mode<synchronous>, transform_indices = @transform_4, window_bounds = array<i64: 1, 128>}, {transform_indices = @transform_5, window_bounds = array<i64: 16, 128>}, {transform_indices = @transform_6, window_bounds = array<i64: 16, 128>}]} {
    %c0 = arith.constant 0 : index
    %c0_0 = arith.constant 0 : index
    %0 = vector.load %arg1[%c0, %c0_0] : memref<16x16xf32, #tpu.memory_space<vmem>>, vector<16x16xf32>
    %c0_1 = arith.constant 0 : index
    %c0_2 = arith.constant 0 : index
    %1 = vector.load %arg2[%c0_1, %c0_2] : memref<16x128xf32, #tpu.memory_space<vmem>>, vector<16x128xf32>
    %cst = arith.constant dense<0.000000e+00> : vector<16x128xf32>
    %2 = tpu.matmul %0, %1, %cst {dimension_numbers = #tpu.dot_dimension_numbers<[1], [0], [0], [1], [0, 0, 1, 1], [], []>} : vector<16x16xf32>, vector<16x128xf32>, vector<16x128xf32> -> vector<16x128xf32>
    %c0_3 = arith.constant 0 : index
    %c0_4 = arith.constant 0 : index
    %3 = vector.load %arg3[%c0_3, %c0_4] : memref<1x128xf32, #tpu.memory_space<vmem>>, vector<1x128xf32>
    %4 = vector.broadcast %3 : vector<1x128xf32> to vector<16x128xf32>
    %5 = arith.addf %2, %4 : vector<16x128xf32>
    %c0_5 = arith.constant 0 : index
    %c0_6 = arith.constant 0 : index
    %6 = vector.load %arg6[%c0_5, %c0_6] : memref<16x128xf32, #tpu.memory_space<vmem>>, vector<16x128xf32>
    tpu.vector_store %arg6[%c0_5, %c0_6], %5 {strides = array<i32>} : memref<16x128xf32, #tpu.memory_space<vmem>>, vector<16x128xf32>,
    %c0_7 = arith.constant 0 : index
    %c0_8 = arith.constant 0 : index
    %7 = vector.load %arg4[%c0_7, %c0_8] : memref<16x128xf32, #tpu.memory_space<vmem>>, vector<16x128xf32>
    %cst_9 = arith.constant dense<0.000000e+00> : vector<16x128xf32>
    %8 = tpu.matmul %0, %7, %cst_9 {dimension_numbers = #tpu.dot_dimension_numbers<[1], [0], [0], [1], [0, 0, 1, 1], [], []>} : vector<16x16xf32>, vector<16x128xf32>, vector<16x128xf32> -> vector<16x128xf32>
    %c0_10 = arith.constant 0 : index
    %c0_11 = arith.constant 0 : index
    %9 = vector.load %arg5[%c0_10, %c0_11] : memref<1x128xf32, #tpu.memory_space<vmem>>, vector<1x128xf32>
    %10 = vector.broadcast %9 : vector<1x128xf32> to vector<16x128xf32>
    %11 = arith.addf %8, %10 : vector<16x128xf32>
    %c0_12 = arith.constant 0 : index
    %c0_13 = arith.constant 0 : index
    %12 = vector.load %arg7[%c0_12, %c0_13] : memref<16x128xf32, #tpu.memory_space<vmem>>, vector<16x128xf32>
    tpu.vector_store %arg7[%c0_12, %c0_13], %11 {strides = array<i32>} : memref<16x128xf32, #tpu.memory_space<vmem>>, vector<16x128xf32>,
    return
  }
  func.func @transform_0(%arg0: i32) -> (i32, i32) {
    %c0_i32 = arith.constant 0 : i32
    %c0_i32_0 = arith.constant 0 : i32
    return %arg0, %c0_i32 : i32, i32
  }
  func.func @transform_1(%arg0: i32) -> (i32, i32) {
    %c0_i32 = arith.constant 0 : i32
    %c0_i32_0 = arith.constant 0 : i32
    %c0_i32_1 = arith.constant 0 : i32
    return %c0_i32, %c0_i32_0 : i32, i32
  }
  func.func @transform_2(%arg0: i32) -> (i32, i32) {
    %c0_i32 = arith.constant 0 : i32
    %c0_i32_0 = arith.constant 0 : i32
    %c0_i32_1 = arith.constant 0 : i32
    return %c0_i32, %c0_i32_0 : i32, i32
  }
  func.func @transform_3(%arg0: i32) -> (i32, i32) {
    %c0_i32 = arith.constant 0 : i32
    %c0_i32_0 = arith.constant 0 : i32
    %c0_i32_1 = arith.constant 0 : i32
    return %c0_i32, %c0_i32_0 : i32, i32
  }
  func.func @transform_4(%arg0: i32) -> (i32, i32) {
    %c0_i32 = arith.constant 0 : i32
    %c0_i32_0 = arith.constant 0 : i32
    %c0_i32_1 = arith.constant 0 : i32
    return %c0_i32, %c0_i32_0 : i32, i32
  }
  func.func @transform_5(%arg0: i32) -> (i32, i32) {
    %c0_i32 = arith.constant 0 : i32
    %c0_i32_0 = arith.constant 0 : i32
    return %arg0, %c0_i32 : i32, i32
  }
  func.func @transform_6(%arg0: i32) -> (i32, i32) {
    %c0_i32 = arith.constant 0 : i32
    %c0_i32_0 = arith.constant 0 : i32
    return %arg0, %c0_i32 : i32, i32
  }
}

module attributes {stable_mosaic.version = 11 : i64} {
  func.func @_lstm_recurrent_kernel(%arg0: i32, %arg1: memref<8x4x2x32xf32, #tpu.memory_space<vmem>>, %arg2: memref<8x4x2x32xf32, #tpu.memory_space<vmem>>, %arg3: memref<4x32x32xf32, #tpu.memory_space<vmem>>, %arg4: memref<4x32x32xf32, #tpu.memory_space<vmem>>, %arg5: memref<8x2x32xf32, #tpu.memory_space<vmem>>, %arg6: memref<8x2x32xf32, #tpu.memory_space<vmem>>, %arg7: memref<2x32xf32, #tpu.memory_space<vmem>>, %arg8: memref<2x32xf32, #tpu.memory_space<vmem>>, %arg9: memref<2x32xf32, #tpu.memory_space<vmem>>, %arg10: memref<2x32xf32, #tpu.memory_space<vmem>>) attributes {dimension_semantics = [#tpu.dimension_semantics<arbitrary>], iteration_bounds = array<i64: 1>, scalar_prefetch = 0 : i64, scratch_operands = 4 : i64, tpu.core_type = #tpu.core_type<tc>, window_params = [{transform_indices = @transform_0, window_bounds = array<i64: 8, 4, 2, 32>}, {transform_indices = @transform_1, window_bounds = array<i64: 8, 4, 2, 32>}, {pipeline_mode = #tpu.pipeline_mode<synchronous>, transform_indices = @transform_2, window_bounds = array<i64: 4, 32, 32>}, {pipeline_mode = #tpu.pipeline_mode<synchronous>, transform_indices = @transform_3, window_bounds = array<i64: 4, 32, 32>}, {transform_indices = @transform_4, window_bounds = array<i64: 8, 2, 32>}, {transform_indices = @transform_5, window_bounds = array<i64: 8, 2, 32>}]} {
    %c0_i32 = arith.constant 0 : i32
    %0 = arith.cmpi eq, %arg0, %c0_i32 : i32
    %1 = arith.extui %0 : i1 to i32
    %c0_i32_0 = arith.constant 0 : i32
    %2 = arith.cmpi ne, %1, %c0_i32_0 : i32
    scf.if %2 {
      %cst_222 = arith.constant 0.000000e+00 : f32
      %853 = vector.broadcast %cst_222 : f32 to vector<2x32xf32>
      %c0_223 = arith.constant 0 : index
      %c0_224 = arith.constant 0 : index
      %854 = vector.load %arg7[%c0_223, %c0_224] : memref<2x32xf32, #tpu.memory_space<vmem>>, vector<2x32xf32>
      tpu.vector_store %arg7[%c0_223, %c0_224], %853 {strides = array<i32>} : memref<2x32xf32, #tpu.memory_space<vmem>>, vector<2x32xf32>,
      %cst_225 = arith.constant 0.000000e+00 : f32
      %855 = vector.broadcast %cst_225 : f32 to vector<2x32xf32>
      %c0_226 = arith.constant 0 : index
      %c0_227 = arith.constant 0 : index
      %856 = vector.load %arg8[%c0_226, %c0_227] : memref<2x32xf32, #tpu.memory_space<vmem>>, vector<2x32xf32>
      tpu.vector_store %arg8[%c0_226, %c0_227], %855 {strides = array<i32>} : memref<2x32xf32, #tpu.memory_space<vmem>>, vector<2x32xf32>,
      %cst_228 = arith.constant 0.000000e+00 : f32
      %857 = vector.broadcast %cst_228 : f32 to vector<2x32xf32>
      %c0_229 = arith.constant 0 : index
      %c0_230 = arith.constant 0 : index
      %858 = vector.load %arg9[%c0_229, %c0_230] : memref<2x32xf32, #tpu.memory_space<vmem>>, vector<2x32xf32>
      tpu.vector_store %arg9[%c0_229, %c0_230], %857 {strides = array<i32>} : memref<2x32xf32, #tpu.memory_space<vmem>>, vector<2x32xf32>,
      %cst_231 = arith.constant 0.000000e+00 : f32
      %859 = vector.broadcast %cst_231 : f32 to vector<2x32xf32>
      %c0_232 = arith.constant 0 : index
      %c0_233 = arith.constant 0 : index
      %860 = vector.load %arg10[%c0_232, %c0_233] : memref<2x32xf32, #tpu.memory_space<vmem>>, vector<2x32xf32>
      tpu.vector_store %arg10[%c0_232, %c0_233], %859 {strides = array<i32>} : memref<2x32xf32, #tpu.memory_space<vmem>>, vector<2x32xf32>,
    } else {
    }
    %c0 = arith.constant 0 : index
    %c0_1 = arith.constant 0 : index
    %c0_2 = arith.constant 0 : index
    %3 = vector.load %arg3[%c0, %c0_1, %c0_2] : memref<4x32x32xf32, #tpu.memory_space<vmem>>, vector<4x32x32xf32>
    %c0_3 = arith.constant 0 : index
    %c0_4 = arith.constant 0 : index
    %c0_5 = arith.constant 0 : index
    %4 = vector.load %arg4[%c0_3, %c0_4, %c0_5] : memref<4x32x32xf32, #tpu.memory_space<vmem>>, vector<4x32x32xf32>
    %c0_6 = arith.constant 0 : index
    %c0_7 = arith.constant 0 : index
    %5 = vector.load %arg7[%c0_6, %c0_7] : memref<2x32xf32, #tpu.memory_space<vmem>>, vector<2x32xf32>
    %c0_8 = arith.constant 0 : index
    %c0_9 = arith.constant 0 : index
    %6 = vector.load %arg8[%c0_8, %c0_9] : memref<2x32xf32, #tpu.memory_space<vmem>>, vector<2x32xf32>
    %c0_10 = arith.constant 0 : index
    %c0_11 = arith.constant 0 : index
    %7 = vector.load %arg9[%c0_10, %c0_11] : memref<2x32xf32, #tpu.memory_space<vmem>>, vector<2x32xf32>
    %c0_12 = arith.constant 0 : index
    %c0_13 = arith.constant 0 : index
    %8 = vector.load %arg10[%c0_12, %c0_13] : memref<2x32xf32, #tpu.memory_space<vmem>>, vector<2x32xf32>
    %c0_i32_14 = arith.constant 0 : i32
    %9 = arith.index_cast %c0_i32_14 : i32 to index
    %c0_15 = arith.constant 0 : index
    %c0_16 = arith.constant 0 : index
    %c0_17 = arith.constant 0 : index
    %10 = vector.load %arg1[%9, %c0_15, %c0_16, %c0_17] : memref<8x4x2x32xf32, #tpu.memory_space<vmem>>, vector<1x4x2x32xf32>
    %11 = vector.shape_cast %10 : vector<1x4x2x32xf32> to vector<4x2x32xf32>
    %12 = vector.extract_strided_slice %11 {offsets = [0, 0, 0], sizes = [1, 2, 32], strides = [1, 1, 1]} : vector<4x2x32xf32> to vector<1x2x32xf32>
    %13 = vector.shape_cast %12 : vector<1x2x32xf32> to vector<2x32xf32>
    %14 = vector.extract_strided_slice %3 {offsets = [0, 0, 0], sizes = [1, 32, 32], strides = [1, 1, 1]} : vector<4x32x32xf32> to vector<1x32x32xf32>
    %15 = vector.shape_cast %14 : vector<1x32x32xf32> to vector<32x32xf32>
    %cst = arith.constant dense<0.000000e+00> : vector<2x32xf32>
    %16 = tpu.matmul %5, %15, %cst {dimension_numbers = #tpu.dot_dimension_numbers<[1], [0], [0], [1], [0, 0, 1, 1], [], []>} : vector<2x32xf32>, vector<32x32xf32>, vector<2x32xf32> -> vector<2x32xf32>
    %17 = arith.addf %13, %16 : vector<2x32xf32>
    %18 = arith.negf %17 : vector<2x32xf32>
    %19 = math.exp %18 : vector<2x32xf32>
    %cst_18 = arith.constant 1.000000e+00 : f32
    %20 = vector.broadcast %cst_18 : f32 to vector<2x32xf32>
    %21 = arith.addf %20, %19 : vector<2x32xf32>
    %22 = arith.divf %20, %21 : vector<2x32xf32>
    %23 = vector.extract_strided_slice %11 {offsets = [1, 0, 0], sizes = [1, 2, 32], strides = [1, 1, 1]} : vector<4x2x32xf32> to vector<1x2x32xf32>
    %24 = vector.shape_cast %23 : vector<1x2x32xf32> to vector<2x32xf32>
    %25 = vector.extract_strided_slice %3 {offsets = [1, 0, 0], sizes = [1, 32, 32], strides = [1, 1, 1]} : vector<4x32x32xf32> to vector<1x32x32xf32>
    %26 = vector.shape_cast %25 : vector<1x32x32xf32> to vector<32x32xf32>
    %cst_19 = arith.constant dense<0.000000e+00> : vector<2x32xf32>
    %27 = tpu.matmul %5, %26, %cst_19 {dimension_numbers = #tpu.dot_dimension_numbers<[1], [0], [0], [1], [0, 0, 1, 1], [], []>} : vector<2x32xf32>, vector<32x32xf32>, vector<2x32xf32> -> vector<2x32xf32>
    %28 = arith.addf %24, %27 : vector<2x32xf32>
    %29 = arith.negf %28 : vector<2x32xf32>
    %30 = math.exp %29 : vector<2x32xf32>
    %cst_20 = arith.constant 1.000000e+00 : f32
    %31 = vector.broadcast %cst_20 : f32 to vector<2x32xf32>
    %32 = arith.addf %31, %30 : vector<2x32xf32>
    %33 = arith.divf %31, %32 : vector<2x32xf32>
    %34 = vector.extract_strided_slice %11 {offsets = [2, 0, 0], sizes = [1, 2, 32], strides = [1, 1, 1]} : vector<4x2x32xf32> to vector<1x2x32xf32>
    %35 = vector.shape_cast %34 : vector<1x2x32xf32> to vector<2x32xf32>
    %36 = vector.extract_strided_slice %3 {offsets = [2, 0, 0], sizes = [1, 32, 32], strides = [1, 1, 1]} : vector<4x32x32xf32> to vector<1x32x32xf32>
    %37 = vector.shape_cast %36 : vector<1x32x32xf32> to vector<32x32xf32>
    %cst_21 = arith.constant dense<0.000000e+00> : vector<2x32xf32>
    %38 = tpu.matmul %5, %37, %cst_21 {dimension_numbers = #tpu.dot_dimension_numbers<[1], [0], [0], [1], [0, 0, 1, 1], [], []>} : vector<2x32xf32>, vector<32x32xf32>, vector<2x32xf32> -> vector<2x32xf32>
    %39 = arith.addf %35, %38 : vector<2x32xf32>
    %40 = math.tanh %39 : vector<2x32xf32>
    %41 = vector.extract_strided_slice %11 {offsets = [3, 0, 0], sizes = [1, 2, 32], strides = [1, 1, 1]} : vector<4x2x32xf32> to vector<1x2x32xf32>
    %42 = vector.shape_cast %41 : vector<1x2x32xf32> to vector<2x32xf32>
    %43 = vector.extract_strided_slice %3 {offsets = [3, 0, 0], sizes = [1, 32, 32], strides = [1, 1, 1]} : vector<4x32x32xf32> to vector<1x32x32xf32>
    %44 = vector.shape_cast %43 : vector<1x32x32xf32> to vector<32x32xf32>
    %cst_22 = arith.constant dense<0.000000e+00> : vector<2x32xf32>
    %45 = tpu.matmul %5, %44, %cst_22 {dimension_numbers = #tpu.dot_dimension_numbers<[1], [0], [0], [1], [0, 0, 1, 1], [], []>} : vector<2x32xf32>, vector<32x32xf32>, vector<2x32xf32> -> vector<2x32xf32>
    %46 = arith.addf %42, %45 : vector<2x32xf32>
    %47 = arith.negf %46 : vector<2x32xf32>
    %48 = math.exp %47 : vector<2x32xf32>
    %cst_23 = arith.constant 1.000000e+00 : f32
    %49 = vector.broadcast %cst_23 : f32 to vector<2x32xf32>
    %50 = arith.addf %49, %48 : vector<2x32xf32>
    %51 = arith.divf %49, %50 : vector<2x32xf32>
    %52 = arith.mulf %33, %6 : vector<2x32xf32>
    %53 = arith.mulf %22, %40 : vector<2x32xf32>
    %54 = arith.addf %52, %53 : vector<2x32xf32>
    %55 = math.tanh %54 : vector<2x32xf32>
    %56 = arith.mulf %51, %55 : vector<2x32xf32>
    %57 = arith.index_cast %c0_i32_14 : i32 to index
    %c0_24 = arith.constant 0 : index
    %c0_25 = arith.constant 0 : index
    %58 = vector.load %arg5[%57, %c0_24, %c0_25] : memref<8x2x32xf32, #tpu.memory_space<vmem>>, vector<1x2x32xf32>
    %59 = vector.shape_cast %58 : vector<1x2x32xf32> to vector<2x32xf32>
    %60 = vector.shape_cast %56 : vector<2x32xf32> to vector<1x2x32xf32>
    tpu.vector_store %arg5[%57, %c0_24, %c0_25], %60 {strides = array<i32>} : memref<8x2x32xf32, #tpu.memory_space<vmem>>, vector<1x2x32xf32>,
    %c7_i32 = arith.constant 7 : i32
    %61 = arith.subi %c7_i32, %c0_i32_14 : i32
    %62 = arith.index_cast %61 : i32 to index
    %c0_26 = arith.constant 0 : index
    %c0_27 = arith.constant 0 : index
    %c0_28 = arith.constant 0 : index
    %63 = vector.load %arg2[%62, %c0_26, %c0_27, %c0_28] : memref<8x4x2x32xf32, #tpu.memory_space<vmem>>, vector<1x4x2x32xf32>
    %64 = vector.shape_cast %63 : vector<1x4x2x32xf32> to vector<4x2x32xf32>
    %65 = vector.extract_strided_slice %64 {offsets = [0, 0, 0], sizes = [1, 2, 32], strides = [1, 1, 1]} : vector<4x2x32xf32> to vector<1x2x32xf32>
    %66 = vector.shape_cast %65 : vector<1x2x32xf32> to vector<2x32xf32>
    %67 = vector.extract_strided_slice %4 {offsets = [0, 0, 0], sizes = [1, 32, 32], strides = [1, 1, 1]} : vector<4x32x32xf32> to vector<1x32x32xf32>
    %68 = vector.shape_cast %67 : vector<1x32x32xf32> to vector<32x32xf32>
    %cst_29 = arith.constant dense<0.000000e+00> : vector<2x32xf32>
    %69 = tpu.matmul %7, %68, %cst_29 {dimension_numbers = #tpu.dot_dimension_numbers<[1], [0], [0], [1], [0, 0, 1, 1], [], []>} : vector<2x32xf32>, vector<32x32xf32>, vector<2x32xf32> -> vector<2x32xf32>
    %70 = arith.addf %66, %69 : vector<2x32xf32>
    %71 = arith.negf %70 : vector<2x32xf32>
    %72 = math.exp %71 : vector<2x32xf32>
    %cst_30 = arith.constant 1.000000e+00 : f32
    %73 = vector.broadcast %cst_30 : f32 to vector<2x32xf32>
    %74 = arith.addf %73, %72 : vector<2x32xf32>
    %75 = arith.divf %73, %74 : vector<2x32xf32>
    %76 = vector.extract_strided_slice %64 {offsets = [1, 0, 0], sizes = [1, 2, 32], strides = [1, 1, 1]} : vector<4x2x32xf32> to vector<1x2x32xf32>
    %77 = vector.shape_cast %76 : vector<1x2x32xf32> to vector<2x32xf32>
    %78 = vector.extract_strided_slice %4 {offsets = [1, 0, 0], sizes = [1, 32, 32], strides = [1, 1, 1]} : vector<4x32x32xf32> to vector<1x32x32xf32>
    %79 = vector.shape_cast %78 : vector<1x32x32xf32> to vector<32x32xf32>
    %cst_31 = arith.constant dense<0.000000e+00> : vector<2x32xf32>
    %80 = tpu.matmul %7, %79, %cst_31 {dimension_numbers = #tpu.dot_dimension_numbers<[1], [0], [0], [1], [0, 0, 1, 1], [], []>} : vector<2x32xf32>, vector<32x32xf32>, vector<2x32xf32> -> vector<2x32xf32>
    %81 = arith.addf %77, %80 : vector<2x32xf32>
    %82 = arith.negf %81 : vector<2x32xf32>
    %83 = math.exp %82 : vector<2x32xf32>
    %cst_32 = arith.constant 1.000000e+00 : f32
    %84 = vector.broadcast %cst_32 : f32 to vector<2x32xf32>
    %85 = arith.addf %84, %83 : vector<2x32xf32>
    %86 = arith.divf %84, %85 : vector<2x32xf32>
    %87 = vector.extract_strided_slice %64 {offsets = [2, 0, 0], sizes = [1, 2, 32], strides = [1, 1, 1]} : vector<4x2x32xf32> to vector<1x2x32xf32>
    %88 = vector.shape_cast %87 : vector<1x2x32xf32> to vector<2x32xf32>
    %89 = vector.extract_strided_slice %4 {offsets = [2, 0, 0], sizes = [1, 32, 32], strides = [1, 1, 1]} : vector<4x32x32xf32> to vector<1x32x32xf32>
    %90 = vector.shape_cast %89 : vector<1x32x32xf32> to vector<32x32xf32>
    %cst_33 = arith.constant dense<0.000000e+00> : vector<2x32xf32>
    %91 = tpu.matmul %7, %90, %cst_33 {dimension_numbers = #tpu.dot_dimension_numbers<[1], [0], [0], [1], [0, 0, 1, 1], [], []>} : vector<2x32xf32>, vector<32x32xf32>, vector<2x32xf32> -> vector<2x32xf32>
    %92 = arith.addf %88, %91 : vector<2x32xf32>
    %93 = math.tanh %92 : vector<2x32xf32>
    %94 = vector.extract_strided_slice %64 {offsets = [3, 0, 0], sizes = [1, 2, 32], strides = [1, 1, 1]} : vector<4x2x32xf32> to vector<1x2x32xf32>
    %95 = vector.shape_cast %94 : vector<1x2x32xf32> to vector<2x32xf32>
    %96 = vector.extract_strided_slice %4 {offsets = [3, 0, 0], sizes = [1, 32, 32], strides = [1, 1, 1]} : vector<4x32x32xf32> to vector<1x32x32xf32>
    %97 = vector.shape_cast %96 : vector<1x32x32xf32> to vector<32x32xf32>
    %cst_34 = arith.constant dense<0.000000e+00> : vector<2x32xf32>
    %98 = tpu.matmul %7, %97, %cst_34 {dimension_numbers = #tpu.dot_dimension_numbers<[1], [0], [0], [1], [0, 0, 1, 1], [], []>} : vector<2x32xf32>, vector<32x32xf32>, vector<2x32xf32> -> vector<2x32xf32>
    %99 = arith.addf %95, %98 : vector<2x32xf32>
    %100 = arith.negf %99 : vector<2x32xf32>
    %101 = math.exp %100 : vector<2x32xf32>
    %cst_35 = arith.constant 1.000000e+00 : f32
    %102 = vector.broadcast %cst_35 : f32 to vector<2x32xf32>
    %103 = arith.addf %102, %101 : vector<2x32xf32>
    %104 = arith.divf %102, %103 : vector<2x32xf32>
    %105 = arith.mulf %86, %8 : vector<2x32xf32>
    %106 = arith.mulf %75, %93 : vector<2x32xf32>
    %107 = arith.addf %105, %106 : vector<2x32xf32>
    %108 = math.tanh %107 : vector<2x32xf32>
    %109 = arith.mulf %104, %108 : vector<2x32xf32>
    %110 = arith.index_cast %61 : i32 to index
    %c0_36 = arith.constant 0 : index
    %c0_37 = arith.constant 0 : index
    %111 = vector.load %arg6[%110, %c0_36, %c0_37] : memref<8x2x32xf32, #tpu.memory_space<vmem>>, vector<1x2x32xf32>
    %112 = vector.shape_cast %111 : vector<1x2x32xf32> to vector<2x32xf32>
    %113 = vector.shape_cast %109 : vector<2x32xf32> to vector<1x2x32xf32>
    tpu.vector_store %arg6[%110, %c0_36, %c0_37], %113 {strides = array<i32>} : memref<8x2x32xf32, #tpu.memory_space<vmem>>, vector<1x2x32xf32>,
    %c1_i32 = arith.constant 1 : i32
    %114 = arith.index_cast %c1_i32 : i32 to index
    %c0_38 = arith.constant 0 : index
    %c0_39 = arith.constant 0 : index
    %c0_40 = arith.constant 0 : index
    %115 = vector.load %arg1[%114, %c0_38, %c0_39, %c0_40] : memref<8x4x2x32xf32, #tpu.memory_space<vmem>>, vector<1x4x2x32xf32>
    %116 = vector.shape_cast %115 : vector<1x4x2x32xf32> to vector<4x2x32xf32>
    %117 = vector.extract_strided_slice %116 {offsets = [0, 0, 0], sizes = [1, 2, 32], strides = [1, 1, 1]} : vector<4x2x32xf32> to vector<1x2x32xf32>
    %118 = vector.shape_cast %117 : vector<1x2x32xf32> to vector<2x32xf32>
    %119 = vector.extract_strided_slice %3 {offsets = [0, 0, 0], sizes = [1, 32, 32], strides = [1, 1, 1]} : vector<4x32x32xf32> to vector<1x32x32xf32>
    %120 = vector.shape_cast %119 : vector<1x32x32xf32> to vector<32x32xf32>
    %cst_41 = arith.constant dense<0.000000e+00> : vector<2x32xf32>
    %121 = tpu.matmul %56, %120, %cst_41 {dimension_numbers = #tpu.dot_dimension_numbers<[1], [0], [0], [1], [0, 0, 1, 1], [], []>} : vector<2x32xf32>, vector<32x32xf32>, vector<2x32xf32> -> vector<2x32xf32>
    %122 = arith.addf %118, %121 : vector<2x32xf32>
    %123 = arith.negf %122 : vector<2x32xf32>
    %124 = math.exp %123 : vector<2x32xf32>
    %cst_42 = arith.constant 1.000000e+00 : f32
    %125 = vector.broadcast %cst_42 : f32 to vector<2x32xf32>
    %126 = arith.addf %125, %124 : vector<2x32xf32>
    %127 = arith.divf %125, %126 : vector<2x32xf32>
    %128 = vector.extract_strided_slice %116 {offsets = [1, 0, 0], sizes = [1, 2, 32], strides = [1, 1, 1]} : vector<4x2x32xf32> to vector<1x2x32xf32>
    %129 = vector.shape_cast %128 : vector<1x2x32xf32> to vector<2x32xf32>
    %130 = vector.extract_strided_slice %3 {offsets = [1, 0, 0], sizes = [1, 32, 32], strides = [1, 1, 1]} : vector<4x32x32xf32> to vector<1x32x32xf32>
    %131 = vector.shape_cast %130 : vector<1x32x32xf32> to vector<32x32xf32>
    %cst_43 = arith.constant dense<0.000000e+00> : vector<2x32xf32>
    %132 = tpu.matmul %56, %131, %cst_43 {dimension_numbers = #tpu.dot_dimension_numbers<[1], [0], [0], [1], [0, 0, 1, 1], [], []>} : vector<2x32xf32>, vector<32x32xf32>, vector<2x32xf32> -> vector<2x32xf32>
    %133 = arith.addf %129, %132 : vector<2x32xf32>
    %134 = arith.negf %133 : vector<2x32xf32>
    %135 = math.exp %134 : vector<2x32xf32>
    %cst_44 = arith.constant 1.000000e+00 : f32
    %136 = vector.broadcast %cst_44 : f32 to vector<2x32xf32>
    %137 = arith.addf %136, %135 : vector<2x32xf32>
    %138 = arith.divf %136, %137 : vector<2x32xf32>
    %139 = vector.extract_strided_slice %116 {offsets = [2, 0, 0], sizes = [1, 2, 32], strides = [1, 1, 1]} : vector<4x2x32xf32> to vector<1x2x32xf32>
    %140 = vector.shape_cast %139 : vector<1x2x32xf32> to vector<2x32xf32>
    %141 = vector.extract_strided_slice %3 {offsets = [2, 0, 0], sizes = [1, 32, 32], strides = [1, 1, 1]} : vector<4x32x32xf32> to vector<1x32x32xf32>
    %142 = vector.shape_cast %141 : vector<1x32x32xf32> to vector<32x32xf32>
    %cst_45 = arith.constant dense<0.000000e+00> : vector<2x32xf32>
    %143 = tpu.matmul %56, %142, %cst_45 {dimension_numbers = #tpu.dot_dimension_numbers<[1], [0], [0], [1], [0, 0, 1, 1], [], []>} : vector<2x32xf32>, vector<32x32xf32>, vector<2x32xf32> -> vector<2x32xf32>
    %144 = arith.addf %140, %143 : vector<2x32xf32>
    %145 = math.tanh %144 : vector<2x32xf32>
    %146 = vector.extract_strided_slice %116 {offsets = [3, 0, 0], sizes = [1, 2, 32], strides = [1, 1, 1]} : vector<4x2x32xf32> to vector<1x2x32xf32>
    %147 = vector.shape_cast %146 : vector<1x2x32xf32> to vector<2x32xf32>
    %148 = vector.extract_strided_slice %3 {offsets = [3, 0, 0], sizes = [1, 32, 32], strides = [1, 1, 1]} : vector<4x32x32xf32> to vector<1x32x32xf32>
    %149 = vector.shape_cast %148 : vector<1x32x32xf32> to vector<32x32xf32>
    %cst_46 = arith.constant dense<0.000000e+00> : vector<2x32xf32>
    %150 = tpu.matmul %56, %149, %cst_46 {dimension_numbers = #tpu.dot_dimension_numbers<[1], [0], [0], [1], [0, 0, 1, 1], [], []>} : vector<2x32xf32>, vector<32x32xf32>, vector<2x32xf32> -> vector<2x32xf32>
    %151 = arith.addf %147, %150 : vector<2x32xf32>
    %152 = arith.negf %151 : vector<2x32xf32>
    %153 = math.exp %152 : vector<2x32xf32>
    %cst_47 = arith.constant 1.000000e+00 : f32
    %154 = vector.broadcast %cst_47 : f32 to vector<2x32xf32>
    %155 = arith.addf %154, %153 : vector<2x32xf32>
    %156 = arith.divf %154, %155 : vector<2x32xf32>
    %157 = arith.mulf %138, %54 : vector<2x32xf32>
    %158 = arith.mulf %127, %145 : vector<2x32xf32>
    %159 = arith.addf %157, %158 : vector<2x32xf32>
    %160 = math.tanh %159 : vector<2x32xf32>
    %161 = arith.mulf %156, %160 : vector<2x32xf32>
    %162 = arith.index_cast %c1_i32 : i32 to index
    %c0_48 = arith.constant 0 : index
    %c0_49 = arith.constant 0 : index
    %163 = vector.load %arg5[%162, %c0_48, %c0_49] : memref<8x2x32xf32, #tpu.memory_space<vmem>>, vector<1x2x32xf32>
    %164 = vector.shape_cast %163 : vector<1x2x32xf32> to vector<2x32xf32>
    %165 = vector.shape_cast %161 : vector<2x32xf32> to vector<1x2x32xf32>
    tpu.vector_store %arg5[%162, %c0_48, %c0_49], %165 {strides = array<i32>} : memref<8x2x32xf32, #tpu.memory_space<vmem>>, vector<1x2x32xf32>,
    %c7_i32_50 = arith.constant 7 : i32
    %166 = arith.subi %c7_i32_50, %c1_i32 : i32
    %167 = arith.index_cast %166 : i32 to index
    %c0_51 = arith.constant 0 : index
    %c0_52 = arith.constant 0 : index
    %c0_53 = arith.constant 0 : index
    %168 = vector.load %arg2[%167, %c0_51, %c0_52, %c0_53] : memref<8x4x2x32xf32, #tpu.memory_space<vmem>>, vector<1x4x2x32xf32>
    %169 = vector.shape_cast %168 : vector<1x4x2x32xf32> to vector<4x2x32xf32>
    %170 = vector.extract_strided_slice %169 {offsets = [0, 0, 0], sizes = [1, 2, 32], strides = [1, 1, 1]} : vector<4x2x32xf32> to vector<1x2x32xf32>
    %171 = vector.shape_cast %170 : vector<1x2x32xf32> to vector<2x32xf32>
    %172 = vector.extract_strided_slice %4 {offsets = [0, 0, 0], sizes = [1, 32, 32], strides = [1, 1, 1]} : vector<4x32x32xf32> to vector<1x32x32xf32>
    %173 = vector.shape_cast %172 : vector<1x32x32xf32> to vector<32x32xf32>
    %cst_54 = arith.constant dense<0.000000e+00> : vector<2x32xf32>
    %174 = tpu.matmul %109, %173, %cst_54 {dimension_numbers = #tpu.dot_dimension_numbers<[1], [0], [0], [1], [0, 0, 1, 1], [], []>} : vector<2x32xf32>, vector<32x32xf32>, vector<2x32xf32> -> vector<2x32xf32>
    %175 = arith.addf %171, %174 : vector<2x32xf32>
    %176 = arith.negf %175 : vector<2x32xf32>
    %177 = math.exp %176 : vector<2x32xf32>
    %cst_55 = arith.constant 1.000000e+00 : f32
    %178 = vector.broadcast %cst_55 : f32 to vector<2x32xf32>
    %179 = arith.addf %178, %177 : vector<2x32xf32>
    %180 = arith.divf %178, %179 : vector<2x32xf32>
    %181 = vector.extract_strided_slice %169 {offsets = [1, 0, 0], sizes = [1, 2, 32], strides = [1, 1, 1]} : vector<4x2x32xf32> to vector<1x2x32xf32>
    %182 = vector.shape_cast %181 : vector<1x2x32xf32> to vector<2x32xf32>
    %183 = vector.extract_strided_slice %4 {offsets = [1, 0, 0], sizes = [1, 32, 32], strides = [1, 1, 1]} : vector<4x32x32xf32> to vector<1x32x32xf32>
    %184 = vector.shape_cast %183 : vector<1x32x32xf32> to vector<32x32xf32>
    %cst_56 = arith.constant dense<0.000000e+00> : vector<2x32xf32>
    %185 = tpu.matmul %109, %184, %cst_56 {dimension_numbers = #tpu.dot_dimension_numbers<[1], [0], [0], [1], [0, 0, 1, 1], [], []>} : vector<2x32xf32>, vector<32x32xf32>, vector<2x32xf32> -> vector<2x32xf32>
    %186 = arith.addf %182, %185 : vector<2x32xf32>
    %187 = arith.negf %186 : vector<2x32xf32>
    %188 = math.exp %187 : vector<2x32xf32>
    %cst_57 = arith.constant 1.000000e+00 : f32
    %189 = vector.broadcast %cst_57 : f32 to vector<2x32xf32>
    %190 = arith.addf %189, %188 : vector<2x32xf32>
    %191 = arith.divf %189, %190 : vector<2x32xf32>
    %192 = vector.extract_strided_slice %169 {offsets = [2, 0, 0], sizes = [1, 2, 32], strides = [1, 1, 1]} : vector<4x2x32xf32> to vector<1x2x32xf32>
    %193 = vector.shape_cast %192 : vector<1x2x32xf32> to vector<2x32xf32>
    %194 = vector.extract_strided_slice %4 {offsets = [2, 0, 0], sizes = [1, 32, 32], strides = [1, 1, 1]} : vector<4x32x32xf32> to vector<1x32x32xf32>
    %195 = vector.shape_cast %194 : vector<1x32x32xf32> to vector<32x32xf32>
    %cst_58 = arith.constant dense<0.000000e+00> : vector<2x32xf32>
    %196 = tpu.matmul %109, %195, %cst_58 {dimension_numbers = #tpu.dot_dimension_numbers<[1], [0], [0], [1], [0, 0, 1, 1], [], []>} : vector<2x32xf32>, vector<32x32xf32>, vector<2x32xf32> -> vector<2x32xf32>
    %197 = arith.addf %193, %196 : vector<2x32xf32>
    %198 = math.tanh %197 : vector<2x32xf32>
    %199 = vector.extract_strided_slice %169 {offsets = [3, 0, 0], sizes = [1, 2, 32], strides = [1, 1, 1]} : vector<4x2x32xf32> to vector<1x2x32xf32>
    %200 = vector.shape_cast %199 : vector<1x2x32xf32> to vector<2x32xf32>
    %201 = vector.extract_strided_slice %4 {offsets = [3, 0, 0], sizes = [1, 32, 32], strides = [1, 1, 1]} : vector<4x32x32xf32> to vector<1x32x32xf32>
    %202 = vector.shape_cast %201 : vector<1x32x32xf32> to vector<32x32xf32>
    %cst_59 = arith.constant dense<0.000000e+00> : vector<2x32xf32>
    %203 = tpu.matmul %109, %202, %cst_59 {dimension_numbers = #tpu.dot_dimension_numbers<[1], [0], [0], [1], [0, 0, 1, 1], [], []>} : vector<2x32xf32>, vector<32x32xf32>, vector<2x32xf32> -> vector<2x32xf32>
    %204 = arith.addf %200, %203 : vector<2x32xf32>
    %205 = arith.negf %204 : vector<2x32xf32>
    %206 = math.exp %205 : vector<2x32xf32>
    %cst_60 = arith.constant 1.000000e+00 : f32
    %207 = vector.broadcast %cst_60 : f32 to vector<2x32xf32>
    %208 = arith.addf %207, %206 : vector<2x32xf32>
    %209 = arith.divf %207, %208 : vector<2x32xf32>
    %210 = arith.mulf %191, %107 : vector<2x32xf32>
    %211 = arith.mulf %180, %198 : vector<2x32xf32>
    %212 = arith.addf %210, %211 : vector<2x32xf32>
    %213 = math.tanh %212 : vector<2x32xf32>
    %214 = arith.mulf %209, %213 : vector<2x32xf32>
    %215 = arith.index_cast %166 : i32 to index
    %c0_61 = arith.constant 0 : index
    %c0_62 = arith.constant 0 : index
    %216 = vector.load %arg6[%215, %c0_61, %c0_62] : memref<8x2x32xf32, #tpu.memory_space<vmem>>, vector<1x2x32xf32>
    %217 = vector.shape_cast %216 : vector<1x2x32xf32> to vector<2x32xf32>
    %218 = vector.shape_cast %214 : vector<2x32xf32> to vector<1x2x32xf32>
    tpu.vector_store %arg6[%215, %c0_61, %c0_62], %218 {strides = array<i32>} : memref<8x2x32xf32, #tpu.memory_space<vmem>>, vector<1x2x32xf32>,
    %c2_i32 = arith.constant 2 : i32
    %219 = arith.index_cast %c2_i32 : i32 to index
    %c0_63 = arith.constant 0 : index
    %c0_64 = arith.constant 0 : index
    %c0_65 = arith.constant 0 : index
    %220 = vector.load %arg1[%219, %c0_63, %c0_64, %c0_65] : memref<8x4x2x32xf32, #tpu.memory_space<vmem>>, vector<1x4x2x32xf32>
    %221 = vector.shape_cast %220 : vector<1x4x2x32xf32> to vector<4x2x32xf32>
    %222 = vector.extract_strided_slice %221 {offsets = [0, 0, 0], sizes = [1, 2, 32], strides = [1, 1, 1]} : vector<4x2x32xf32> to vector<1x2x32xf32>
    %223 = vector.shape_cast %222 : vector<1x2x32xf32> to vector<2x32xf32>
    %224 = vector.extract_strided_slice %3 {offsets = [0, 0, 0], sizes = [1, 32, 32], strides = [1, 1, 1]} : vector<4x32x32xf32> to vector<1x32x32xf32>
    %225 = vector.shape_cast %224 : vector<1x32x32xf32> to vector<32x32xf32>
    %cst_66 = arith.constant dense<0.000000e+00> : vector<2x32xf32>
    %226 = tpu.matmul %161, %225, %cst_66 {dimension_numbers = #tpu.dot_dimension_numbers<[1], [0], [0], [1], [0, 0, 1, 1], [], []>} : vector<2x32xf32>, vector<32x32xf32>, vector<2x32xf32> -> vector<2x32xf32>
    %227 = arith.addf %223, %226 : vector<2x32xf32>
    %228 = arith.negf %227 : vector<2x32xf32>
    %229 = math.exp %228 : vector<2x32xf32>
    %cst_67 = arith.constant 1.000000e+00 : f32
    %230 = vector.broadcast %cst_67 : f32 to vector<2x32xf32>
    %231 = arith.addf %230, %229 : vector<2x32xf32>
    %232 = arith.divf %230, %231 : vector<2x32xf32>
    %233 = vector.extract_strided_slice %221 {offsets = [1, 0, 0], sizes = [1, 2, 32], strides = [1, 1, 1]} : vector<4x2x32xf32> to vector<1x2x32xf32>
    %234 = vector.shape_cast %233 : vector<1x2x32xf32> to vector<2x32xf32>
    %235 = vector.extract_strided_slice %3 {offsets = [1, 0, 0], sizes = [1, 32, 32], strides = [1, 1, 1]} : vector<4x32x32xf32> to vector<1x32x32xf32>
    %236 = vector.shape_cast %235 : vector<1x32x32xf32> to vector<32x32xf32>
    %cst_68 = arith.constant dense<0.000000e+00> : vector<2x32xf32>
    %237 = tpu.matmul %161, %236, %cst_68 {dimension_numbers = #tpu.dot_dimension_numbers<[1], [0], [0], [1], [0, 0, 1, 1], [], []>} : vector<2x32xf32>, vector<32x32xf32>, vector<2x32xf32> -> vector<2x32xf32>
    %238 = arith.addf %234, %237 : vector<2x32xf32>
    %239 = arith.negf %238 : vector<2x32xf32>
    %240 = math.exp %239 : vector<2x32xf32>
    %cst_69 = arith.constant 1.000000e+00 : f32
    %241 = vector.broadcast %cst_69 : f32 to vector<2x32xf32>
    %242 = arith.addf %241, %240 : vector<2x32xf32>
    %243 = arith.divf %241, %242 : vector<2x32xf32>
    %244 = vector.extract_strided_slice %221 {offsets = [2, 0, 0], sizes = [1, 2, 32], strides = [1, 1, 1]} : vector<4x2x32xf32> to vector<1x2x32xf32>
    %245 = vector.shape_cast %244 : vector<1x2x32xf32> to vector<2x32xf32>
    %246 = vector.extract_strided_slice %3 {offsets = [2, 0, 0], sizes = [1, 32, 32], strides = [1, 1, 1]} : vector<4x32x32xf32> to vector<1x32x32xf32>
    %247 = vector.shape_cast %246 : vector<1x32x32xf32> to vector<32x32xf32>
    %cst_70 = arith.constant dense<0.000000e+00> : vector<2x32xf32>
    %248 = tpu.matmul %161, %247, %cst_70 {dimension_numbers = #tpu.dot_dimension_numbers<[1], [0], [0], [1], [0, 0, 1, 1], [], []>} : vector<2x32xf32>, vector<32x32xf32>, vector<2x32xf32> -> vector<2x32xf32>
    %249 = arith.addf %245, %248 : vector<2x32xf32>
    %250 = math.tanh %249 : vector<2x32xf32>
    %251 = vector.extract_strided_slice %221 {offsets = [3, 0, 0], sizes = [1, 2, 32], strides = [1, 1, 1]} : vector<4x2x32xf32> to vector<1x2x32xf32>
    %252 = vector.shape_cast %251 : vector<1x2x32xf32> to vector<2x32xf32>
    %253 = vector.extract_strided_slice %3 {offsets = [3, 0, 0], sizes = [1, 32, 32], strides = [1, 1, 1]} : vector<4x32x32xf32> to vector<1x32x32xf32>
    %254 = vector.shape_cast %253 : vector<1x32x32xf32> to vector<32x32xf32>
    %cst_71 = arith.constant dense<0.000000e+00> : vector<2x32xf32>
    %255 = tpu.matmul %161, %254, %cst_71 {dimension_numbers = #tpu.dot_dimension_numbers<[1], [0], [0], [1], [0, 0, 1, 1], [], []>} : vector<2x32xf32>, vector<32x32xf32>, vector<2x32xf32> -> vector<2x32xf32>
    %256 = arith.addf %252, %255 : vector<2x32xf32>
    %257 = arith.negf %256 : vector<2x32xf32>
    %258 = math.exp %257 : vector<2x32xf32>
    %cst_72 = arith.constant 1.000000e+00 : f32
    %259 = vector.broadcast %cst_72 : f32 to vector<2x32xf32>
    %260 = arith.addf %259, %258 : vector<2x32xf32>
    %261 = arith.divf %259, %260 : vector<2x32xf32>
    %262 = arith.mulf %243, %159 : vector<2x32xf32>
    %263 = arith.mulf %232, %250 : vector<2x32xf32>
    %264 = arith.addf %262, %263 : vector<2x32xf32>
    %265 = math.tanh %264 : vector<2x32xf32>
    %266 = arith.mulf %261, %265 : vector<2x32xf32>
    %267 = arith.index_cast %c2_i32 : i32 to index
    %c0_73 = arith.constant 0 : index
    %c0_74 = arith.constant 0 : index
    %268 = vector.load %arg5[%267, %c0_73, %c0_74] : memref<8x2x32xf32, #tpu.memory_space<vmem>>, vector<1x2x32xf32>
    %269 = vector.shape_cast %268 : vector<1x2x32xf32> to vector<2x32xf32>
    %270 = vector.shape_cast %266 : vector<2x32xf32> to vector<1x2x32xf32>
    tpu.vector_store %arg5[%267, %c0_73, %c0_74], %270 {strides = array<i32>} : memref<8x2x32xf32, #tpu.memory_space<vmem>>, vector<1x2x32xf32>,
    %c7_i32_75 = arith.constant 7 : i32
    %271 = arith.subi %c7_i32_75, %c2_i32 : i32
    %272 = arith.index_cast %271 : i32 to index
    %c0_76 = arith.constant 0 : index
    %c0_77 = arith.constant 0 : index
    %c0_78 = arith.constant 0 : index
    %273 = vector.load %arg2[%272, %c0_76, %c0_77, %c0_78] : memref<8x4x2x32xf32, #tpu.memory_space<vmem>>, vector<1x4x2x32xf32>
    %274 = vector.shape_cast %273 : vector<1x4x2x32xf32> to vector<4x2x32xf32>
    %275 = vector.extract_strided_slice %274 {offsets = [0, 0, 0], sizes = [1, 2, 32], strides = [1, 1, 1]} : vector<4x2x32xf32> to vector<1x2x32xf32>
    %276 = vector.shape_cast %275 : vector<1x2x32xf32> to vector<2x32xf32>
    %277 = vector.extract_strided_slice %4 {offsets = [0, 0, 0], sizes = [1, 32, 32], strides = [1, 1, 1]} : vector<4x32x32xf32> to vector<1x32x32xf32>
    %278 = vector.shape_cast %277 : vector<1x32x32xf32> to vector<32x32xf32>
    %cst_79 = arith.constant dense<0.000000e+00> : vector<2x32xf32>
    %279 = tpu.matmul %214, %278, %cst_79 {dimension_numbers = #tpu.dot_dimension_numbers<[1], [0], [0], [1], [0, 0, 1, 1], [], []>} : vector<2x32xf32>, vector<32x32xf32>, vector<2x32xf32> -> vector<2x32xf32>
    %280 = arith.addf %276, %279 : vector<2x32xf32>
    %281 = arith.negf %280 : vector<2x32xf32>
    %282 = math.exp %281 : vector<2x32xf32>
    %cst_80 = arith.constant 1.000000e+00 : f32
    %283 = vector.broadcast %cst_80 : f32 to vector<2x32xf32>
    %284 = arith.addf %283, %282 : vector<2x32xf32>
    %285 = arith.divf %283, %284 : vector<2x32xf32>
    %286 = vector.extract_strided_slice %274 {offsets = [1, 0, 0], sizes = [1, 2, 32], strides = [1, 1, 1]} : vector<4x2x32xf32> to vector<1x2x32xf32>
    %287 = vector.shape_cast %286 : vector<1x2x32xf32> to vector<2x32xf32>
    %288 = vector.extract_strided_slice %4 {offsets = [1, 0, 0], sizes = [1, 32, 32], strides = [1, 1, 1]} : vector<4x32x32xf32> to vector<1x32x32xf32>
    %289 = vector.shape_cast %288 : vector<1x32x32xf32> to vector<32x32xf32>
    %cst_81 = arith.constant dense<0.000000e+00> : vector<2x32xf32>
    %290 = tpu.matmul %214, %289, %cst_81 {dimension_numbers = #tpu.dot_dimension_numbers<[1], [0], [0], [1], [0, 0, 1, 1], [], []>} : vector<2x32xf32>, vector<32x32xf32>, vector<2x32xf32> -> vector<2x32xf32>
    %291 = arith.addf %287, %290 : vector<2x32xf32>
    %292 = arith.negf %291 : vector<2x32xf32>
    %293 = math.exp %292 : vector<2x32xf32>
    %cst_82 = arith.constant 1.000000e+00 : f32
    %294 = vector.broadcast %cst_82 : f32 to vector<2x32xf32>
    %295 = arith.addf %294, %293 : vector<2x32xf32>
    %296 = arith.divf %294, %295 : vector<2x32xf32>
    %297 = vector.extract_strided_slice %274 {offsets = [2, 0, 0], sizes = [1, 2, 32], strides = [1, 1, 1]} : vector<4x2x32xf32> to vector<1x2x32xf32>
    %298 = vector.shape_cast %297 : vector<1x2x32xf32> to vector<2x32xf32>
    %299 = vector.extract_strided_slice %4 {offsets = [2, 0, 0], sizes = [1, 32, 32], strides = [1, 1, 1]} : vector<4x32x32xf32> to vector<1x32x32xf32>
    %300 = vector.shape_cast %299 : vector<1x32x32xf32> to vector<32x32xf32>
    %cst_83 = arith.constant dense<0.000000e+00> : vector<2x32xf32>
    %301 = tpu.matmul %214, %300, %cst_83 {dimension_numbers = #tpu.dot_dimension_numbers<[1], [0], [0], [1], [0, 0, 1, 1], [], []>} : vector<2x32xf32>, vector<32x32xf32>, vector<2x32xf32> -> vector<2x32xf32>
    %302 = arith.addf %298, %301 : vector<2x32xf32>
    %303 = math.tanh %302 : vector<2x32xf32>
    %304 = vector.extract_strided_slice %274 {offsets = [3, 0, 0], sizes = [1, 2, 32], strides = [1, 1, 1]} : vector<4x2x32xf32> to vector<1x2x32xf32>
    %305 = vector.shape_cast %304 : vector<1x2x32xf32> to vector<2x32xf32>
    %306 = vector.extract_strided_slice %4 {offsets = [3, 0, 0], sizes = [1, 32, 32], strides = [1, 1, 1]} : vector<4x32x32xf32> to vector<1x32x32xf32>
    %307 = vector.shape_cast %306 : vector<1x32x32xf32> to vector<32x32xf32>
    %cst_84 = arith.constant dense<0.000000e+00> : vector<2x32xf32>
    %308 = tpu.matmul %214, %307, %cst_84 {dimension_numbers = #tpu.dot_dimension_numbers<[1], [0], [0], [1], [0, 0, 1, 1], [], []>} : vector<2x32xf32>, vector<32x32xf32>, vector<2x32xf32> -> vector<2x32xf32>
    %309 = arith.addf %305, %308 : vector<2x32xf32>
    %310 = arith.negf %309 : vector<2x32xf32>
    %311 = math.exp %310 : vector<2x32xf32>
    %cst_85 = arith.constant 1.000000e+00 : f32
    %312 = vector.broadcast %cst_85 : f32 to vector<2x32xf32>
    %313 = arith.addf %312, %311 : vector<2x32xf32>
    %314 = arith.divf %312, %313 : vector<2x32xf32>
    %315 = arith.mulf %296, %212 : vector<2x32xf32>
    %316 = arith.mulf %285, %303 : vector<2x32xf32>
    %317 = arith.addf %315, %316 : vector<2x32xf32>
    %318 = math.tanh %317 : vector<2x32xf32>
    %319 = arith.mulf %314, %318 : vector<2x32xf32>
    %320 = arith.index_cast %271 : i32 to index
    %c0_86 = arith.constant 0 : index
    %c0_87 = arith.constant 0 : index
    %321 = vector.load %arg6[%320, %c0_86, %c0_87] : memref<8x2x32xf32, #tpu.memory_space<vmem>>, vector<1x2x32xf32>
    %322 = vector.shape_cast %321 : vector<1x2x32xf32> to vector<2x32xf32>
    %323 = vector.shape_cast %319 : vector<2x32xf32> to vector<1x2x32xf32>
    tpu.vector_store %arg6[%320, %c0_86, %c0_87], %323 {strides = array<i32>} : memref<8x2x32xf32, #tpu.memory_space<vmem>>, vector<1x2x32xf32>,
    %c3_i32 = arith.constant 3 : i32
    %324 = arith.index_cast %c3_i32 : i32 to index
    %c0_88 = arith.constant 0 : index
    %c0_89 = arith.constant 0 : index
    %c0_90 = arith.constant 0 : index
    %325 = vector.load %arg1[%324, %c0_88, %c0_89, %c0_90] : memref<8x4x2x32xf32, #tpu.memory_space<vmem>>, vector<1x4x2x32xf32>
    %326 = vector.shape_cast %325 : vector<1x4x2x32xf32> to vector<4x2x32xf32>
    %327 = vector.extract_strided_slice %326 {offsets = [0, 0, 0], sizes = [1, 2, 32], strides = [1, 1, 1]} : vector<4x2x32xf32> to vector<1x2x32xf32>
    %328 = vector.shape_cast %327 : vector<1x2x32xf32> to vector<2x32xf32>
    %329 = vector.extract_strided_slice %3 {offsets = [0, 0, 0], sizes = [1, 32, 32], strides = [1, 1, 1]} : vector<4x32x32xf32> to vector<1x32x32xf32>
    %330 = vector.shape_cast %329 : vector<1x32x32xf32> to vector<32x32xf32>
    %cst_91 = arith.constant dense<0.000000e+00> : vector<2x32xf32>
    %331 = tpu.matmul %266, %330, %cst_91 {dimension_numbers = #tpu.dot_dimension_numbers<[1], [0], [0], [1], [0, 0, 1, 1], [], []>} : vector<2x32xf32>, vector<32x32xf32>, vector<2x32xf32> -> vector<2x32xf32>
    %332 = arith.addf %328, %331 : vector<2x32xf32>
    %333 = arith.negf %332 : vector<2x32xf32>
    %334 = math.exp %333 : vector<2x32xf32>
    %cst_92 = arith.constant 1.000000e+00 : f32
    %335 = vector.broadcast %cst_92 : f32 to vector<2x32xf32>
    %336 = arith.addf %335, %334 : vector<2x32xf32>
    %337 = arith.divf %335, %336 : vector<2x32xf32>
    %338 = vector.extract_strided_slice %326 {offsets = [1, 0, 0], sizes = [1, 2, 32], strides = [1, 1, 1]} : vector<4x2x32xf32> to vector<1x2x32xf32>
    %339 = vector.shape_cast %338 : vector<1x2x32xf32> to vector<2x32xf32>
    %340 = vector.extract_strided_slice %3 {offsets = [1, 0, 0], sizes = [1, 32, 32], strides = [1, 1, 1]} : vector<4x32x32xf32> to vector<1x32x32xf32>
    %341 = vector.shape_cast %340 : vector<1x32x32xf32> to vector<32x32xf32>
    %cst_93 = arith.constant dense<0.000000e+00> : vector<2x32xf32>
    %342 = tpu.matmul %266, %341, %cst_93 {dimension_numbers = #tpu.dot_dimension_numbers<[1], [0], [0], [1], [0, 0, 1, 1], [], []>} : vector<2x32xf32>, vector<32x32xf32>, vector<2x32xf32> -> vector<2x32xf32>
    %343 = arith.addf %339, %342 : vector<2x32xf32>
    %344 = arith.negf %343 : vector<2x32xf32>
    %345 = math.exp %344 : vector<2x32xf32>
    %cst_94 = arith.constant 1.000000e+00 : f32
    %346 = vector.broadcast %cst_94 : f32 to vector<2x32xf32>
    %347 = arith.addf %346, %345 : vector<2x32xf32>
    %348 = arith.divf %346, %347 : vector<2x32xf32>
    %349 = vector.extract_strided_slice %326 {offsets = [2, 0, 0], sizes = [1, 2, 32], strides = [1, 1, 1]} : vector<4x2x32xf32> to vector<1x2x32xf32>
    %350 = vector.shape_cast %349 : vector<1x2x32xf32> to vector<2x32xf32>
    %351 = vector.extract_strided_slice %3 {offsets = [2, 0, 0], sizes = [1, 32, 32], strides = [1, 1, 1]} : vector<4x32x32xf32> to vector<1x32x32xf32>
    %352 = vector.shape_cast %351 : vector<1x32x32xf32> to vector<32x32xf32>
    %cst_95 = arith.constant dense<0.000000e+00> : vector<2x32xf32>
    %353 = tpu.matmul %266, %352, %cst_95 {dimension_numbers = #tpu.dot_dimension_numbers<[1], [0], [0], [1], [0, 0, 1, 1], [], []>} : vector<2x32xf32>, vector<32x32xf32>, vector<2x32xf32> -> vector<2x32xf32>
    %354 = arith.addf %350, %353 : vector<2x32xf32>
    %355 = math.tanh %354 : vector<2x32xf32>
    %356 = vector.extract_strided_slice %326 {offsets = [3, 0, 0], sizes = [1, 2, 32], strides = [1, 1, 1]} : vector<4x2x32xf32> to vector<1x2x32xf32>
    %357 = vector.shape_cast %356 : vector<1x2x32xf32> to vector<2x32xf32>
    %358 = vector.extract_strided_slice %3 {offsets = [3, 0, 0], sizes = [1, 32, 32], strides = [1, 1, 1]} : vector<4x32x32xf32> to vector<1x32x32xf32>
    %359 = vector.shape_cast %358 : vector<1x32x32xf32> to vector<32x32xf32>
    %cst_96 = arith.constant dense<0.000000e+00> : vector<2x32xf32>
    %360 = tpu.matmul %266, %359, %cst_96 {dimension_numbers = #tpu.dot_dimension_numbers<[1], [0], [0], [1], [0, 0, 1, 1], [], []>} : vector<2x32xf32>, vector<32x32xf32>, vector<2x32xf32> -> vector<2x32xf32>
    %361 = arith.addf %357, %360 : vector<2x32xf32>
    %362 = arith.negf %361 : vector<2x32xf32>
    %363 = math.exp %362 : vector<2x32xf32>
    %cst_97 = arith.constant 1.000000e+00 : f32
    %364 = vector.broadcast %cst_97 : f32 to vector<2x32xf32>
    %365 = arith.addf %364, %363 : vector<2x32xf32>
    %366 = arith.divf %364, %365 : vector<2x32xf32>
    %367 = arith.mulf %348, %264 : vector<2x32xf32>
    %368 = arith.mulf %337, %355 : vector<2x32xf32>
    %369 = arith.addf %367, %368 : vector<2x32xf32>
    %370 = math.tanh %369 : vector<2x32xf32>
    %371 = arith.mulf %366, %370 : vector<2x32xf32>
    %372 = arith.index_cast %c3_i32 : i32 to index
    %c0_98 = arith.constant 0 : index
    %c0_99 = arith.constant 0 : index
    %373 = vector.load %arg5[%372, %c0_98, %c0_99] : memref<8x2x32xf32, #tpu.memory_space<vmem>>, vector<1x2x32xf32>
    %374 = vector.shape_cast %373 : vector<1x2x32xf32> to vector<2x32xf32>
    %375 = vector.shape_cast %371 : vector<2x32xf32> to vector<1x2x32xf32>
    tpu.vector_store %arg5[%372, %c0_98, %c0_99], %375 {strides = array<i32>} : memref<8x2x32xf32, #tpu.memory_space<vmem>>, vector<1x2x32xf32>,
    %c7_i32_100 = arith.constant 7 : i32
    %376 = arith.subi %c7_i32_100, %c3_i32 : i32
    %377 = arith.index_cast %376 : i32 to index
    %c0_101 = arith.constant 0 : index
    %c0_102 = arith.constant 0 : index
    %c0_103 = arith.constant 0 : index
    %378 = vector.load %arg2[%377, %c0_101, %c0_102, %c0_103] : memref<8x4x2x32xf32, #tpu.memory_space<vmem>>, vector<1x4x2x32xf32>
    %379 = vector.shape_cast %378 : vector<1x4x2x32xf32> to vector<4x2x32xf32>
    %380 = vector.extract_strided_slice %379 {offsets = [0, 0, 0], sizes = [1, 2, 32], strides = [1, 1, 1]} : vector<4x2x32xf32> to vector<1x2x32xf32>
    %381 = vector.shape_cast %380 : vector<1x2x32xf32> to vector<2x32xf32>
    %382 = vector.extract_strided_slice %4 {offsets = [0, 0, 0], sizes = [1, 32, 32], strides = [1, 1, 1]} : vector<4x32x32xf32> to vector<1x32x32xf32>
    %383 = vector.shape_cast %382 : vector<1x32x32xf32> to vector<32x32xf32>
    %cst_104 = arith.constant dense<0.000000e+00> : vector<2x32xf32>
    %384 = tpu.matmul %319, %383, %cst_104 {dimension_numbers = #tpu.dot_dimension_numbers<[1], [0], [0], [1], [0, 0, 1, 1], [], []>} : vector<2x32xf32>, vector<32x32xf32>, vector<2x32xf32> -> vector<2x32xf32>
    %385 = arith.addf %381, %384 : vector<2x32xf32>
    %386 = arith.negf %385 : vector<2x32xf32>
    %387 = math.exp %386 : vector<2x32xf32>
    %cst_105 = arith.constant 1.000000e+00 : f32
    %388 = vector.broadcast %cst_105 : f32 to vector<2x32xf32>
    %389 = arith.addf %388, %387 : vector<2x32xf32>
    %390 = arith.divf %388, %389 : vector<2x32xf32>
    %391 = vector.extract_strided_slice %379 {offsets = [1, 0, 0], sizes = [1, 2, 32], strides = [1, 1, 1]} : vector<4x2x32xf32> to vector<1x2x32xf32>
    %392 = vector.shape_cast %391 : vector<1x2x32xf32> to vector<2x32xf32>
    %393 = vector.extract_strided_slice %4 {offsets = [1, 0, 0], sizes = [1, 32, 32], strides = [1, 1, 1]} : vector<4x32x32xf32> to vector<1x32x32xf32>
    %394 = vector.shape_cast %393 : vector<1x32x32xf32> to vector<32x32xf32>
    %cst_106 = arith.constant dense<0.000000e+00> : vector<2x32xf32>
    %395 = tpu.matmul %319, %394, %cst_106 {dimension_numbers = #tpu.dot_dimension_numbers<[1], [0], [0], [1], [0, 0, 1, 1], [], []>} : vector<2x32xf32>, vector<32x32xf32>, vector<2x32xf32> -> vector<2x32xf32>
    %396 = arith.addf %392, %395 : vector<2x32xf32>
    %397 = arith.negf %396 : vector<2x32xf32>
    %398 = math.exp %397 : vector<2x32xf32>
    %cst_107 = arith.constant 1.000000e+00 : f32
    %399 = vector.broadcast %cst_107 : f32 to vector<2x32xf32>
    %400 = arith.addf %399, %398 : vector<2x32xf32>
    %401 = arith.divf %399, %400 : vector<2x32xf32>
    %402 = vector.extract_strided_slice %379 {offsets = [2, 0, 0], sizes = [1, 2, 32], strides = [1, 1, 1]} : vector<4x2x32xf32> to vector<1x2x32xf32>
    %403 = vector.shape_cast %402 : vector<1x2x32xf32> to vector<2x32xf32>
    %404 = vector.extract_strided_slice %4 {offsets = [2, 0, 0], sizes = [1, 32, 32], strides = [1, 1, 1]} : vector<4x32x32xf32> to vector<1x32x32xf32>
    %405 = vector.shape_cast %404 : vector<1x32x32xf32> to vector<32x32xf32>
    %cst_108 = arith.constant dense<0.000000e+00> : vector<2x32xf32>
    %406 = tpu.matmul %319, %405, %cst_108 {dimension_numbers = #tpu.dot_dimension_numbers<[1], [0], [0], [1], [0, 0, 1, 1], [], []>} : vector<2x32xf32>, vector<32x32xf32>, vector<2x32xf32> -> vector<2x32xf32>
    %407 = arith.addf %403, %406 : vector<2x32xf32>
    %408 = math.tanh %407 : vector<2x32xf32>
    %409 = vector.extract_strided_slice %379 {offsets = [3, 0, 0], sizes = [1, 2, 32], strides = [1, 1, 1]} : vector<4x2x32xf32> to vector<1x2x32xf32>
    %410 = vector.shape_cast %409 : vector<1x2x32xf32> to vector<2x32xf32>
    %411 = vector.extract_strided_slice %4 {offsets = [3, 0, 0], sizes = [1, 32, 32], strides = [1, 1, 1]} : vector<4x32x32xf32> to vector<1x32x32xf32>
    %412 = vector.shape_cast %411 : vector<1x32x32xf32> to vector<32x32xf32>
    %cst_109 = arith.constant dense<0.000000e+00> : vector<2x32xf32>
    %413 = tpu.matmul %319, %412, %cst_109 {dimension_numbers = #tpu.dot_dimension_numbers<[1], [0], [0], [1], [0, 0, 1, 1], [], []>} : vector<2x32xf32>, vector<32x32xf32>, vector<2x32xf32> -> vector<2x32xf32>
    %414 = arith.addf %410, %413 : vector<2x32xf32>
    %415 = arith.negf %414 : vector<2x32xf32>
    %416 = math.exp %415 : vector<2x32xf32>
    %cst_110 = arith.constant 1.000000e+00 : f32
    %417 = vector.broadcast %cst_110 : f32 to vector<2x32xf32>
    %418 = arith.addf %417, %416 : vector<2x32xf32>
    %419 = arith.divf %417, %418 : vector<2x32xf32>
    %420 = arith.mulf %401, %317 : vector<2x32xf32>
    %421 = arith.mulf %390, %408 : vector<2x32xf32>
    %422 = arith.addf %420, %421 : vector<2x32xf32>
    %423 = math.tanh %422 : vector<2x32xf32>
    %424 = arith.mulf %419, %423 : vector<2x32xf32>
    %425 = arith.index_cast %376 : i32 to index
    %c0_111 = arith.constant 0 : index
    %c0_112 = arith.constant 0 : index
    %426 = vector.load %arg6[%425, %c0_111, %c0_112] : memref<8x2x32xf32, #tpu.memory_space<vmem>>, vector<1x2x32xf32>
    %427 = vector.shape_cast %426 : vector<1x2x32xf32> to vector<2x32xf32>
    %428 = vector.shape_cast %424 : vector<2x32xf32> to vector<1x2x32xf32>
    tpu.vector_store %arg6[%425, %c0_111, %c0_112], %428 {strides = array<i32>} : memref<8x2x32xf32, #tpu.memory_space<vmem>>, vector<1x2x32xf32>,
    %c4_i32 = arith.constant 4 : i32
    %429 = arith.index_cast %c4_i32 : i32 to index
    %c0_113 = arith.constant 0 : index
    %c0_114 = arith.constant 0 : index
    %c0_115 = arith.constant 0 : index
    %430 = vector.load %arg1[%429, %c0_113, %c0_114, %c0_115] : memref<8x4x2x32xf32, #tpu.memory_space<vmem>>, vector<1x4x2x32xf32>
    %431 = vector.shape_cast %430 : vector<1x4x2x32xf32> to vector<4x2x32xf32>
    %432 = vector.extract_strided_slice %431 {offsets = [0, 0, 0], sizes = [1, 2, 32], strides = [1, 1, 1]} : vector<4x2x32xf32> to vector<1x2x32xf32>
    %433 = vector.shape_cast %432 : vector<1x2x32xf32> to vector<2x32xf32>
    %434 = vector.extract_strided_slice %3 {offsets = [0, 0, 0], sizes = [1, 32, 32], strides = [1, 1, 1]} : vector<4x32x32xf32> to vector<1x32x32xf32>
    %435 = vector.shape_cast %434 : vector<1x32x32xf32> to vector<32x32xf32>
    %cst_116 = arith.constant dense<0.000000e+00> : vector<2x32xf32>
    %436 = tpu.matmul %371, %435, %cst_116 {dimension_numbers = #tpu.dot_dimension_numbers<[1], [0], [0], [1], [0, 0, 1, 1], [], []>} : vector<2x32xf32>, vector<32x32xf32>, vector<2x32xf32> -> vector<2x32xf32>
    %437 = arith.addf %433, %436 : vector<2x32xf32>
    %438 = arith.negf %437 : vector<2x32xf32>
    %439 = math.exp %438 : vector<2x32xf32>
    %cst_117 = arith.constant 1.000000e+00 : f32
    %440 = vector.broadcast %cst_117 : f32 to vector<2x32xf32>
    %441 = arith.addf %440, %439 : vector<2x32xf32>
    %442 = arith.divf %440, %441 : vector<2x32xf32>
    %443 = vector.extract_strided_slice %431 {offsets = [1, 0, 0], sizes = [1, 2, 32], strides = [1, 1, 1]} : vector<4x2x32xf32> to vector<1x2x32xf32>
    %444 = vector.shape_cast %443 : vector<1x2x32xf32> to vector<2x32xf32>
    %445 = vector.extract_strided_slice %3 {offsets = [1, 0, 0], sizes = [1, 32, 32], strides = [1, 1, 1]} : vector<4x32x32xf32> to vector<1x32x32xf32>
    %446 = vector.shape_cast %445 : vector<1x32x32xf32> to vector<32x32xf32>
    %cst_118 = arith.constant dense<0.000000e+00> : vector<2x32xf32>
    %447 = tpu.matmul %371, %446, %cst_118 {dimension_numbers = #tpu.dot_dimension_numbers<[1], [0], [0], [1], [0, 0, 1, 1], [], []>} : vector<2x32xf32>, vector<32x32xf32>, vector<2x32xf32> -> vector<2x32xf32>
    %448 = arith.addf %444, %447 : vector<2x32xf32>
    %449 = arith.negf %448 : vector<2x32xf32>
    %450 = math.exp %449 : vector<2x32xf32>
    %cst_119 = arith.constant 1.000000e+00 : f32
    %451 = vector.broadcast %cst_119 : f32 to vector<2x32xf32>
    %452 = arith.addf %451, %450 : vector<2x32xf32>
    %453 = arith.divf %451, %452 : vector<2x32xf32>
    %454 = vector.extract_strided_slice %431 {offsets = [2, 0, 0], sizes = [1, 2, 32], strides = [1, 1, 1]} : vector<4x2x32xf32> to vector<1x2x32xf32>
    %455 = vector.shape_cast %454 : vector<1x2x32xf32> to vector<2x32xf32>
    %456 = vector.extract_strided_slice %3 {offsets = [2, 0, 0], sizes = [1, 32, 32], strides = [1, 1, 1]} : vector<4x32x32xf32> to vector<1x32x32xf32>
    %457 = vector.shape_cast %456 : vector<1x32x32xf32> to vector<32x32xf32>
    %cst_120 = arith.constant dense<0.000000e+00> : vector<2x32xf32>
    %458 = tpu.matmul %371, %457, %cst_120 {dimension_numbers = #tpu.dot_dimension_numbers<[1], [0], [0], [1], [0, 0, 1, 1], [], []>} : vector<2x32xf32>, vector<32x32xf32>, vector<2x32xf32> -> vector<2x32xf32>
    %459 = arith.addf %455, %458 : vector<2x32xf32>
    %460 = math.tanh %459 : vector<2x32xf32>
    %461 = vector.extract_strided_slice %431 {offsets = [3, 0, 0], sizes = [1, 2, 32], strides = [1, 1, 1]} : vector<4x2x32xf32> to vector<1x2x32xf32>
    %462 = vector.shape_cast %461 : vector<1x2x32xf32> to vector<2x32xf32>
    %463 = vector.extract_strided_slice %3 {offsets = [3, 0, 0], sizes = [1, 32, 32], strides = [1, 1, 1]} : vector<4x32x32xf32> to vector<1x32x32xf32>
    %464 = vector.shape_cast %463 : vector<1x32x32xf32> to vector<32x32xf32>
    %cst_121 = arith.constant dense<0.000000e+00> : vector<2x32xf32>
    %465 = tpu.matmul %371, %464, %cst_121 {dimension_numbers = #tpu.dot_dimension_numbers<[1], [0], [0], [1], [0, 0, 1, 1], [], []>} : vector<2x32xf32>, vector<32x32xf32>, vector<2x32xf32> -> vector<2x32xf32>
    %466 = arith.addf %462, %465 : vector<2x32xf32>
    %467 = arith.negf %466 : vector<2x32xf32>
    %468 = math.exp %467 : vector<2x32xf32>
    %cst_122 = arith.constant 1.000000e+00 : f32
    %469 = vector.broadcast %cst_122 : f32 to vector<2x32xf32>
    %470 = arith.addf %469, %468 : vector<2x32xf32>
    %471 = arith.divf %469, %470 : vector<2x32xf32>
    %472 = arith.mulf %453, %369 : vector<2x32xf32>
    %473 = arith.mulf %442, %460 : vector<2x32xf32>
    %474 = arith.addf %472, %473 : vector<2x32xf32>
    %475 = math.tanh %474 : vector<2x32xf32>
    %476 = arith.mulf %471, %475 : vector<2x32xf32>
    %477 = arith.index_cast %c4_i32 : i32 to index
    %c0_123 = arith.constant 0 : index
    %c0_124 = arith.constant 0 : index
    %478 = vector.load %arg5[%477, %c0_123, %c0_124] : memref<8x2x32xf32, #tpu.memory_space<vmem>>, vector<1x2x32xf32>
    %479 = vector.shape_cast %478 : vector<1x2x32xf32> to vector<2x32xf32>
    %480 = vector.shape_cast %476 : vector<2x32xf32> to vector<1x2x32xf32>
    tpu.vector_store %arg5[%477, %c0_123, %c0_124], %480 {strides = array<i32>} : memref<8x2x32xf32, #tpu.memory_space<vmem>>, vector<1x2x32xf32>,
    %c7_i32_125 = arith.constant 7 : i32
    %481 = arith.subi %c7_i32_125, %c4_i32 : i32
    %482 = arith.index_cast %481 : i32 to index
    %c0_126 = arith.constant 0 : index
    %c0_127 = arith.constant 0 : index
    %c0_128 = arith.constant 0 : index
    %483 = vector.load %arg2[%482, %c0_126, %c0_127, %c0_128] : memref<8x4x2x32xf32, #tpu.memory_space<vmem>>, vector<1x4x2x32xf32>
    %484 = vector.shape_cast %483 : vector<1x4x2x32xf32> to vector<4x2x32xf32>
    %485 = vector.extract_strided_slice %484 {offsets = [0, 0, 0], sizes = [1, 2, 32], strides = [1, 1, 1]} : vector<4x2x32xf32> to vector<1x2x32xf32>
    %486 = vector.shape_cast %485 : vector<1x2x32xf32> to vector<2x32xf32>
    %487 = vector.extract_strided_slice %4 {offsets = [0, 0, 0], sizes = [1, 32, 32], strides = [1, 1, 1]} : vector<4x32x32xf32> to vector<1x32x32xf32>
    %488 = vector.shape_cast %487 : vector<1x32x32xf32> to vector<32x32xf32>
    %cst_129 = arith.constant dense<0.000000e+00> : vector<2x32xf32>
    %489 = tpu.matmul %424, %488, %cst_129 {dimension_numbers = #tpu.dot_dimension_numbers<[1], [0], [0], [1], [0, 0, 1, 1], [], []>} : vector<2x32xf32>, vector<32x32xf32>, vector<2x32xf32> -> vector<2x32xf32>
    %490 = arith.addf %486, %489 : vector<2x32xf32>
    %491 = arith.negf %490 : vector<2x32xf32>
    %492 = math.exp %491 : vector<2x32xf32>
    %cst_130 = arith.constant 1.000000e+00 : f32
    %493 = vector.broadcast %cst_130 : f32 to vector<2x32xf32>
    %494 = arith.addf %493, %492 : vector<2x32xf32>
    %495 = arith.divf %493, %494 : vector<2x32xf32>
    %496 = vector.extract_strided_slice %484 {offsets = [1, 0, 0], sizes = [1, 2, 32], strides = [1, 1, 1]} : vector<4x2x32xf32> to vector<1x2x32xf32>
    %497 = vector.shape_cast %496 : vector<1x2x32xf32> to vector<2x32xf32>
    %498 = vector.extract_strided_slice %4 {offsets = [1, 0, 0], sizes = [1, 32, 32], strides = [1, 1, 1]} : vector<4x32x32xf32> to vector<1x32x32xf32>
    %499 = vector.shape_cast %498 : vector<1x32x32xf32> to vector<32x32xf32>
    %cst_131 = arith.constant dense<0.000000e+00> : vector<2x32xf32>
    %500 = tpu.matmul %424, %499, %cst_131 {dimension_numbers = #tpu.dot_dimension_numbers<[1], [0], [0], [1], [0, 0, 1, 1], [], []>} : vector<2x32xf32>, vector<32x32xf32>, vector<2x32xf32> -> vector<2x32xf32>
    %501 = arith.addf %497, %500 : vector<2x32xf32>
    %502 = arith.negf %501 : vector<2x32xf32>
    %503 = math.exp %502 : vector<2x32xf32>
    %cst_132 = arith.constant 1.000000e+00 : f32
    %504 = vector.broadcast %cst_132 : f32 to vector<2x32xf32>
    %505 = arith.addf %504, %503 : vector<2x32xf32>
    %506 = arith.divf %504, %505 : vector<2x32xf32>
    %507 = vector.extract_strided_slice %484 {offsets = [2, 0, 0], sizes = [1, 2, 32], strides = [1, 1, 1]} : vector<4x2x32xf32> to vector<1x2x32xf32>
    %508 = vector.shape_cast %507 : vector<1x2x32xf32> to vector<2x32xf32>
    %509 = vector.extract_strided_slice %4 {offsets = [2, 0, 0], sizes = [1, 32, 32], strides = [1, 1, 1]} : vector<4x32x32xf32> to vector<1x32x32xf32>
    %510 = vector.shape_cast %509 : vector<1x32x32xf32> to vector<32x32xf32>
    %cst_133 = arith.constant dense<0.000000e+00> : vector<2x32xf32>
    %511 = tpu.matmul %424, %510, %cst_133 {dimension_numbers = #tpu.dot_dimension_numbers<[1], [0], [0], [1], [0, 0, 1, 1], [], []>} : vector<2x32xf32>, vector<32x32xf32>, vector<2x32xf32> -> vector<2x32xf32>
    %512 = arith.addf %508, %511 : vector<2x32xf32>
    %513 = math.tanh %512 : vector<2x32xf32>
    %514 = vector.extract_strided_slice %484 {offsets = [3, 0, 0], sizes = [1, 2, 32], strides = [1, 1, 1]} : vector<4x2x32xf32> to vector<1x2x32xf32>
    %515 = vector.shape_cast %514 : vector<1x2x32xf32> to vector<2x32xf32>
    %516 = vector.extract_strided_slice %4 {offsets = [3, 0, 0], sizes = [1, 32, 32], strides = [1, 1, 1]} : vector<4x32x32xf32> to vector<1x32x32xf32>
    %517 = vector.shape_cast %516 : vector<1x32x32xf32> to vector<32x32xf32>
    %cst_134 = arith.constant dense<0.000000e+00> : vector<2x32xf32>
    %518 = tpu.matmul %424, %517, %cst_134 {dimension_numbers = #tpu.dot_dimension_numbers<[1], [0], [0], [1], [0, 0, 1, 1], [], []>} : vector<2x32xf32>, vector<32x32xf32>, vector<2x32xf32> -> vector<2x32xf32>
    %519 = arith.addf %515, %518 : vector<2x32xf32>
    %520 = arith.negf %519 : vector<2x32xf32>
    %521 = math.exp %520 : vector<2x32xf32>
    %cst_135 = arith.constant 1.000000e+00 : f32
    %522 = vector.broadcast %cst_135 : f32 to vector<2x32xf32>
    %523 = arith.addf %522, %521 : vector<2x32xf32>
    %524 = arith.divf %522, %523 : vector<2x32xf32>
    %525 = arith.mulf %506, %422 : vector<2x32xf32>
    %526 = arith.mulf %495, %513 : vector<2x32xf32>
    %527 = arith.addf %525, %526 : vector<2x32xf32>
    %528 = math.tanh %527 : vector<2x32xf32>
    %529 = arith.mulf %524, %528 : vector<2x32xf32>
    %530 = arith.index_cast %481 : i32 to index
    %c0_136 = arith.constant 0 : index
    %c0_137 = arith.constant 0 : index
    %531 = vector.load %arg6[%530, %c0_136, %c0_137] : memref<8x2x32xf32, #tpu.memory_space<vmem>>, vector<1x2x32xf32>
    %532 = vector.shape_cast %531 : vector<1x2x32xf32> to vector<2x32xf32>
    %533 = vector.shape_cast %529 : vector<2x32xf32> to vector<1x2x32xf32>
    tpu.vector_store %arg6[%530, %c0_136, %c0_137], %533 {strides = array<i32>} : memref<8x2x32xf32, #tpu.memory_space<vmem>>, vector<1x2x32xf32>,
    %c5_i32 = arith.constant 5 : i32
    %534 = arith.index_cast %c5_i32 : i32 to index
    %c0_138 = arith.constant 0 : index
    %c0_139 = arith.constant 0 : index
    %c0_140 = arith.constant 0 : index
    %535 = vector.load %arg1[%534, %c0_138, %c0_139, %c0_140] : memref<8x4x2x32xf32, #tpu.memory_space<vmem>>, vector<1x4x2x32xf32>
    %536 = vector.shape_cast %535 : vector<1x4x2x32xf32> to vector<4x2x32xf32>
    %537 = vector.extract_strided_slice %536 {offsets = [0, 0, 0], sizes = [1, 2, 32], strides = [1, 1, 1]} : vector<4x2x32xf32> to vector<1x2x32xf32>
    %538 = vector.shape_cast %537 : vector<1x2x32xf32> to vector<2x32xf32>
    %539 = vector.extract_strided_slice %3 {offsets = [0, 0, 0], sizes = [1, 32, 32], strides = [1, 1, 1]} : vector<4x32x32xf32> to vector<1x32x32xf32>
    %540 = vector.shape_cast %539 : vector<1x32x32xf32> to vector<32x32xf32>
    %cst_141 = arith.constant dense<0.000000e+00> : vector<2x32xf32>
    %541 = tpu.matmul %476, %540, %cst_141 {dimension_numbers = #tpu.dot_dimension_numbers<[1], [0], [0], [1], [0, 0, 1, 1], [], []>} : vector<2x32xf32>, vector<32x32xf32>, vector<2x32xf32> -> vector<2x32xf32>
    %542 = arith.addf %538, %541 : vector<2x32xf32>
    %543 = arith.negf %542 : vector<2x32xf32>
    %544 = math.exp %543 : vector<2x32xf32>
    %cst_142 = arith.constant 1.000000e+00 : f32
    %545 = vector.broadcast %cst_142 : f32 to vector<2x32xf32>
    %546 = arith.addf %545, %544 : vector<2x32xf32>
    %547 = arith.divf %545, %546 : vector<2x32xf32>
    %548 = vector.extract_strided_slice %536 {offsets = [1, 0, 0], sizes = [1, 2, 32], strides = [1, 1, 1]} : vector<4x2x32xf32> to vector<1x2x32xf32>
    %549 = vector.shape_cast %548 : vector<1x2x32xf32> to vector<2x32xf32>
    %550 = vector.extract_strided_slice %3 {offsets = [1, 0, 0], sizes = [1, 32, 32], strides = [1, 1, 1]} : vector<4x32x32xf32> to vector<1x32x32xf32>
    %551 = vector.shape_cast %550 : vector<1x32x32xf32> to vector<32x32xf32>
    %cst_143 = arith.constant dense<0.000000e+00> : vector<2x32xf32>
    %552 = tpu.matmul %476, %551, %cst_143 {dimension_numbers = #tpu.dot_dimension_numbers<[1], [0], [0], [1], [0, 0, 1, 1], [], []>} : vector<2x32xf32>, vector<32x32xf32>, vector<2x32xf32> -> vector<2x32xf32>
    %553 = arith.addf %549, %552 : vector<2x32xf32>
    %554 = arith.negf %553 : vector<2x32xf32>
    %555 = math.exp %554 : vector<2x32xf32>
    %cst_144 = arith.constant 1.000000e+00 : f32
    %556 = vector.broadcast %cst_144 : f32 to vector<2x32xf32>
    %557 = arith.addf %556, %555 : vector<2x32xf32>
    %558 = arith.divf %556, %557 : vector<2x32xf32>
    %559 = vector.extract_strided_slice %536 {offsets = [2, 0, 0], sizes = [1, 2, 32], strides = [1, 1, 1]} : vector<4x2x32xf32> to vector<1x2x32xf32>
    %560 = vector.shape_cast %559 : vector<1x2x32xf32> to vector<2x32xf32>
    %561 = vector.extract_strided_slice %3 {offsets = [2, 0, 0], sizes = [1, 32, 32], strides = [1, 1, 1]} : vector<4x32x32xf32> to vector<1x32x32xf32>
    %562 = vector.shape_cast %561 : vector<1x32x32xf32> to vector<32x32xf32>
    %cst_145 = arith.constant dense<0.000000e+00> : vector<2x32xf32>
    %563 = tpu.matmul %476, %562, %cst_145 {dimension_numbers = #tpu.dot_dimension_numbers<[1], [0], [0], [1], [0, 0, 1, 1], [], []>} : vector<2x32xf32>, vector<32x32xf32>, vector<2x32xf32> -> vector<2x32xf32>
    %564 = arith.addf %560, %563 : vector<2x32xf32>
    %565 = math.tanh %564 : vector<2x32xf32>
    %566 = vector.extract_strided_slice %536 {offsets = [3, 0, 0], sizes = [1, 2, 32], strides = [1, 1, 1]} : vector<4x2x32xf32> to vector<1x2x32xf32>
    %567 = vector.shape_cast %566 : vector<1x2x32xf32> to vector<2x32xf32>
    %568 = vector.extract_strided_slice %3 {offsets = [3, 0, 0], sizes = [1, 32, 32], strides = [1, 1, 1]} : vector<4x32x32xf32> to vector<1x32x32xf32>
    %569 = vector.shape_cast %568 : vector<1x32x32xf32> to vector<32x32xf32>
    %cst_146 = arith.constant dense<0.000000e+00> : vector<2x32xf32>
    %570 = tpu.matmul %476, %569, %cst_146 {dimension_numbers = #tpu.dot_dimension_numbers<[1], [0], [0], [1], [0, 0, 1, 1], [], []>} : vector<2x32xf32>, vector<32x32xf32>, vector<2x32xf32> -> vector<2x32xf32>
    %571 = arith.addf %567, %570 : vector<2x32xf32>
    %572 = arith.negf %571 : vector<2x32xf32>
    %573 = math.exp %572 : vector<2x32xf32>
    %cst_147 = arith.constant 1.000000e+00 : f32
    %574 = vector.broadcast %cst_147 : f32 to vector<2x32xf32>
    %575 = arith.addf %574, %573 : vector<2x32xf32>
    %576 = arith.divf %574, %575 : vector<2x32xf32>
    %577 = arith.mulf %558, %474 : vector<2x32xf32>
    %578 = arith.mulf %547, %565 : vector<2x32xf32>
    %579 = arith.addf %577, %578 : vector<2x32xf32>
    %580 = math.tanh %579 : vector<2x32xf32>
    %581 = arith.mulf %576, %580 : vector<2x32xf32>
    %582 = arith.index_cast %c5_i32 : i32 to index
    %c0_148 = arith.constant 0 : index
    %c0_149 = arith.constant 0 : index
    %583 = vector.load %arg5[%582, %c0_148, %c0_149] : memref<8x2x32xf32, #tpu.memory_space<vmem>>, vector<1x2x32xf32>
    %584 = vector.shape_cast %583 : vector<1x2x32xf32> to vector<2x32xf32>
    %585 = vector.shape_cast %581 : vector<2x32xf32> to vector<1x2x32xf32>
    tpu.vector_store %arg5[%582, %c0_148, %c0_149], %585 {strides = array<i32>} : memref<8x2x32xf32, #tpu.memory_space<vmem>>, vector<1x2x32xf32>,
    %c7_i32_150 = arith.constant 7 : i32
    %586 = arith.subi %c7_i32_150, %c5_i32 : i32
    %587 = arith.index_cast %586 : i32 to index
    %c0_151 = arith.constant 0 : index
    %c0_152 = arith.constant 0 : index
    %c0_153 = arith.constant 0 : index
    %588 = vector.load %arg2[%587, %c0_151, %c0_152, %c0_153] : memref<8x4x2x32xf32, #tpu.memory_space<vmem>>, vector<1x4x2x32xf32>
    %589 = vector.shape_cast %588 : vector<1x4x2x32xf32> to vector<4x2x32xf32>
    %590 = vector.extract_strided_slice %589 {offsets = [0, 0, 0], sizes = [1, 2, 32], strides = [1, 1, 1]} : vector<4x2x32xf32> to vector<1x2x32xf32>
    %591 = vector.shape_cast %590 : vector<1x2x32xf32> to vector<2x32xf32>
    %592 = vector.extract_strided_slice %4 {offsets = [0, 0, 0], sizes = [1, 32, 32], strides = [1, 1, 1]} : vector<4x32x32xf32> to vector<1x32x32xf32>
    %593 = vector.shape_cast %592 : vector<1x32x32xf32> to vector<32x32xf32>
    %cst_154 = arith.constant dense<0.000000e+00> : vector<2x32xf32>
    %594 = tpu.matmul %529, %593, %cst_154 {dimension_numbers = #tpu.dot_dimension_numbers<[1], [0], [0], [1], [0, 0, 1, 1], [], []>} : vector<2x32xf32>, vector<32x32xf32>, vector<2x32xf32> -> vector<2x32xf32>
    %595 = arith.addf %591, %594 : vector<2x32xf32>
    %596 = arith.negf %595 : vector<2x32xf32>
    %597 = math.exp %596 : vector<2x32xf32>
    %cst_155 = arith.constant 1.000000e+00 : f32
    %598 = vector.broadcast %cst_155 : f32 to vector<2x32xf32>
    %599 = arith.addf %598, %597 : vector<2x32xf32>
    %600 = arith.divf %598, %599 : vector<2x32xf32>
    %601 = vector.extract_strided_slice %589 {offsets = [1, 0, 0], sizes = [1, 2, 32], strides = [1, 1, 1]} : vector<4x2x32xf32> to vector<1x2x32xf32>
    %602 = vector.shape_cast %601 : vector<1x2x32xf32> to vector<2x32xf32>
    %603 = vector.extract_strided_slice %4 {offsets = [1, 0, 0], sizes = [1, 32, 32], strides = [1, 1, 1]} : vector<4x32x32xf32> to vector<1x32x32xf32>
    %604 = vector.shape_cast %603 : vector<1x32x32xf32> to vector<32x32xf32>
    %cst_156 = arith.constant dense<0.000000e+00> : vector<2x32xf32>
    %605 = tpu.matmul %529, %604, %cst_156 {dimension_numbers = #tpu.dot_dimension_numbers<[1], [0], [0], [1], [0, 0, 1, 1], [], []>} : vector<2x32xf32>, vector<32x32xf32>, vector<2x32xf32> -> vector<2x32xf32>
    %606 = arith.addf %602, %605 : vector<2x32xf32>
    %607 = arith.negf %606 : vector<2x32xf32>
    %608 = math.exp %607 : vector<2x32xf32>
    %cst_157 = arith.constant 1.000000e+00 : f32
    %609 = vector.broadcast %cst_157 : f32 to vector<2x32xf32>
    %610 = arith.addf %609, %608 : vector<2x32xf32>
    %611 = arith.divf %609, %610 : vector<2x32xf32>
    %612 = vector.extract_strided_slice %589 {offsets = [2, 0, 0], sizes = [1, 2, 32], strides = [1, 1, 1]} : vector<4x2x32xf32> to vector<1x2x32xf32>
    %613 = vector.shape_cast %612 : vector<1x2x32xf32> to vector<2x32xf32>
    %614 = vector.extract_strided_slice %4 {offsets = [2, 0, 0], sizes = [1, 32, 32], strides = [1, 1, 1]} : vector<4x32x32xf32> to vector<1x32x32xf32>
    %615 = vector.shape_cast %614 : vector<1x32x32xf32> to vector<32x32xf32>
    %cst_158 = arith.constant dense<0.000000e+00> : vector<2x32xf32>
    %616 = tpu.matmul %529, %615, %cst_158 {dimension_numbers = #tpu.dot_dimension_numbers<[1], [0], [0], [1], [0, 0, 1, 1], [], []>} : vector<2x32xf32>, vector<32x32xf32>, vector<2x32xf32> -> vector<2x32xf32>
    %617 = arith.addf %613, %616 : vector<2x32xf32>
    %618 = math.tanh %617 : vector<2x32xf32>
    %619 = vector.extract_strided_slice %589 {offsets = [3, 0, 0], sizes = [1, 2, 32], strides = [1, 1, 1]} : vector<4x2x32xf32> to vector<1x2x32xf32>
    %620 = vector.shape_cast %619 : vector<1x2x32xf32> to vector<2x32xf32>
    %621 = vector.extract_strided_slice %4 {offsets = [3, 0, 0], sizes = [1, 32, 32], strides = [1, 1, 1]} : vector<4x32x32xf32> to vector<1x32x32xf32>
    %622 = vector.shape_cast %621 : vector<1x32x32xf32> to vector<32x32xf32>
    %cst_159 = arith.constant dense<0.000000e+00> : vector<2x32xf32>
    %623 = tpu.matmul %529, %622, %cst_159 {dimension_numbers = #tpu.dot_dimension_numbers<[1], [0], [0], [1], [0, 0, 1, 1], [], []>} : vector<2x32xf32>, vector<32x32xf32>, vector<2x32xf32> -> vector<2x32xf32>
    %624 = arith.addf %620, %623 : vector<2x32xf32>
    %625 = arith.negf %624 : vector<2x32xf32>
    %626 = math.exp %625 : vector<2x32xf32>
    %cst_160 = arith.constant 1.000000e+00 : f32
    %627 = vector.broadcast %cst_160 : f32 to vector<2x32xf32>
    %628 = arith.addf %627, %626 : vector<2x32xf32>
    %629 = arith.divf %627, %628 : vector<2x32xf32>
    %630 = arith.mulf %611, %527 : vector<2x32xf32>
    %631 = arith.mulf %600, %618 : vector<2x32xf32>
    %632 = arith.addf %630, %631 : vector<2x32xf32>
    %633 = math.tanh %632 : vector<2x32xf32>
    %634 = arith.mulf %629, %633 : vector<2x32xf32>
    %635 = arith.index_cast %586 : i32 to index
    %c0_161 = arith.constant 0 : index
    %c0_162 = arith.constant 0 : index
    %636 = vector.load %arg6[%635, %c0_161, %c0_162] : memref<8x2x32xf32, #tpu.memory_space<vmem>>, vector<1x2x32xf32>
    %637 = vector.shape_cast %636 : vector<1x2x32xf32> to vector<2x32xf32>
    %638 = vector.shape_cast %634 : vector<2x32xf32> to vector<1x2x32xf32>
    tpu.vector_store %arg6[%635, %c0_161, %c0_162], %638 {strides = array<i32>} : memref<8x2x32xf32, #tpu.memory_space<vmem>>, vector<1x2x32xf32>,
    %c6_i32 = arith.constant 6 : i32
    %639 = arith.index_cast %c6_i32 : i32 to index
    %c0_163 = arith.constant 0 : index
    %c0_164 = arith.constant 0 : index
    %c0_165 = arith.constant 0 : index
    %640 = vector.load %arg1[%639, %c0_163, %c0_164, %c0_165] : memref<8x4x2x32xf32, #tpu.memory_space<vmem>>, vector<1x4x2x32xf32>
    %641 = vector.shape_cast %640 : vector<1x4x2x32xf32> to vector<4x2x32xf32>
    %642 = vector.extract_strided_slice %641 {offsets = [0, 0, 0], sizes = [1, 2, 32], strides = [1, 1, 1]} : vector<4x2x32xf32> to vector<1x2x32xf32>
    %643 = vector.shape_cast %642 : vector<1x2x32xf32> to vector<2x32xf32>
    %644 = vector.extract_strided_slice %3 {offsets = [0, 0, 0], sizes = [1, 32, 32], strides = [1, 1, 1]} : vector<4x32x32xf32> to vector<1x32x32xf32>
    %645 = vector.shape_cast %644 : vector<1x32x32xf32> to vector<32x32xf32>
    %cst_166 = arith.constant dense<0.000000e+00> : vector<2x32xf32>
    %646 = tpu.matmul %581, %645, %cst_166 {dimension_numbers = #tpu.dot_dimension_numbers<[1], [0], [0], [1], [0, 0, 1, 1], [], []>} : vector<2x32xf32>, vector<32x32xf32>, vector<2x32xf32> -> vector<2x32xf32>
    %647 = arith.addf %643, %646 : vector<2x32xf32>
    %648 = arith.negf %647 : vector<2x32xf32>
    %649 = math.exp %648 : vector<2x32xf32>
    %cst_167 = arith.constant 1.000000e+00 : f32
    %650 = vector.broadcast %cst_167 : f32 to vector<2x32xf32>
    %651 = arith.addf %650, %649 : vector<2x32xf32>
    %652 = arith.divf %650, %651 : vector<2x32xf32>
    %653 = vector.extract_strided_slice %641 {offsets = [1, 0, 0], sizes = [1, 2, 32], strides = [1, 1, 1]} : vector<4x2x32xf32> to vector<1x2x32xf32>
    %654 = vector.shape_cast %653 : vector<1x2x32xf32> to vector<2x32xf32>
    %655 = vector.extract_strided_slice %3 {offsets = [1, 0, 0], sizes = [1, 32, 32], strides = [1, 1, 1]} : vector<4x32x32xf32> to vector<1x32x32xf32>
    %656 = vector.shape_cast %655 : vector<1x32x32xf32> to vector<32x32xf32>
    %cst_168 = arith.constant dense<0.000000e+00> : vector<2x32xf32>
    %657 = tpu.matmul %581, %656, %cst_168 {dimension_numbers = #tpu.dot_dimension_numbers<[1], [0], [0], [1], [0, 0, 1, 1], [], []>} : vector<2x32xf32>, vector<32x32xf32>, vector<2x32xf32> -> vector<2x32xf32>
    %658 = arith.addf %654, %657 : vector<2x32xf32>
    %659 = arith.negf %658 : vector<2x32xf32>
    %660 = math.exp %659 : vector<2x32xf32>
    %cst_169 = arith.constant 1.000000e+00 : f32
    %661 = vector.broadcast %cst_169 : f32 to vector<2x32xf32>
    %662 = arith.addf %661, %660 : vector<2x32xf32>
    %663 = arith.divf %661, %662 : vector<2x32xf32>
    %664 = vector.extract_strided_slice %641 {offsets = [2, 0, 0], sizes = [1, 2, 32], strides = [1, 1, 1]} : vector<4x2x32xf32> to vector<1x2x32xf32>
    %665 = vector.shape_cast %664 : vector<1x2x32xf32> to vector<2x32xf32>
    %666 = vector.extract_strided_slice %3 {offsets = [2, 0, 0], sizes = [1, 32, 32], strides = [1, 1, 1]} : vector<4x32x32xf32> to vector<1x32x32xf32>
    %667 = vector.shape_cast %666 : vector<1x32x32xf32> to vector<32x32xf32>
    %cst_170 = arith.constant dense<0.000000e+00> : vector<2x32xf32>
    %668 = tpu.matmul %581, %667, %cst_170 {dimension_numbers = #tpu.dot_dimension_numbers<[1], [0], [0], [1], [0, 0, 1, 1], [], []>} : vector<2x32xf32>, vector<32x32xf32>, vector<2x32xf32> -> vector<2x32xf32>
    %669 = arith.addf %665, %668 : vector<2x32xf32>
    %670 = math.tanh %669 : vector<2x32xf32>
    %671 = vector.extract_strided_slice %641 {offsets = [3, 0, 0], sizes = [1, 2, 32], strides = [1, 1, 1]} : vector<4x2x32xf32> to vector<1x2x32xf32>
    %672 = vector.shape_cast %671 : vector<1x2x32xf32> to vector<2x32xf32>
    %673 = vector.extract_strided_slice %3 {offsets = [3, 0, 0], sizes = [1, 32, 32], strides = [1, 1, 1]} : vector<4x32x32xf32> to vector<1x32x32xf32>
    %674 = vector.shape_cast %673 : vector<1x32x32xf32> to vector<32x32xf32>
    %cst_171 = arith.constant dense<0.000000e+00> : vector<2x32xf32>
    %675 = tpu.matmul %581, %674, %cst_171 {dimension_numbers = #tpu.dot_dimension_numbers<[1], [0], [0], [1], [0, 0, 1, 1], [], []>} : vector<2x32xf32>, vector<32x32xf32>, vector<2x32xf32> -> vector<2x32xf32>
    %676 = arith.addf %672, %675 : vector<2x32xf32>
    %677 = arith.negf %676 : vector<2x32xf32>
    %678 = math.exp %677 : vector<2x32xf32>
    %cst_172 = arith.constant 1.000000e+00 : f32
    %679 = vector.broadcast %cst_172 : f32 to vector<2x32xf32>
    %680 = arith.addf %679, %678 : vector<2x32xf32>
    %681 = arith.divf %679, %680 : vector<2x32xf32>
    %682 = arith.mulf %663, %579 : vector<2x32xf32>
    %683 = arith.mulf %652, %670 : vector<2x32xf32>
    %684 = arith.addf %682, %683 : vector<2x32xf32>
    %685 = math.tanh %684 : vector<2x32xf32>
    %686 = arith.mulf %681, %685 : vector<2x32xf32>
    %687 = arith.index_cast %c6_i32 : i32 to index
    %c0_173 = arith.constant 0 : index
    %c0_174 = arith.constant 0 : index
    %688 = vector.load %arg5[%687, %c0_173, %c0_174] : memref<8x2x32xf32, #tpu.memory_space<vmem>>, vector<1x2x32xf32>
    %689 = vector.shape_cast %688 : vector<1x2x32xf32> to vector<2x32xf32>
    %690 = vector.shape_cast %686 : vector<2x32xf32> to vector<1x2x32xf32>
    tpu.vector_store %arg5[%687, %c0_173, %c0_174], %690 {strides = array<i32>} : memref<8x2x32xf32, #tpu.memory_space<vmem>>, vector<1x2x32xf32>,
    %c7_i32_175 = arith.constant 7 : i32
    %691 = arith.subi %c7_i32_175, %c6_i32 : i32
    %692 = arith.index_cast %691 : i32 to index
    %c0_176 = arith.constant 0 : index
    %c0_177 = arith.constant 0 : index
    %c0_178 = arith.constant 0 : index
    %693 = vector.load %arg2[%692, %c0_176, %c0_177, %c0_178] : memref<8x4x2x32xf32, #tpu.memory_space<vmem>>, vector<1x4x2x32xf32>
    %694 = vector.shape_cast %693 : vector<1x4x2x32xf32> to vector<4x2x32xf32>
    %695 = vector.extract_strided_slice %694 {offsets = [0, 0, 0], sizes = [1, 2, 32], strides = [1, 1, 1]} : vector<4x2x32xf32> to vector<1x2x32xf32>
    %696 = vector.shape_cast %695 : vector<1x2x32xf32> to vector<2x32xf32>
    %697 = vector.extract_strided_slice %4 {offsets = [0, 0, 0], sizes = [1, 32, 32], strides = [1, 1, 1]} : vector<4x32x32xf32> to vector<1x32x32xf32>
    %698 = vector.shape_cast %697 : vector<1x32x32xf32> to vector<32x32xf32>
    %cst_179 = arith.constant dense<0.000000e+00> : vector<2x32xf32>
    %699 = tpu.matmul %634, %698, %cst_179 {dimension_numbers = #tpu.dot_dimension_numbers<[1], [0], [0], [1], [0, 0, 1, 1], [], []>} : vector<2x32xf32>, vector<32x32xf32>, vector<2x32xf32> -> vector<2x32xf32>
    %700 = arith.addf %696, %699 : vector<2x32xf32>
    %701 = arith.negf %700 : vector<2x32xf32>
    %702 = math.exp %701 : vector<2x32xf32>
    %cst_180 = arith.constant 1.000000e+00 : f32
    %703 = vector.broadcast %cst_180 : f32 to vector<2x32xf32>
    %704 = arith.addf %703, %702 : vector<2x32xf32>
    %705 = arith.divf %703, %704 : vector<2x32xf32>
    %706 = vector.extract_strided_slice %694 {offsets = [1, 0, 0], sizes = [1, 2, 32], strides = [1, 1, 1]} : vector<4x2x32xf32> to vector<1x2x32xf32>
    %707 = vector.shape_cast %706 : vector<1x2x32xf32> to vector<2x32xf32>
    %708 = vector.extract_strided_slice %4 {offsets = [1, 0, 0], sizes = [1, 32, 32], strides = [1, 1, 1]} : vector<4x32x32xf32> to vector<1x32x32xf32>
    %709 = vector.shape_cast %708 : vector<1x32x32xf32> to vector<32x32xf32>
    %cst_181 = arith.constant dense<0.000000e+00> : vector<2x32xf32>
    %710 = tpu.matmul %634, %709, %cst_181 {dimension_numbers = #tpu.dot_dimension_numbers<[1], [0], [0], [1], [0, 0, 1, 1], [], []>} : vector<2x32xf32>, vector<32x32xf32>, vector<2x32xf32> -> vector<2x32xf32>
    %711 = arith.addf %707, %710 : vector<2x32xf32>
    %712 = arith.negf %711 : vector<2x32xf32>
    %713 = math.exp %712 : vector<2x32xf32>
    %cst_182 = arith.constant 1.000000e+00 : f32
    %714 = vector.broadcast %cst_182 : f32 to vector<2x32xf32>
    %715 = arith.addf %714, %713 : vector<2x32xf32>
    %716 = arith.divf %714, %715 : vector<2x32xf32>
    %717 = vector.extract_strided_slice %694 {offsets = [2, 0, 0], sizes = [1, 2, 32], strides = [1, 1, 1]} : vector<4x2x32xf32> to vector<1x2x32xf32>
    %718 = vector.shape_cast %717 : vector<1x2x32xf32> to vector<2x32xf32>
    %719 = vector.extract_strided_slice %4 {offsets = [2, 0, 0], sizes = [1, 32, 32], strides = [1, 1, 1]} : vector<4x32x32xf32> to vector<1x32x32xf32>
    %720 = vector.shape_cast %719 : vector<1x32x32xf32> to vector<32x32xf32>
    %cst_183 = arith.constant dense<0.000000e+00> : vector<2x32xf32>
    %721 = tpu.matmul %634, %720, %cst_183 {dimension_numbers = #tpu.dot_dimension_numbers<[1], [0], [0], [1], [0, 0, 1, 1], [], []>} : vector<2x32xf32>, vector<32x32xf32>, vector<2x32xf32> -> vector<2x32xf32>
    %722 = arith.addf %718, %721 : vector<2x32xf32>
    %723 = math.tanh %722 : vector<2x32xf32>
    %724 = vector.extract_strided_slice %694 {offsets = [3, 0, 0], sizes = [1, 2, 32], strides = [1, 1, 1]} : vector<4x2x32xf32> to vector<1x2x32xf32>
    %725 = vector.shape_cast %724 : vector<1x2x32xf32> to vector<2x32xf32>
    %726 = vector.extract_strided_slice %4 {offsets = [3, 0, 0], sizes = [1, 32, 32], strides = [1, 1, 1]} : vector<4x32x32xf32> to vector<1x32x32xf32>
    %727 = vector.shape_cast %726 : vector<1x32x32xf32> to vector<32x32xf32>
    %cst_184 = arith.constant dense<0.000000e+00> : vector<2x32xf32>
    %728 = tpu.matmul %634, %727, %cst_184 {dimension_numbers = #tpu.dot_dimension_numbers<[1], [0], [0], [1], [0, 0, 1, 1], [], []>} : vector<2x32xf32>, vector<32x32xf32>, vector<2x32xf32> -> vector<2x32xf32>
    %729 = arith.addf %725, %728 : vector<2x32xf32>
    %730 = arith.negf %729 : vector<2x32xf32>
    %731 = math.exp %730 : vector<2x32xf32>
    %cst_185 = arith.constant 1.000000e+00 : f32
    %732 = vector.broadcast %cst_185 : f32 to vector<2x32xf32>
    %733 = arith.addf %732, %731 : vector<2x32xf32>
    %734 = arith.divf %732, %733 : vector<2x32xf32>
    %735 = arith.mulf %716, %632 : vector<2x32xf32>
    %736 = arith.mulf %705, %723 : vector<2x32xf32>
    %737 = arith.addf %735, %736 : vector<2x32xf32>
    %738 = math.tanh %737 : vector<2x32xf32>
    %739 = arith.mulf %734, %738 : vector<2x32xf32>
    %740 = arith.index_cast %691 : i32 to index
    %c0_186 = arith.constant 0 : index
    %c0_187 = arith.constant 0 : index
    %741 = vector.load %arg6[%740, %c0_186, %c0_187] : memref<8x2x32xf32, #tpu.memory_space<vmem>>, vector<1x2x32xf32>
    %742 = vector.shape_cast %741 : vector<1x2x32xf32> to vector<2x32xf32>
    %743 = vector.shape_cast %739 : vector<2x32xf32> to vector<1x2x32xf32>
    tpu.vector_store %arg6[%740, %c0_186, %c0_187], %743 {strides = array<i32>} : memref<8x2x32xf32, #tpu.memory_space<vmem>>, vector<1x2x32xf32>,
    %c7_i32_188 = arith.constant 7 : i32
    %744 = arith.index_cast %c7_i32_188 : i32 to index
    %c0_189 = arith.constant 0 : index
    %c0_190 = arith.constant 0 : index
    %c0_191 = arith.constant 0 : index
    %745 = vector.load %arg1[%744, %c0_189, %c0_190, %c0_191] : memref<8x4x2x32xf32, #tpu.memory_space<vmem>>, vector<1x4x2x32xf32>
    %746 = vector.shape_cast %745 : vector<1x4x2x32xf32> to vector<4x2x32xf32>
    %747 = vector.extract_strided_slice %746 {offsets = [0, 0, 0], sizes = [1, 2, 32], strides = [1, 1, 1]} : vector<4x2x32xf32> to vector<1x2x32xf32>
    %748 = vector.shape_cast %747 : vector<1x2x32xf32> to vector<2x32xf32>
    %749 = vector.extract_strided_slice %3 {offsets = [0, 0, 0], sizes = [1, 32, 32], strides = [1, 1, 1]} : vector<4x32x32xf32> to vector<1x32x32xf32>
    %750 = vector.shape_cast %749 : vector<1x32x32xf32> to vector<32x32xf32>
    %cst_192 = arith.constant dense<0.000000e+00> : vector<2x32xf32>
    %751 = tpu.matmul %686, %750, %cst_192 {dimension_numbers = #tpu.dot_dimension_numbers<[1], [0], [0], [1], [0, 0, 1, 1], [], []>} : vector<2x32xf32>, vector<32x32xf32>, vector<2x32xf32> -> vector<2x32xf32>
    %752 = arith.addf %748, %751 : vector<2x32xf32>
    %753 = arith.negf %752 : vector<2x32xf32>
    %754 = math.exp %753 : vector<2x32xf32>
    %cst_193 = arith.constant 1.000000e+00 : f32
    %755 = vector.broadcast %cst_193 : f32 to vector<2x32xf32>
    %756 = arith.addf %755, %754 : vector<2x32xf32>
    %757 = arith.divf %755, %756 : vector<2x32xf32>
    %758 = vector.extract_strided_slice %746 {offsets = [1, 0, 0], sizes = [1, 2, 32], strides = [1, 1, 1]} : vector<4x2x32xf32> to vector<1x2x32xf32>
    %759 = vector.shape_cast %758 : vector<1x2x32xf32> to vector<2x32xf32>
    %760 = vector.extract_strided_slice %3 {offsets = [1, 0, 0], sizes = [1, 32, 32], strides = [1, 1, 1]} : vector<4x32x32xf32> to vector<1x32x32xf32>
    %761 = vector.shape_cast %760 : vector<1x32x32xf32> to vector<32x32xf32>
    %cst_194 = arith.constant dense<0.000000e+00> : vector<2x32xf32>
    %762 = tpu.matmul %686, %761, %cst_194 {dimension_numbers = #tpu.dot_dimension_numbers<[1], [0], [0], [1], [0, 0, 1, 1], [], []>} : vector<2x32xf32>, vector<32x32xf32>, vector<2x32xf32> -> vector<2x32xf32>
    %763 = arith.addf %759, %762 : vector<2x32xf32>
    %764 = arith.negf %763 : vector<2x32xf32>
    %765 = math.exp %764 : vector<2x32xf32>
    %cst_195 = arith.constant 1.000000e+00 : f32
    %766 = vector.broadcast %cst_195 : f32 to vector<2x32xf32>
    %767 = arith.addf %766, %765 : vector<2x32xf32>
    %768 = arith.divf %766, %767 : vector<2x32xf32>
    %769 = vector.extract_strided_slice %746 {offsets = [2, 0, 0], sizes = [1, 2, 32], strides = [1, 1, 1]} : vector<4x2x32xf32> to vector<1x2x32xf32>
    %770 = vector.shape_cast %769 : vector<1x2x32xf32> to vector<2x32xf32>
    %771 = vector.extract_strided_slice %3 {offsets = [2, 0, 0], sizes = [1, 32, 32], strides = [1, 1, 1]} : vector<4x32x32xf32> to vector<1x32x32xf32>
    %772 = vector.shape_cast %771 : vector<1x32x32xf32> to vector<32x32xf32>
    %cst_196 = arith.constant dense<0.000000e+00> : vector<2x32xf32>
    %773 = tpu.matmul %686, %772, %cst_196 {dimension_numbers = #tpu.dot_dimension_numbers<[1], [0], [0], [1], [0, 0, 1, 1], [], []>} : vector<2x32xf32>, vector<32x32xf32>, vector<2x32xf32> -> vector<2x32xf32>
    %774 = arith.addf %770, %773 : vector<2x32xf32>
    %775 = math.tanh %774 : vector<2x32xf32>
    %776 = vector.extract_strided_slice %746 {offsets = [3, 0, 0], sizes = [1, 2, 32], strides = [1, 1, 1]} : vector<4x2x32xf32> to vector<1x2x32xf32>
    %777 = vector.shape_cast %776 : vector<1x2x32xf32> to vector<2x32xf32>
    %778 = vector.extract_strided_slice %3 {offsets = [3, 0, 0], sizes = [1, 32, 32], strides = [1, 1, 1]} : vector<4x32x32xf32> to vector<1x32x32xf32>
    %779 = vector.shape_cast %778 : vector<1x32x32xf32> to vector<32x32xf32>
    %cst_197 = arith.constant dense<0.000000e+00> : vector<2x32xf32>
    %780 = tpu.matmul %686, %779, %cst_197 {dimension_numbers = #tpu.dot_dimension_numbers<[1], [0], [0], [1], [0, 0, 1, 1], [], []>} : vector<2x32xf32>, vector<32x32xf32>, vector<2x32xf32> -> vector<2x32xf32>
    %781 = arith.addf %777, %780 : vector<2x32xf32>
    %782 = arith.negf %781 : vector<2x32xf32>
    %783 = math.exp %782 : vector<2x32xf32>
    %cst_198 = arith.constant 1.000000e+00 : f32
    %784 = vector.broadcast %cst_198 : f32 to vector<2x32xf32>
    %785 = arith.addf %784, %783 : vector<2x32xf32>
    %786 = arith.divf %784, %785 : vector<2x32xf32>
    %787 = arith.mulf %768, %684 : vector<2x32xf32>
    %788 = arith.mulf %757, %775 : vector<2x32xf32>
    %789 = arith.addf %787, %788 : vector<2x32xf32>
    %790 = math.tanh %789 : vector<2x32xf32>
    %791 = arith.mulf %786, %790 : vector<2x32xf32>
    %792 = arith.index_cast %c7_i32_188 : i32 to index
    %c0_199 = arith.constant 0 : index
    %c0_200 = arith.constant 0 : index
    %793 = vector.load %arg5[%792, %c0_199, %c0_200] : memref<8x2x32xf32, #tpu.memory_space<vmem>>, vector<1x2x32xf32>
    %794 = vector.shape_cast %793 : vector<1x2x32xf32> to vector<2x32xf32>
    %795 = vector.shape_cast %791 : vector<2x32xf32> to vector<1x2x32xf32>
    tpu.vector_store %arg5[%792, %c0_199, %c0_200], %795 {strides = array<i32>} : memref<8x2x32xf32, #tpu.memory_space<vmem>>, vector<1x2x32xf32>,
    %c7_i32_201 = arith.constant 7 : i32
    %796 = arith.subi %c7_i32_201, %c7_i32_188 : i32
    %797 = arith.index_cast %796 : i32 to index
    %c0_202 = arith.constant 0 : index
    %c0_203 = arith.constant 0 : index
    %c0_204 = arith.constant 0 : index
    %798 = vector.load %arg2[%797, %c0_202, %c0_203, %c0_204] : memref<8x4x2x32xf32, #tpu.memory_space<vmem>>, vector<1x4x2x32xf32>
    %799 = vector.shape_cast %798 : vector<1x4x2x32xf32> to vector<4x2x32xf32>
    %800 = vector.extract_strided_slice %799 {offsets = [0, 0, 0], sizes = [1, 2, 32], strides = [1, 1, 1]} : vector<4x2x32xf32> to vector<1x2x32xf32>
    %801 = vector.shape_cast %800 : vector<1x2x32xf32> to vector<2x32xf32>
    %802 = vector.extract_strided_slice %4 {offsets = [0, 0, 0], sizes = [1, 32, 32], strides = [1, 1, 1]} : vector<4x32x32xf32> to vector<1x32x32xf32>
    %803 = vector.shape_cast %802 : vector<1x32x32xf32> to vector<32x32xf32>
    %cst_205 = arith.constant dense<0.000000e+00> : vector<2x32xf32>
    %804 = tpu.matmul %739, %803, %cst_205 {dimension_numbers = #tpu.dot_dimension_numbers<[1], [0], [0], [1], [0, 0, 1, 1], [], []>} : vector<2x32xf32>, vector<32x32xf32>, vector<2x32xf32> -> vector<2x32xf32>
    %805 = arith.addf %801, %804 : vector<2x32xf32>
    %806 = arith.negf %805 : vector<2x32xf32>
    %807 = math.exp %806 : vector<2x32xf32>
    %cst_206 = arith.constant 1.000000e+00 : f32
    %808 = vector.broadcast %cst_206 : f32 to vector<2x32xf32>
    %809 = arith.addf %808, %807 : vector<2x32xf32>
    %810 = arith.divf %808, %809 : vector<2x32xf32>
    %811 = vector.extract_strided_slice %799 {offsets = [1, 0, 0], sizes = [1, 2, 32], strides = [1, 1, 1]} : vector<4x2x32xf32> to vector<1x2x32xf32>
    %812 = vector.shape_cast %811 : vector<1x2x32xf32> to vector<2x32xf32>
    %813 = vector.extract_strided_slice %4 {offsets = [1, 0, 0], sizes = [1, 32, 32], strides = [1, 1, 1]} : vector<4x32x32xf32> to vector<1x32x32xf32>
    %814 = vector.shape_cast %813 : vector<1x32x32xf32> to vector<32x32xf32>
    %cst_207 = arith.constant dense<0.000000e+00> : vector<2x32xf32>
    %815 = tpu.matmul %739, %814, %cst_207 {dimension_numbers = #tpu.dot_dimension_numbers<[1], [0], [0], [1], [0, 0, 1, 1], [], []>} : vector<2x32xf32>, vector<32x32xf32>, vector<2x32xf32> -> vector<2x32xf32>
    %816 = arith.addf %812, %815 : vector<2x32xf32>
    %817 = arith.negf %816 : vector<2x32xf32>
    %818 = math.exp %817 : vector<2x32xf32>
    %cst_208 = arith.constant 1.000000e+00 : f32
    %819 = vector.broadcast %cst_208 : f32 to vector<2x32xf32>
    %820 = arith.addf %819, %818 : vector<2x32xf32>
    %821 = arith.divf %819, %820 : vector<2x32xf32>
    %822 = vector.extract_strided_slice %799 {offsets = [2, 0, 0], sizes = [1, 2, 32], strides = [1, 1, 1]} : vector<4x2x32xf32> to vector<1x2x32xf32>
    %823 = vector.shape_cast %822 : vector<1x2x32xf32> to vector<2x32xf32>
    %824 = vector.extract_strided_slice %4 {offsets = [2, 0, 0], sizes = [1, 32, 32], strides = [1, 1, 1]} : vector<4x32x32xf32> to vector<1x32x32xf32>
    %825 = vector.shape_cast %824 : vector<1x32x32xf32> to vector<32x32xf32>
    %cst_209 = arith.constant dense<0.000000e+00> : vector<2x32xf32>
    %826 = tpu.matmul %739, %825, %cst_209 {dimension_numbers = #tpu.dot_dimension_numbers<[1], [0], [0], [1], [0, 0, 1, 1], [], []>} : vector<2x32xf32>, vector<32x32xf32>, vector<2x32xf32> -> vector<2x32xf32>
    %827 = arith.addf %823, %826 : vector<2x32xf32>
    %828 = math.tanh %827 : vector<2x32xf32>
    %829 = vector.extract_strided_slice %799 {offsets = [3, 0, 0], sizes = [1, 2, 32], strides = [1, 1, 1]} : vector<4x2x32xf32> to vector<1x2x32xf32>
    %830 = vector.shape_cast %829 : vector<1x2x32xf32> to vector<2x32xf32>
    %831 = vector.extract_strided_slice %4 {offsets = [3, 0, 0], sizes = [1, 32, 32], strides = [1, 1, 1]} : vector<4x32x32xf32> to vector<1x32x32xf32>
    %832 = vector.shape_cast %831 : vector<1x32x32xf32> to vector<32x32xf32>
    %cst_210 = arith.constant dense<0.000000e+00> : vector<2x32xf32>
    %833 = tpu.matmul %739, %832, %cst_210 {dimension_numbers = #tpu.dot_dimension_numbers<[1], [0], [0], [1], [0, 0, 1, 1], [], []>} : vector<2x32xf32>, vector<32x32xf32>, vector<2x32xf32> -> vector<2x32xf32>
    %834 = arith.addf %830, %833 : vector<2x32xf32>
    %835 = arith.negf %834 : vector<2x32xf32>
    %836 = math.exp %835 : vector<2x32xf32>
    %cst_211 = arith.constant 1.000000e+00 : f32
    %837 = vector.broadcast %cst_211 : f32 to vector<2x32xf32>
    %838 = arith.addf %837, %836 : vector<2x32xf32>
    %839 = arith.divf %837, %838 : vector<2x32xf32>
    %840 = arith.mulf %821, %737 : vector<2x32xf32>
    %841 = arith.mulf %810, %828 : vector<2x32xf32>
    %842 = arith.addf %840, %841 : vector<2x32xf32>
    %843 = math.tanh %842 : vector<2x32xf32>
    %844 = arith.mulf %839, %843 : vector<2x32xf32>
    %845 = arith.index_cast %796 : i32 to index
    %c0_212 = arith.constant 0 : index
    %c0_213 = arith.constant 0 : index
    %846 = vector.load %arg6[%845, %c0_212, %c0_213] : memref<8x2x32xf32, #tpu.memory_space<vmem>>, vector<1x2x32xf32>
    %847 = vector.shape_cast %846 : vector<1x2x32xf32> to vector<2x32xf32>
    %848 = vector.shape_cast %844 : vector<2x32xf32> to vector<1x2x32xf32>
    tpu.vector_store %arg6[%845, %c0_212, %c0_213], %848 {strides = array<i32>} : memref<8x2x32xf32, #tpu.memory_space<vmem>>, vector<1x2x32xf32>,
    %c8_i32 = arith.constant 8 : i32
    %c0_214 = arith.constant 0 : index
    %c0_215 = arith.constant 0 : index
    %849 = vector.load %arg7[%c0_214, %c0_215] : memref<2x32xf32, #tpu.memory_space<vmem>>, vector<2x32xf32>
    tpu.vector_store %arg7[%c0_214, %c0_215], %791 {strides = array<i32>} : memref<2x32xf32, #tpu.memory_space<vmem>>, vector<2x32xf32>,
    %c0_216 = arith.constant 0 : index
    %c0_217 = arith.constant 0 : index
    %850 = vector.load %arg8[%c0_216, %c0_217] : memref<2x32xf32, #tpu.memory_space<vmem>>, vector<2x32xf32>
    tpu.vector_store %arg8[%c0_216, %c0_217], %789 {strides = array<i32>} : memref<2x32xf32, #tpu.memory_space<vmem>>, vector<2x32xf32>,
    %c0_218 = arith.constant 0 : index
    %c0_219 = arith.constant 0 : index
    %851 = vector.load %arg9[%c0_218, %c0_219] : memref<2x32xf32, #tpu.memory_space<vmem>>, vector<2x32xf32>
    tpu.vector_store %arg9[%c0_218, %c0_219], %844 {strides = array<i32>} : memref<2x32xf32, #tpu.memory_space<vmem>>, vector<2x32xf32>,
    %c0_220 = arith.constant 0 : index
    %c0_221 = arith.constant 0 : index
    %852 = vector.load %arg10[%c0_220, %c0_221] : memref<2x32xf32, #tpu.memory_space<vmem>>, vector<2x32xf32>
    tpu.vector_store %arg10[%c0_220, %c0_221], %842 {strides = array<i32>} : memref<2x32xf32, #tpu.memory_space<vmem>>, vector<2x32xf32>,
    return
  }
  func.func @transform_0(%arg0: i32) -> (i32, i32, i32, i32) {
    %c0_i32 = arith.constant 0 : i32
    %c0_i32_0 = arith.constant 0 : i32
    %c0_i32_1 = arith.constant 0 : i32
    %c0_i32_2 = arith.constant 0 : i32
    return %arg0, %c0_i32, %c0_i32_0, %c0_i32_1 : i32, i32, i32, i32
  }
  func.func @transform_1(%arg0: i32) -> (i32, i32, i32, i32) {
    %c0_i32 = arith.constant 0 : i32
    %0 = arith.subi %c0_i32, %arg0 : i32
    %c0_i32_0 = arith.constant 0 : i32
    %c0_i32_1 = arith.constant 0 : i32
    %c0_i32_2 = arith.constant 0 : i32
    %c0_i32_3 = arith.constant 0 : i32
    return %0, %c0_i32_0, %c0_i32_1, %c0_i32_2 : i32, i32, i32, i32
  }
  func.func @transform_2(%arg0: i32) -> (i32, i32, i32) {
    %c0_i32 = arith.constant 0 : i32
    %c0_i32_0 = arith.constant 0 : i32
    %c0_i32_1 = arith.constant 0 : i32
    %c0_i32_2 = arith.constant 0 : i32
    return %c0_i32, %c0_i32_0, %c0_i32_1 : i32, i32, i32
  }
  func.func @transform_3(%arg0: i32) -> (i32, i32, i32) {
    %c0_i32 = arith.constant 0 : i32
    %c0_i32_0 = arith.constant 0 : i32
    %c0_i32_1 = arith.constant 0 : i32
    %c0_i32_2 = arith.constant 0 : i32
    return %c0_i32, %c0_i32_0, %c0_i32_1 : i32, i32, i32
  }
  func.func @transform_4(%arg0: i32) -> (i32, i32, i32) {
    %c0_i32 = arith.constant 0 : i32
    %c0_i32_0 = arith.constant 0 : i32
    %c0_i32_1 = arith.constant 0 : i32
    return %arg0, %c0_i32, %c0_i32_0 : i32, i32, i32
  }
  func.func @transform_5(%arg0: i32) -> (i32, i32, i32) {
    %c0_i32 = arith.constant 0 : i32
    %0 = arith.subi %c0_i32, %arg0 : i32
    %c0_i32_0 = arith.constant 0 : i32
    %c0_i32_1 = arith.constant 0 : i32
    %c0_i32_2 = arith.constant 0 : i32
    return %0, %c0_i32_0, %c0_i32_1 : i32, i32, i32
  }
}

module attributes {stable_mosaic.version = 11 : i64} {
  func.func @_fc_kernel(%arg0: i32, %arg1: memref<16x32xf32, #tpu.memory_space<vmem>>, %arg2: memref<16x32xf32, #tpu.memory_space<vmem>>, %arg3: memref<32x16xf32, #tpu.memory_space<vmem>>, %arg4: memref<32x16xf32, #tpu.memory_space<vmem>>, %arg5: memref<1x16xf32, #tpu.memory_space<vmem>>, %arg6: memref<16x16xf32, #tpu.memory_space<vmem>>) attributes {dimension_semantics = [#tpu.dimension_semantics<parallel>], iteration_bounds = array<i64: 1>, scalar_prefetch = 0 : i64, scratch_operands = 0 : i64, tpu.core_type = #tpu.core_type<tc>, window_params = [{transform_indices = @transform_0, window_bounds = array<i64: 16, 32>}, {transform_indices = @transform_1, window_bounds = array<i64: 16, 32>}, {pipeline_mode = #tpu.pipeline_mode<synchronous>, transform_indices = @transform_2, window_bounds = array<i64: 32, 16>}, {pipeline_mode = #tpu.pipeline_mode<synchronous>, transform_indices = @transform_3, window_bounds = array<i64: 32, 16>}, {pipeline_mode = #tpu.pipeline_mode<synchronous>, transform_indices = @transform_4, window_bounds = array<i64: 1, 16>}, {transform_indices = @transform_5, window_bounds = array<i64: 16, 16>}]} {
    %c0 = arith.constant 0 : index
    %c0_0 = arith.constant 0 : index
    %0 = vector.load %arg1[%c0, %c0_0] : memref<16x32xf32, #tpu.memory_space<vmem>>, vector<16x32xf32>
    %c0_1 = arith.constant 0 : index
    %c0_2 = arith.constant 0 : index
    %1 = vector.load %arg3[%c0_1, %c0_2] : memref<32x16xf32, #tpu.memory_space<vmem>>, vector<32x16xf32>
    %cst = arith.constant dense<0.000000e+00> : vector<16x16xf32>
    %2 = tpu.matmul %0, %1, %cst {dimension_numbers = #tpu.dot_dimension_numbers<[1], [0], [0], [1], [0, 0, 1, 1], [], []>} : vector<16x32xf32>, vector<32x16xf32>, vector<16x16xf32> -> vector<16x16xf32>
    %c0_3 = arith.constant 0 : index
    %c0_4 = arith.constant 0 : index
    %3 = vector.load %arg2[%c0_3, %c0_4] : memref<16x32xf32, #tpu.memory_space<vmem>>, vector<16x32xf32>
    %c0_5 = arith.constant 0 : index
    %c0_6 = arith.constant 0 : index
    %4 = vector.load %arg4[%c0_5, %c0_6] : memref<32x16xf32, #tpu.memory_space<vmem>>, vector<32x16xf32>
    %cst_7 = arith.constant dense<0.000000e+00> : vector<16x16xf32>
    %5 = tpu.matmul %3, %4, %cst_7 {dimension_numbers = #tpu.dot_dimension_numbers<[1], [0], [0], [1], [0, 0, 1, 1], [], []>} : vector<16x32xf32>, vector<32x16xf32>, vector<16x16xf32> -> vector<16x16xf32>
    %6 = arith.addf %2, %5 : vector<16x16xf32>
    %c0_8 = arith.constant 0 : index
    %c0_9 = arith.constant 0 : index
    %7 = vector.load %arg5[%c0_8, %c0_9] : memref<1x16xf32, #tpu.memory_space<vmem>>, vector<1x16xf32>
    %8 = vector.broadcast %7 : vector<1x16xf32> to vector<16x16xf32>
    %9 = arith.addf %6, %8 : vector<16x16xf32>
    %c0_10 = arith.constant 0 : index
    %c0_11 = arith.constant 0 : index
    %10 = vector.load %arg6[%c0_10, %c0_11] : memref<16x16xf32, #tpu.memory_space<vmem>>, vector<16x16xf32>
    tpu.vector_store %arg6[%c0_10, %c0_11], %9 {strides = array<i32>} : memref<16x16xf32, #tpu.memory_space<vmem>>, vector<16x16xf32>,
    return
  }
  func.func @transform_0(%arg0: i32) -> (i32, i32) {
    %c0_i32 = arith.constant 0 : i32
    %c0_i32_0 = arith.constant 0 : i32
    return %arg0, %c0_i32 : i32, i32
  }
  func.func @transform_1(%arg0: i32) -> (i32, i32) {
    %c0_i32 = arith.constant 0 : i32
    %c0_i32_0 = arith.constant 0 : i32
    return %arg0, %c0_i32 : i32, i32
  }
  func.func @transform_2(%arg0: i32) -> (i32, i32) {
    %c0_i32 = arith.constant 0 : i32
    %c0_i32_0 = arith.constant 0 : i32
    %c0_i32_1 = arith.constant 0 : i32
    return %c0_i32, %c0_i32_0 : i32, i32
  }
  func.func @transform_3(%arg0: i32) -> (i32, i32) {
    %c0_i32 = arith.constant 0 : i32
    %c0_i32_0 = arith.constant 0 : i32
    %c0_i32_1 = arith.constant 0 : i32
    return %c0_i32, %c0_i32_0 : i32, i32
  }
  func.func @transform_4(%arg0: i32) -> (i32, i32) {
    %c0_i32 = arith.constant 0 : i32
    %c0_i32_0 = arith.constant 0 : i32
    %c0_i32_1 = arith.constant 0 : i32
    return %c0_i32, %c0_i32_0 : i32, i32
  }
  func.func @transform_5(%arg0: i32) -> (i32, i32) {
    %c0_i32 = arith.constant 0 : i32
    %c0_i32_0 = arith.constant 0 : i32
    return %arg0, %c0_i32 : i32, i32
  }
}

</mosaic_0001>

<llo_original>
// kernel: lstm_encoder_forward.3
$region0: #{lstm_encoder_forward.3}
  #allocation0 [shape = 'u32[]', space=smem, size = 0x4, offset = 0x4, fixed_abs, tag = 'smem constant byte address 0x4 - core index']
  #allocation1 [shape = 'u32[72,128]{1,0:T(1,128)}', space=vmem, size = 0x9000, scoped, tag = 'internal scratch']
  %s0 = inlined_call_operand.hbm [shape: f32[16,16], index: 0, kind: input, shape index: {}]
  %s1 = inlined_call_operand.hbm [shape: f32[16,128], index: 1, kind: input, shape index: {}]
  %s2 = inlined_call_operand.vmem [shape: f32[1,128], index: 2, kind: input, shape index: {}]
  %s3 = inlined_call_operand.hbm [shape: f32[16,128], index: 3, kind: input, shape index: {}]
  %s4 = inlined_call_operand.vmem [shape: f32[1,128], index: 4, kind: input, shape index: {}]
  %s5 = inlined_call_operand.vmem [shape: f32[16,128], index: 5, kind: output, shape index: {0}]
  %s6 = inlined_call_operand.vmem [shape: f32[16,128], index: 6, kind: output, shape index: {1}]
  %7 = xla_tuple %s5, %s6
  %s8 = sld [smem:[#allocation0]]
  $region50: #{lstm_encoder_forward.3} parent=0
    _
  %s10 = ssub.s32 1, %s8
  %s11 = scalar_select 0, %s10, %s8
  $region1: #{lstm_encoder_forward.3} parent=0
    #allocation2 [shape = 'u8[8192]{0}', space=vmem, size = 0x2000, scoped, tag = 'input window, operand 0, single buffered']
    #allocation3 [shape = 's32[1]{0}', space=sflag, size = 0x4, scoped, tag = 'scoped memory for lstm_encoder_forward.3']
    #allocation4 [shape = 'u8[8192]{0}', space=vmem, size = 0x2000, scoped, tag = 'input window, operand 1, single buffered']
    #allocation5 [shape = 's32[1]{0}', space=sflag, size = 0x4, scoped, tag = 'scoped memory for lstm_encoder_forward.3']
    #allocation6 [shape = 'u8[8192]{0}', space=vmem, size = 0x2000, scoped, tag = 'input window, operand 3, single buffered']
    %12 = vsyncpa [#allocation3], 0
    %13 = vsyncpa [#allocation5], 0
    // Predicated region
    $region2: #{lstm_encoder_forward.3} parent=1 // pred_check
      _
    $region3: #{lstm_encoder_forward.3} parent=1 // pred_check_branch
      %15 = sbr.rel (0) target = $region5
    $region4: #{lstm_encoder_forward.3} parent=1 // pred_region
      %17 = vsyncadd [#allocation3], 0
      %s18 = sshll.u32 %s0, 4
      %s19 = int_to_ptr.hbm [resolvable:$true] %s18
      %s20 = sshll.u32 [#allocation2], 4
      %s21 = int_to_ptr.vmem [resolvable:$true] %s20
      %26 = dma.hbm_to_vmem [thread:$0]  %s19, 256, %s21, [#allocation3], 128, 128, 8
    $region5: #{lstm_encoder_forward.3} parent=1 // pred_fallthru
      _
    // Predicated region
    $region6: #{lstm_encoder_forward.3} parent=1 // pred_check
      _
    $region7: #{lstm_encoder_forward.3} parent=1 // pred_check_branch
      %28 = sbr.rel (0) target = $region9
    $region8: #{lstm_encoder_forward.3} parent=1 // pred_region
      %30 = vsyncadd [#allocation5], 0
      %s31 = sshll.u32 %s1, 4
      %s32 = int_to_ptr.hbm [resolvable:$true] %s31
      %s33 = sshll.u32 [#allocation4], 4
      %s34 = int_to_ptr.vmem [resolvable:$true] %s33
      %39 = dma.hbm_to_vmem [thread:$0]  %s32, 256, %s34, [#allocation5], 128, 128, 8
    $region9: #{lstm_encoder_forward.3} parent=1 // pred_fallthru
      _
    // Predicated region
    $region10: #{lstm_encoder_forward.3} parent=1 // pred_check
      _
    $region11: #{lstm_encoder_forward.3} parent=1 // pred_check_branch
      %41 = sbr.rel (0) target = $region13
    $region12: #{lstm_encoder_forward.3} parent=1 // pred_region
      _
    $region13: #{lstm_encoder_forward.3} parent=1 // pred_fallthru
      _
    // Predicated region
    $region14: #{lstm_encoder_forward.3} parent=1 // pred_check
      _
    $region15: #{lstm_encoder_forward.3} parent=1 // pred_check_branch
      %43 = sbr.rel (0) target = $region17
    $region16: #{lstm_encoder_forward.3} parent=1 // pred_region
      %45 = vsyncadd [#allocation5], 0
      %s46 = sshll.u32 %s3, 4
      %s47 = int_to_ptr.hbm [resolvable:$true] %s46
      %s48 = sshll.u32 [#allocation6], 4
      %s49 = int_to_ptr.vmem [resolvable:$true] %s48
      %54 = dma.hbm_to_vmem [thread:$0]  %s47, 256, %s49, [#allocation5], 128, 128, 8
    $region17: #{lstm_encoder_forward.3} parent=1 // pred_fallthru
      _
    // Predicated region
    $region18: #{lstm_encoder_forward.3} parent=1 // pred_check
      _
    $region19: #{lstm_encoder_forward.3} parent=1 // pred_check_branch
      %56 = sbr.rel (0) target = $region21
    $region20: #{lstm_encoder_forward.3} parent=1 // pred_region
      _
    $region21: #{lstm_encoder_forward.3} parent=1 // pred_fallthru
      _
    // Predicated region
    $region22: #{lstm_encoder_forward.3} parent=1 // pred_check
      _
    $region23: #{lstm_encoder_forward.3} parent=1 // pred_check_branch
      %58 = sbr.rel (0) target = $region25
    $region24: #{lstm_encoder_forward.3} parent=1 // pred_region
      %60 = dma.done [#allocation3], 256
    $region25: #{lstm_encoder_forward.3} parent=1 // pred_fallthru
      _
    // Predicated region
    $region26: #{lstm_encoder_forward.3} parent=1 // pred_check
      _
    $region27: #{lstm_encoder_forward.3} parent=1 // pred_check_branch
      %62 = sbr.rel (0) target = $region29
    $region28: #{lstm_encoder_forward.3} parent=1 // pred_region
      %64 = dma.done [#allocation5], 256
    $region29: #{lstm_encoder_forward.3} parent=1 // pred_fallthru
      _
    // Predicated region
    $region30: #{lstm_encoder_forward.3} parent=1 // pred_check
      _
    $region31: #{lstm_encoder_forward.3} parent=1 // pred_check_branch
      %66 = sbr.rel (0) target = $region33
    $region32: #{lstm_encoder_forward.3} parent=1 // pred_region
      %68 = dma.done [#allocation5], 256
    $region33: #{lstm_encoder_forward.3} parent=1 // pred_fallthru
      _
    %v69 = vld [vmem:[#allocation2] sm:$0xff]
    %v70 = vld [vmem:[#allocation2 + $0x8] sm:$0xff]
    %v71 = vld [vmem:[#allocation4] sm:$0xff]
    %v72 = vld [vmem:[#allocation4 + $0x8] sm:$0xff]
    %v73 = vld [vmem:[%s2] sm:$0x1]
    %v75 = vperm.slane %v73, 0
    %vm77 = vcmask 130048
    %v79 = vsel %vm77, %v69, 0
    %v82 = vsel %vm77, %v70, 0
    %84 = vmatpush.msra.mxu0 0.0
    %85 = vmatpush.msra.mxu0 0.0
    %86 = vmatpush.msra.mxu0 0.0
    %87 = vmatpush.msra.mxu0 0.0
    %88 = vmatpush.msra.mxu0 0.0
    %89 = vmatpush.msra.mxu0 0.0
    %90 = vmatpush.msra.mxu0 0.0
    %91 = vmatpush.msra.mxu0 0.0
    %92 = vmatpush.msra.mxu0 0.0
    %93 = vmatpush.msra.mxu0 0.0
    %94 = vmatpush.msra.mxu0 0.0
    %95 = vmatpush.msra.mxu0 0.0
    %96 = vmatpush.msra.mxu0 0.0
    %97 = vmatpush.msra.mxu0 0.0
    %98 = vmatpush.msra.mxu0 %v72
    %99 = vmatpush.msra.mxu0 %v71
    %100 = vmatmul.f32.gmra.mxu0 %v79
    %v101 = vpop.f32.mrf.mxu0
    %v102 = vadd.f32 %v75, %v101
    %103 = vmatmul.f32.gmra.mxu0 %v82
    %v104 = vpop.f32.mrf.mxu0
    %v105 = vadd.f32 %v75, %v104
    %106 = vdwg.mxu0
    %107 = vst [vmem:[%s5] sm:$0xff] %v102
    %108 = vst [vmem:[%s5 + $0x8] sm:$0xff] %v105
    %v109 = vld [vmem:[#allocation6] sm:$0xff]
    %v110 = vld [vmem:[#allocation6 + $0x8] sm:$0xff]
    %v111 = vld [vmem:[%s4] sm:$0x1]
    %v113 = vperm.slane %v111, 0
    %115 = vmatpush.msra.mxu0 0.0
    %116 = vmatpush.msra.mxu0 0.0
    %117 = vmatpush.msra.mxu0 0.0
    %118 = vmatpush.msra.mxu0 0.0
    %119 = vmatpush.msra.mxu0 0.0
    %120 = vmatpush.msra.mxu0 0.0
    %121 = vmatpush.msra.mxu0 0.0
    %122 = vmatpush.msra.mxu0 0.0
    %123 = vmatpush.msra.mxu0 0.0
    %124 = vmatpush.msra.mxu0 0.0
    %125 = vmatpush.msra.mxu0 0.0
    %126 = vmatpush.msra.mxu0 0.0
    %127 = vmatpush.msra.mxu0 0.0
    %128 = vmatpush.msra.mxu0 0.0
    %129 = vmatpush.msra.mxu0 %v110
    %130 = vmatpush.msra.mxu0 %v109
    %131 = vmatmul.f32.gmra.mxu0 %v79
    %v132 = vpop.f32.mrf.mxu0
    %v133 = vadd.f32 %v113, %v132
    %134 = vmatmul.f32.gmra.mxu0 %v82
    %v135 = vpop.f32.mrf.mxu0
    %v136 = vadd.f32 %v113, %v135
    %137 = vdwg.mxu0
    %138 = vst [vmem:[%s6] sm:$0xff] %v133
    %139 = vst [vmem:[%s6 + $0x8] sm:$0xff] %v136
    // Predicated region
    $region34: #{lstm_encoder_forward.3} parent=1 // pred_check
      _
    $region35: #{lstm_encoder_forward.3} parent=1 // pred_check_branch
      %141 = sbr.rel (0) target = $region37
    $region36: #{lstm_encoder_forward.3} parent=1 // pred_region
      _
    $region37: #{lstm_encoder_forward.3} parent=1 // pred_fallthru
      _
    // Predicated region
    $region38: #{lstm_encoder_forward.3} parent=1 // pred_check
      _
    $region39: #{lstm_encoder_forward.3} parent=1 // pred_check_branch
      %143 = sbr.rel (0) target = $region41
    $region40: #{lstm_encoder_forward.3} parent=1 // pred_region
      _
    $region41: #{lstm_encoder_forward.3} parent=1 // pred_fallthru
      _
    // Predicated region
    $region42: #{lstm_encoder_forward.3} parent=1 // pred_check
      _
    $region43: #{lstm_encoder_forward.3} parent=1 // pred_check_branch
      %145 = sbr.rel (0) target = $region45
    $region44: #{lstm_encoder_forward.3} parent=1 // pred_region
      _
    $region45: #{lstm_encoder_forward.3} parent=1 // pred_fallthru
      _
    // Predicated region
    $region46: #{lstm_encoder_forward.3} parent=1 // pred_check
      _
    $region47: #{lstm_encoder_forward.3} parent=1 // pred_check_branch
      %147 = sbr.rel (0) target = $region49
    $region48: #{lstm_encoder_forward.3} parent=1 // pred_region
      _
    $region49: #{lstm_encoder_forward.3} parent=1 // pred_fallthru
      _
    %148 = vsyncpa [#allocation3], 1
    %149 = vsyncpa [#allocation5], 1

// kernel: lstm_encoder_forward.5
$region0: #{lstm_encoder_forward.5}
  #allocation0 [shape = 'u32[]', space=smem, size = 0x4, offset = 0x4, fixed_abs, tag = 'smem constant byte address 0x4 - core index']
  #allocation1 [shape = 'u32[72,128]{1,0:T(1,128)}', space=vmem, size = 0x9000, scoped, tag = 'internal scratch']
  %s0 = inlined_call_operand.vmem [shape: f32[16,32], index: 0, kind: input, shape index: {}]
  %s1 = inlined_call_operand.vmem [shape: f32[16,32], index: 1, kind: input, shape index: {}]
  %s2 = inlined_call_operand.vmem [shape: f32[32,16], index: 2, kind: input, shape index: {}]
  %s3 = inlined_call_operand.vmem [shape: f32[32,16], index: 3, kind: input, shape index: {}]
  %s4 = inlined_call_operand.vmem [shape: f32[1,16], index: 4, kind: input, shape index: {}]
  %s5 = inlined_call_operand.hbm [shape: f32[16,16], index: 5, kind: output, shape index: {}]
  %s6 = sld [smem:[#allocation0]]
  $region30: #{lstm_encoder_forward.5} parent=0
    _
  %s8 = ssub.s32 1, %s6
  %s9 = scalar_select 0, %s8, %s6
  $region1: #{lstm_encoder_forward.5} parent=0
    #allocation2 [shape = 'u8[8192]{0}', space=vmem, size = 0x2000, scoped, tag = 'output window, operand 0, single buffered']
    #allocation3 [shape = 's32[1]{0}', space=sflag, size = 0x4, scoped, tag = 'scoped memory for lstm_encoder_forward.5']
    %10 = vsyncpa [#allocation3], 0
    // Predicated region
    $region2: #{lstm_encoder_forward.5} parent=1 // pred_check
      _
    $region3: #{lstm_encoder_forward.5} parent=1 // pred_check_branch
      %12 = sbr.rel (0) target = $region5
    $region4: #{lstm_encoder_forward.5} parent=1 // pred_region
      _
    $region5: #{lstm_encoder_forward.5} parent=1 // pred_fallthru
      _
    // Predicated region
    $region6: #{lstm_encoder_forward.5} parent=1 // pred_check
      _
    $region7: #{lstm_encoder_forward.5} parent=1 // pred_check_branch
      %14 = sbr.rel (0) target = $region9
    $region8: #{lstm_encoder_forward.5} parent=1 // pred_region
      _
    $region9: #{lstm_encoder_forward.5} parent=1 // pred_fallthru
      _
    // Predicated region
    $region10: #{lstm_encoder_forward.5} parent=1 // pred_check
      _
    $region11: #{lstm_encoder_forward.5} parent=1 // pred_check_branch
      %16 = sbr.rel (0) target = $region13
    $region12: #{lstm_encoder_forward.5} parent=1 // pred_region
      _
    $region13: #{lstm_encoder_forward.5} parent=1 // pred_fallthru
      _
    // Predicated region
    $region14: #{lstm_encoder_forward.5} parent=1 // pred_check
      _
    $region15: #{lstm_encoder_forward.5} parent=1 // pred_check_branch
      %18 = sbr.rel (0) target = $region17
    $region16: #{lstm_encoder_forward.5} parent=1 // pred_region
      _
    $region17: #{lstm_encoder_forward.5} parent=1 // pred_fallthru
      _
    // Predicated region
    $region18: #{lstm_encoder_forward.5} parent=1 // pred_check
      _
    $region19: #{lstm_encoder_forward.5} parent=1 // pred_check_branch
      %20 = sbr.rel (0) target = $region21
    $region20: #{lstm_encoder_forward.5} parent=1 // pred_region
      _
    $region21: #{lstm_encoder_forward.5} parent=1 // pred_fallthru
      _
    %v21 = vld [vmem:[%s0] sm:$0xff]
    %v22 = vld [vmem:[%s0 + $0x8] sm:$0xff]
    %v23 = vld [vmem:[%s2] sm:$0xff]
    %v24 = vld [vmem:[%s2 + $0x8] sm:$0xff]
    %v25 = vld [vmem:[%s2 + $0x10] sm:$0xff]
    %v26 = vld [vmem:[%s2 + $0x18] sm:$0xff]
    %v27 = vld [vmem:[%s1] sm:$0xff]
    %v28 = vld [vmem:[%s1 + $0x8] sm:$0xff]
    %v29 = vld [vmem:[%s3] sm:$0xff]
    %v30 = vld [vmem:[%s3 + $0x8] sm:$0xff]
    %v31 = vld [vmem:[%s3 + $0x10] sm:$0xff]
    %v32 = vld [vmem:[%s3 + $0x18] sm:$0xff]
    %vm33 = vcmask 261120
    %v35 = vsel %vm33, %v27, 0
    %v38 = vsel %vm33, %v28, 0
    %40 = vmatpush.msra.mxu0 0.0
    %41 = vmatpush.msra.mxu0 0.0
    %42 = vmatpush.msra.mxu0 0.0
    %43 = vmatpush.msra.mxu0 0.0
    %44 = vmatpush.msra.mxu0 0.0
    %45 = vmatpush.msra.mxu0 0.0
    %46 = vmatpush.msra.mxu0 0.0
    %47 = vmatpush.msra.mxu0 0.0
    %48 = vmatpush.msra.mxu0 0.0
    %49 = vmatpush.msra.mxu0 0.0
    %50 = vmatpush.msra.mxu0 0.0
    %51 = vmatpush.msra.mxu0 0.0
    %52 = vmatpush.msra.mxu0 %v32
    %53 = vmatpush.msra.mxu0 %v31
    %54 = vmatpush.msra.mxu0 %v30
    %55 = vmatpush.msra.mxu0 %v29
    %56 = vmatmul.f32.gmra.mxu0 %v35
    %v57 = vpop.f32.mrf.mxu0
    %v58 = vadd.f32 0.0, %v57
    %59 = vmatmul.f32.gmra.mxu0 %v38
    %v60 = vpop.f32.mrf.mxu0
    %v61 = vadd.f32 0.0, %v60
    %62 = vdwg.mxu0
    %v64 = vsel %vm33, %v21, 0
    %v67 = vsel %vm33, %v22, 0
    %69 = vmatpush.msra.mxu0 0.0
    %70 = vmatpush.msra.mxu0 0.0
    %71 = vmatpush.msra.mxu0 0.0
    %72 = vmatpush.msra.mxu0 0.0
    %73 = vmatpush.msra.mxu0 0.0
    %74 = vmatpush.msra.mxu0 0.0
    %75 = vmatpush.msra.mxu0 0.0
    %76 = vmatpush.msra.mxu0 0.0
    %77 = vmatpush.msra.mxu0 0.0
    %78 = vmatpush.msra.mxu0 0.0
    %79 = vmatpush.msra.mxu0 0.0
    %80 = vmatpush.msra.mxu0 0.0
    %81 = vmatpush.msra.mxu0 %v26
    %82 = vmatpush.msra.mxu0 %v25
    %83 = vmatpush.msra.mxu0 %v24
    %84 = vmatpush.msra.mxu0 %v23
    %85 = vmatmul.f32.gmra.mxu0 %v64
    %v86 = vpop.f32.mrf.mxu0
    %v87 = vadd.f32 %v58, %v86
    %88 = vmatmul.f32.gmra.mxu0 %v67
    %v89 = vpop.f32.mrf.mxu0
    %v90 = vadd.f32 %v61, %v89
    %91 = vdwg.mxu0
    %v92 = vld [vmem:[%s4] sm:$0x1]
    %v94 = vperm.slane %v92, 0
    %v96 = vadd.f32 %v87, %v94
    %v97 = vadd.f32 %v90, %v94
    %vm98 = vcmask 130048
    %99 = vst.msk [vmem:[#allocation2] sm:$0xff] %vm98, %v96
    %100 = vst.msk [vmem:[#allocation2 + $0x8] sm:$0xff] %vm98, %v97
    // Predicated region
    $region22: #{lstm_encoder_forward.5} parent=1 // pred_check
      _
    $region23: #{lstm_encoder_forward.5} parent=1 // pred_check_branch
      %102 = sbr.rel (0) target = $region25
    $region24: #{lstm_encoder_forward.5} parent=1 // pred_region
      %104 = vsyncadd [#allocation3], 0
      %s105 = sshll.u32 [#allocation2], 4
      %s106 = int_to_ptr.vmem [resolvable:$true] %s105
      %s107 = sshll.u32 %s5, 4
      %s108 = int_to_ptr.hbm [resolvable:$true] %s107
      %113 = dma.vmem_to_hbm [thread:$0]  %s106, 256, %s108, [#allocation3], 128, 128, 8
    $region25: #{lstm_encoder_forward.5} parent=1 // pred_fallthru
      _
    // Predicated region
    $region26: #{lstm_encoder_forward.5} parent=1 // pred_check
      _
    $region27: #{lstm_encoder_forward.5} parent=1 // pred_check_branch
      %115 = sbr.rel (0) target = $region29
    $region28: #{lstm_encoder_forward.5} parent=1 // pred_region
      %117 = dma.done [#allocation3], 256
    $region29: #{lstm_encoder_forward.5} parent=1 // pred_fallthru
      _
    %118 = vsyncpa [#allocation3], 1

// kernel: lstm_encoder_forward.4
$region0: #{lstm_encoder_forward.4}
  #allocation0 [shape = 'u32[]', space=smem, size = 0x4, offset = 0x4, fixed_abs, tag = 'smem constant byte address 0x4 - core index']
  #allocation1 [shape = 'u32[72,128]{1,0:T(1,128)}', space=vmem, size = 0x9000, scoped, tag = 'internal scratch']
  #allocation2 [shape = 'f32[2,32]{1,0:T(2,128)}', space=vmem, size = 0x400, scoped, tag = 'scratch operand']
  #allocation3 [shape = 'f32[2,32]{1,0:T(2,128)}', space=vmem, size = 0x400, scoped, tag = 'scratch operand']
  #allocation4 [shape = 'f32[2,32]{1,0:T(2,128)}', space=vmem, size = 0x400, scoped, tag = 'scratch operand']
  #allocation5 [shape = 'f32[2,32]{1,0:T(2,128)}', space=vmem, size = 0x400, scoped, tag = 'scratch operand']
  %s0 = inlined_call_operand.vmem [shape: f32[8,4,2,32], index: 0, kind: input, shape index: {}]
  %s1 = inlined_call_operand.vmem [shape: f32[8,4,2,32], index: 1, kind: input, shape index: {}]
  %s2 = inlined_call_operand.vmem [shape: f32[4,32,32], index: 2, kind: input, shape index: {}]
  %s3 = inlined_call_operand.vmem [shape: f32[4,32,32], index: 3, kind: input, shape index: {}]
  %s4 = inlined_call_operand.vmem [shape: f32[8,2,32], index: 4, kind: output, shape index: {0}]
  %s5 = inlined_call_operand.vmem [shape: f32[8,2,32], index: 5, kind: output, shape index: {1}]
  %6 = xla_tuple %s4, %s5
  %s7 = sld [smem:[#allocation0]]
  $region38: #{lstm_encoder_forward.4} parent=0
    _
  %s9 = ssub.s32 1, %s7
  %s10 = scalar_select 0, %s9, %s7
  // Predicated region
  $region2: #{lstm_encoder_forward.4} parent=0 // pred_check
    _
  $region3: #{lstm_encoder_forward.4} parent=0 // pred_check_branch
    %12 = sbr.rel (0) target = $region5
  $region4: #{lstm_encoder_forward.4} parent=0 // pred_region
    _
  $region5: #{lstm_encoder_forward.4} parent=0 // pred_fallthru
    _
  // Predicated region
  $region6: #{lstm_encoder_forward.4} parent=0 // pred_check
    _
  $region7: #{lstm_encoder_forward.4} parent=0 // pred_check_branch
    %14 = sbr.rel (0) target = $region9
  $region8: #{lstm_encoder_forward.4} parent=0 // pred_region
    %s15 = ssub.s32 0, 0
    %s16 = smul.u32 8, %s15
    %p17 = scmp.lt.s32.totalorder %s16, 7
    %s18 = scalar_select %p17, %s16, 7
    %s19 = smul.addr %s18, 4
    %s20 = smul.addr %s19, 2
    %s21 = scalar_lea.vmem %s1, %s20
    %s22 = ssub.s32 0, 0
    %s23 = smul.u32 8, %s22
  $region9: #{lstm_encoder_forward.4} parent=0 // pred_fallthru
    _
  // Predicated region
  $region10: #{lstm_encoder_forward.4} parent=0 // pred_check
    _
  $region11: #{lstm_encoder_forward.4} parent=0 // pred_check_branch
    %25 = sbr.rel (0) target = $region13
  $region12: #{lstm_encoder_forward.4} parent=0 // pred_region
    _
  $region13: #{lstm_encoder_forward.4} parent=0 // pred_fallthru
    _
  // Predicated region
  $region14: #{lstm_encoder_forward.4} parent=0 // pred_check
    _
  $region15: #{lstm_encoder_forward.4} parent=0 // pred_check_branch
    %27 = sbr.rel (0) target = $region17
  $region16: #{lstm_encoder_forward.4} parent=0 // pred_region
    _
  $region17: #{lstm_encoder_forward.4} parent=0 // pred_fallthru
    _
  %s28 = ssub.s32 0, 0
  %s29 = smul.u32 8, %s28
  %p30 = scmp.lt.s32.totalorder %s29, 7
  %s31 = scalar_select %p30, %s29, 7
  %s32 = smul.addr %s31, 4
  %s33 = smul.addr %s32, 2
  %s34 = scalar_lea.vmem %s1, %s33
  %s35 = ssub.s32 0, 0
  %s36 = smul.u32 8, %s35
  %p37 = scmp.lt.s32.totalorder %s36, 7
  %s38 = scalar_select %p37, %s36, 7
  %s39 = smul.addr %s38, 2
  %s40 = scalar_lea.vmem %s5, %s39
  %s41 = ssub.s32 0, 0
  %s42 = smul.u32 8, %s41
  %p43 = scmp.lt.s32.totalorder %s42, 7
  %s44 = scalar_select %p43, %s42, 7
  %s45 = smul.addr %s44, 4
  %s46 = smul.addr %s45, 2
  %s47 = scalar_lea.vmem %s1, %s46
  %s48 = ssub.s32 0, 0
  %s49 = smul.u32 8, %s48
  %s50 = ssub.s32 0, 0
  %s51 = smul.u32 8, %s50
  %p52 = scmp.lt.s32.totalorder %s51, 7
  %s53 = scalar_select %p52, %s51, 7
  %s54 = smul.addr %s53, 2
  %s55 = scalar_lea.vmem %s5, %s54
  %s56 = ssub.s32 0, 0
  %s57 = smul.u32 8, %s56
  %p58 = scmp.eq.s32.totalorder 0, 0
  // Predicated region
  $region18: #{lstm_encoder_forward.4} parent=0 // pred_check
    %p59 = pneg %p58
  $region19: #{lstm_encoder_forward.4} parent=0 // pred_check_branch
    %61 = sbr.rel (%p59) target = $region21
  $region20: #{lstm_encoder_forward.4} parent=0 // pred_region
    %vm62 = vcmask 254976
    %63 = vst.msk [vmem:[#allocation2] sm:$0x3] %vm62, 0.0
    %64 = vst.msk [vmem:[#allocation3] sm:$0x3] %vm62, 0.0
    %65 = vst.msk [vmem:[#allocation4] sm:$0x3] %vm62, 0.0
    %66 = vst.msk [vmem:[#allocation5] sm:$0x3] %vm62, 0.0
  $region21: #{lstm_encoder_forward.4} parent=0 // pred_fallthru
    _
  %v67 = vld [vmem:[%s2] sm:$0xff]
  %v68 = vld [vmem:[%s2 + $0x8] sm:$0xff]
  %v69 = vld [vmem:[%s2 + $0x10] sm:$0xff]
  %v70 = vld [vmem:[%s2 + $0x18] sm:$0xff]
  %v71 = vld [vmem:[%s2 + $0x20] sm:$0xff]
  %v72 = vld [vmem:[%s2 + $0x28] sm:$0xff]
  %v73 = vld [vmem:[%s2 + $0x30] sm:$0xff]
  %v74 = vld [vmem:[%s2 + $0x38] sm:$0xff]
  %v75 = vld [vmem:[%s2 + $0x40] sm:$0xff]
  %v76 = vld [vmem:[%s2 + $0x48] sm:$0xff]
  %v77 = vld [vmem:[%s2 + $0x50] sm:$0xff]
  %v78 = vld [vmem:[%s2 + $0x58] sm:$0xff]
  %v79 = vld [vmem:[%s2 + $0x60] sm:$0xff]
  %v80 = vld [vmem:[%s2 + $0x68] sm:$0xff]
  %v81 = vld [vmem:[%s2 + $0x70] sm:$0xff]
  %v82 = vld [vmem:[%s2 + $0x78] sm:$0xff]
  %v83 = vld [vmem:[%s3] sm:$0xff]
  %v84 = vld [vmem:[%s3 + $0x8] sm:$0xff]
  %v85 = vld [vmem:[%s3 + $0x10] sm:$0xff]
  %v86 = vld [vmem:[%s3 + $0x18] sm:$0xff]
  %v87 = vld [vmem:[%s3 + $0x20] sm:$0xff]
  %v88 = vld [vmem:[%s3 + $0x28] sm:$0xff]
  %v89 = vld [vmem:[%s3 + $0x30] sm:$0xff]
  %v90 = vld [vmem:[%s3 + $0x38] sm:$0xff]
  %v91 = vld [vmem:[%s3 + $0x40] sm:$0xff]
  %v92 = vld [vmem:[%s3 + $0x48] sm:$0xff]
  %v93 = vld [vmem:[%s3 + $0x50] sm:$0xff]
  %v94 = vld [vmem:[%s3 + $0x58] sm:$0xff]
  %v95 = vld [vmem:[%s3 + $0x60] sm:$0xff]
  %v96 = vld [vmem:[%s3 + $0x68] sm:$0xff]
  %v97 = vld [vmem:[%s3 + $0x70] sm:$0xff]
  %v98 = vld [vmem:[%s3 + $0x78] sm:$0xff]
  %v99 = vld [vmem:[#allocation2] sm:$0x3]
  %v100 = vld [vmem:[#allocation3] sm:$0x3]
  %v101 = vld [vmem:[#allocation4] sm:$0x3]
  %v102 = vld [vmem:[#allocation5] sm:$0x3]
  %v103 = vld [vmem:[%s0] sm:$0x3]
  %v104 = vld [vmem:[%s0 + $0x2] sm:$0x3]
  %v105 = vld [vmem:[%s0 + $0x4] sm:$0x3]
  %v106 = vld [vmem:[%s0 + $0x6] sm:$0x3]
  %vm107 = vcmask 261120
  %v109 = vsel %vm107, %v99, 0
  %111 = vmatpush.msra.mxu0 0.0
  %112 = vmatpush.msra.mxu0 0.0
  %113 = vmatpush.msra.mxu0 0.0
  %114 = vmatpush.msra.mxu0 0.0
  %115 = vmatpush.msra.mxu0 0.0
  %116 = vmatpush.msra.mxu0 0.0
  %117 = vmatpush.msra.mxu0 0.0
  %118 = vmatpush.msra.mxu0 0.0
  %119 = vmatpush.msra.mxu0 0.0
  %120 = vmatpush.msra.mxu0 0.0
  %121 = vmatpush.msra.mxu0 0.0
  %122 = vmatpush.msra.mxu0 0.0
  %123 = vmatpush.msra.mxu0 %v70
  %124 = vmatpush.msra.mxu0 %v69
  %125 = vmatpush.msra.mxu0 %v68
  %126 = vmatpush.msra.mxu0 %v67
  %127 = vmatmul.f32.gmra.mxu0 %v109
  %v128 = vpop.f32.mrf.mxu0
  %v129 = vadd.f32 0.0, %v128
  %130 = vdwg.mxu0
  %v131 = vadd.f32 %v103, %v129
  %v132 = vxor.u32 %v131, 2147483648
  %v133 = vmul.f32 %v132, 1.442695
  %v134 = vpow.pop %v133
  %v135 = vadd.f32 %v134, 1.0
  %v136 = vrcp.pop %v135
  %v137 = vmul.f32 %v135, %v136
  %v138 = vsub.f32 1.0, %v137
  %v139 = vmul.f32 %v136, %v138
  %v140 = vadd.f32 %v136, %v139
  %vm141 = vweird.f32 %v135
  %vm142 = vweird.f32 %v136
  %vm143 = vmor %vm141, %vm142
  %v144 = vsel %vm143, %v136, %v140
  %v145 = vand.u32 2147483647, %v135
  %vm146 = vcmp.eq.f32.partialorder %v145, 8.507059e+37
  %v147 = vand.u32 %v135, 2147483648
  %v148 = vor.u32 1.1754944e-38, %v147
  %v149 = vsel %vm146, %v148, %v144
  %v150 = vmul.f32 1.0, %v149
  %151 = vmatpush.msra.mxu0 0.0
  %152 = vmatpush.msra.mxu0 0.0
  %153 = vmatpush.msra.mxu0 0.0
  %154 = vmatpush.msra.mxu0 0.0
  %155 = vmatpush.msra.mxu0 0.0
  %156 = vmatpush.msra.mxu0 0.0
  %157 = vmatpush.msra.mxu0 0.0
  %158 = vmatpush.msra.mxu0 0.0
  %159 = vmatpush.msra.mxu0 0.0
  %160 = vmatpush.msra.mxu0 0.0
  %161 = vmatpush.msra.mxu0 0.0
  %162 = vmatpush.msra.mxu0 0.0
  %163 = vmatpush.msra.mxu0 %v74
  %164 = vmatpush.msra.mxu0 %v73
  %165 = vmatpush.msra.mxu0 %v72
  %166 = vmatpush.msra.mxu0 %v71
  %167 = vmatmul.f32.gmra.mxu0 %v109
  %v168 = vpop.f32.mrf.mxu0
  %v169 = vadd.f32 0.0, %v168
  %170 = vdwg.mxu0
  %v171 = vadd.f32 %v104, %v169
  %v172 = vxor.u32 %v171, 2147483648
  %v173 = vmul.f32 %v172, 1.442695
  %v174 = vpow.pop %v173
  %v175 = vadd.f32 %v174, 1.0
  %v176 = vrcp.pop %v175
  %v177 = vmul.f32 %v175, %v176
  %v178 = vsub.f32 1.0, %v177
  %v179 = vmul.f32 %v176, %v178
  %v180 = vadd.f32 %v176, %v179
  %vm181 = vweird.f32 %v175
  %vm182 = vweird.f32 %v176
  %vm183 = vmor %vm181, %vm182
  %v184 = vsel %vm183, %v176, %v180
  %v185 = vand.u32 2147483647, %v175
  %vm186 = vcmp.eq.f32.partialorder %v185, 8.507059e+37
  %v187 = vand.u32 %v175, 2147483648
  %v188 = vor.u32 1.1754944e-38, %v187
  %v189 = vsel %vm186, %v188, %v184
  %v190 = vmul.f32 1.0, %v189
  %191 = vmatpush.msra.mxu0 0.0
  %192 = vmatpush.msra.mxu0 0.0
  %193 = vmatpush.msra.mxu0 0.0
  %194 = vmatpush.msra.mxu0 0.0
  %195 = vmatpush.msra.mxu0 0.0
  %196 = vmatpush.msra.mxu0 0.0
  %197 = vmatpush.msra.mxu0 0.0
  %198 = vmatpush.msra.mxu0 0.0
  %199 = vmatpush.msra.mxu0 0.0
  %200 = vmatpush.msra.mxu0 0.0
  %201 = vmatpush.msra.mxu0 0.0
  %202 = vmatpush.msra.mxu0 0.0
  %203 = vmatpush.msra.mxu0 %v78
  %204 = vmatpush.msra.mxu0 %v77
  %205 = vmatpush.msra.mxu0 %v76
  %206 = vmatpush.msra.mxu0 %v75
  %207 = vmatmul.f32.gmra.mxu0 %v109
  %v208 = vpop.f32.mrf.mxu0
  %v209 = vadd.f32 0.0, %v208
  %210 = vdwg.mxu0
  %v211 = vadd.f32 %v105, %v209
  %v212 = vtanh.pop %v211
  %213 = vmatpush.msra.mxu0 0.0
  %214 = vmatpush.msra.mxu0 0.0
  %215 = vmatpush.msra.mxu0 0.0
  %216 = vmatpush.msra.mxu0 0.0
  %217 = vmatpush.msra.mxu0 0.0
  %218 = vmatpush.msra.mxu0 0.0
  %219 = vmatpush.msra.mxu0 0.0
  %220 = vmatpush.msra.mxu0 0.0
  %221 = vmatpush.msra.mxu0 0.0
  %222 = vmatpush.msra.mxu0 0.0
  %223 = vmatpush.msra.mxu0 0.0
  %224 = vmatpush.msra.mxu0 0.0
  %225 = vmatpush.msra.mxu0 %v82
  %226 = vmatpush.msra.mxu0 %v81
  %227 = vmatpush.msra.mxu0 %v80
  %228 = vmatpush.msra.mxu0 %v79
  %229 = vmatmul.f32.gmra.mxu0 %v109
  %v230 = vpop.f32.mrf.mxu0
  %v231 = vadd.f32 0.0, %v230
  %232 = vdwg.mxu0
  %v233 = vadd.f32 %v106, %v231
  %v234 = vxor.u32 %v233, 2147483648
  %v235 = vmul.f32 %v234, 1.442695
  %v236 = vpow.pop %v235
  %v237 = vadd.f32 %v236, 1.0
  %v238 = vrcp.pop %v237
  %v239 = vmul.f32 %v237, %v238
  %v240 = vsub.f32 1.0, %v239
  %v241 = vmul.f32 %v238, %v240
  %v242 = vadd.f32 %v238, %v241
  %vm243 = vweird.f32 %v237
  %vm244 = vweird.f32 %v238
  %vm245 = vmor %vm243, %vm244
  %v246 = vsel %vm245, %v238, %v242
  %v247 = vand.u32 2147483647, %v237
  %vm248 = vcmp.eq.f32.partialorder %v247, 8.507059e+37
  %v249 = vand.u32 %v237, 2147483648
  %v250 = vor.u32 1.1754944e-38, %v249
  %v251 = vsel %vm248, %v250, %v246
  %v252 = vmul.f32 1.0, %v251
  %v253 = vmul.f32 %v190, %v100
  %v254 = vmul.f32 %v150, %v212
  %v255 = vadd.f32 %v253, %v254
  %v256 = vtanh.pop %v255
  %v257 = vmul.f32 %v252, %v256
  %vm258 = vcmask 254976
  %259 = vst.msk [vmem:[%s4] sm:$0x3] %vm258, %v257
  %s260 = scalar_lea.vmem %s47, 56
  %v261 = vld [vmem:[%s260] sm:$0x3]
  %v262 = vld [vmem:[%s260 + $0x2] sm:$0x3]
  %v263 = vld [vmem:[%s260 + $0x4] sm:$0x3]
  %v264 = vld [vmem:[%s260 + $0x6] sm:$0x3]
  %v266 = vsel %vm107, %v101, 0
  %268 = vmatpush.msra.mxu0 0.0
  %269 = vmatpush.msra.mxu0 0.0
  %270 = vmatpush.msra.mxu0 0.0
  %271 = vmatpush.msra.mxu0 0.0
  %272 = vmatpush.msra.mxu0 0.0
  %273 = vmatpush.msra.mxu0 0.0
  %274 = vmatpush.msra.mxu0 0.0
  %275 = vmatpush.msra.mxu0 0.0
  %276 = vmatpush.msra.mxu0 0.0
  %277 = vmatpush.msra.mxu0 0.0
  %278 = vmatpush.msra.mxu0 0.0
  %279 = vmatpush.msra.mxu0 0.0
  %280 = vmatpush.msra.mxu0 %v86
  %281 = vmatpush.msra.mxu0 %v85
  %282 = vmatpush.msra.mxu0 %v84
  %283 = vmatpush.msra.mxu0 %v83
  %284 = vmatmul.f32.gmra.mxu0 %v266
  %v285 = vpop.f32.mrf.mxu0
  %v286 = vadd.f32 0.0, %v285
  %287 = vdwg.mxu0
  %v288 = vadd.f32 %v261, %v286
  %v289 = vxor.u32 %v288, 2147483648
  %v290 = vmul.f32 %v289, 1.442695
  %v291 = vpow.pop %v290
  %v292 = vadd.f32 %v291, 1.0
  %v293 = vrcp.pop %v292
  %v294 = vmul.f32 %v292, %v293
  %v295 = vsub.f32 1.0, %v294
  %v296 = vmul.f32 %v293, %v295
  %v297 = vadd.f32 %v293, %v296
  %vm298 = vweird.f32 %v292
  %vm299 = vweird.f32 %v293
  %vm300 = vmor %vm298, %vm299
  %v301 = vsel %vm300, %v293, %v297
  %v302 = vand.u32 2147483647, %v292
  %vm303 = vcmp.eq.f32.partialorder %v302, 8.507059e+37
  %v304 = vand.u32 %v292, 2147483648
  %v305 = vor.u32 1.1754944e-38, %v304
  %v306 = vsel %vm303, %v305, %v301
  %v307 = vmul.f32 1.0, %v306
  %308 = vmatpush.msra.mxu0 0.0
  %309 = vmatpush.msra.mxu0 0.0
  %310 = vmatpush.msra.mxu0 0.0
  %311 = vmatpush.msra.mxu0 0.0
  %312 = vmatpush.msra.mxu0 0.0
  %313 = vmatpush.msra.mxu0 0.0
  %314 = vmatpush.msra.mxu0 0.0
  %315 = vmatpush.msra.mxu0 0.0
  %316 = vmatpush.msra.mxu0 0.0
  %317 = vmatpush.msra.mxu0 0.0
  %318 = vmatpush.msra.mxu0 0.0
  %319 = vmatpush.msra.mxu0 0.0
  %320 = vmatpush.msra.mxu0 %v90
  %321 = vmatpush.msra.mxu0 %v89
  %322 = vmatpush.msra.mxu0 %v88
  %323 = vmatpush.msra.mxu0 %v87
  %324 = vmatmul.f32.gmra.mxu0 %v266
  %v325 = vpop.f32.mrf.mxu0
  %v326 = vadd.f32 0.0, %v325
  %327 = vdwg.mxu0
  %v328 = vadd.f32 %v262, %v326
  %v329 = vxor.u32 %v328, 2147483648
  %v330 = vmul.f32 %v329, 1.442695
  %v331 = vpow.pop %v330
  %v332 = vadd.f32 %v331, 1.0
  %v333 = vrcp.pop %v332
  %v334 = vmul.f32 %v332, %v333
  %v335 = vsub.f32 1.0, %v334
  %v336 = vmul.f32 %v333, %v335
  %v337 = vadd.f32 %v333, %v336
  %vm338 = vweird.f32 %v332
  %vm339 = vweird.f32 %v333
  %vm340 = vmor %vm338, %vm339
  %v341 = vsel %vm340, %v333, %v337
  %v342 = vand.u32 2147483647, %v332
  %vm343 = vcmp.eq.f32.partialorder %v342, 8.507059e+37
  %v344 = vand.u32 %v332, 2147483648
  %v345 = vor.u32 1.1754944e-38, %v344
  %v346 = vsel %vm343, %v345, %v341
  %v347 = vmul.f32 1.0, %v346
  %348 = vmatpush.msra.mxu0 0.0
  %349 = vmatpush.msra.mxu0 0.0
  %350 = vmatpush.msra.mxu0 0.0
  %351 = vmatpush.msra.mxu0 0.0
  %352 = vmatpush.msra.mxu0 0.0
  %353 = vmatpush.msra.mxu0 0.0
  %354 = vmatpush.msra.mxu0 0.0
  %355 = vmatpush.msra.mxu0 0.0
  %356 = vmatpush.msra.mxu0 0.0
  %357 = vmatpush.msra.mxu0 0.0
  %358 = vmatpush.msra.mxu0 0.0
  %359 = vmatpush.msra.mxu0 0.0
  %360 = vmatpush.msra.mxu0 %v94
  %361 = vmatpush.msra.mxu0 %v93
  %362 = vmatpush.msra.mxu0 %v92
  %363 = vmatpush.msra.mxu0 %v91
  %364 = vmatmul.f32.gmra.mxu0 %v266
  %v365 = vpop.f32.mrf.mxu0
  %v366 = vadd.f32 0.0, %v365
  %367 = vdwg.mxu0
  %v368 = vadd.f32 %v263, %v366
  %v369 = vtanh.pop %v368
  %370 = vmatpush.msra.mxu0 0.0
  %371 = vmatpush.msra.mxu0 0.0
  %372 = vmatpush.msra.mxu0 0.0
  %373 = vmatpush.msra.mxu0 0.0
  %374 = vmatpush.msra.mxu0 0.0
  %375 = vmatpush.msra.mxu0 0.0
  %376 = vmatpush.msra.mxu0 0.0
  %377 = vmatpush.msra.mxu0 0.0
  %378 = vmatpush.msra.mxu0 0.0
  %379 = vmatpush.msra.mxu0 0.0
  %380 = vmatpush.msra.mxu0 0.0
  %381 = vmatpush.msra.mxu0 0.0
  %382 = vmatpush.msra.mxu0 %v98
  %383 = vmatpush.msra.mxu0 %v97
  %384 = vmatpush.msra.mxu0 %v96
  %385 = vmatpush.msra.mxu0 %v95
  %386 = vmatmul.f32.gmra.mxu0 %v266
  %v387 = vpop.f32.mrf.mxu0
  %v388 = vadd.f32 0.0, %v387
  %389 = vdwg.mxu0
  %v390 = vadd.f32 %v264, %v388
  %v391 = vxor.u32 %v390, 2147483648
  %v392 = vmul.f32 %v391, 1.442695
  %v393 = vpow.pop %v392
  %v394 = vadd.f32 %v393, 1.0
  %v395 = vrcp.pop %v394
  %v396 = vmul.f32 %v394, %v395
  %v397 = vsub.f32 1.0, %v396
  %v398 = vmul.f32 %v395, %v397
  %v399 = vadd.f32 %v395, %v398
  %vm400 = vweird.f32 %v394
  %vm401 = vweird.f32 %v395
  %vm402 = vmor %vm400, %vm401
  %v403 = vsel %vm402, %v395, %v399
  %v404 = vand.u32 2147483647, %v394
  %vm405 = vcmp.eq.f32.partialorder %v404, 8.507059e+37
  %v406 = vand.u32 %v394, 2147483648
  %v407 = vor.u32 1.1754944e-38, %v406
  %v408 = vsel %vm405, %v407, %v403
  %v409 = vmul.f32 1.0, %v408
  %v410 = vmul.f32 %v347, %v102
  %v411 = vmul.f32 %v307, %v369
  %v412 = vadd.f32 %v410, %v411
  %v413 = vtanh.pop %v412
  %v414 = vmul.f32 %v409, %v413
  %s415 = scalar_lea.vmem %s55, 14
  %416 = vst.msk [vmem:[%s415] sm:$0x3] %vm258, %v414
  %s417 = scalar_lea.vmem %s0, 8
  %v418 = vld [vmem:[%s417] sm:$0x3]
  %v419 = vld [vmem:[%s417 + $0x2] sm:$0x3]
  %v420 = vld [vmem:[%s417 + $0x4] sm:$0x3]
  %v421 = vld [vmem:[%s417 + $0x6] sm:$0x3]
  %v423 = vsel %vm107, %v257, 0
  %425 = vmatpush.msra.mxu0 0.0
  %426 = vmatpush.msra.mxu0 0.0
  %427 = vmatpush.msra.mxu0 0.0
  %428 = vmatpush.msra.mxu0 0.0
  %429 = vmatpush.msra.mxu0 0.0
  %430 = vmatpush.msra.mxu0 0.0
  %431 = vmatpush.msra.mxu0 0.0
  %432 = vmatpush.msra.mxu0 0.0
  %433 = vmatpush.msra.mxu0 0.0
  %434 = vmatpush.msra.mxu0 0.0
  %435 = vmatpush.msra.mxu0 0.0
  %436 = vmatpush.msra.mxu0 0.0
  %437 = vmatpush.msra.mxu0 %v70
  %438 = vmatpush.msra.mxu0 %v69
  %439 = vmatpush.msra.mxu0 %v68
  %440 = vmatpush.msra.mxu0 %v67
  %441 = vmatmul.f32.gmra.mxu0 %v423
  %v442 = vpop.f32.mrf.mxu0
  %v443 = vadd.f32 0.0, %v442
  %444 = vdwg.mxu0
  %v445 = vadd.f32 %v418, %v443
  %v446 = vxor.u32 %v445, 2147483648
  %v447 = vmul.f32 %v446, 1.442695
  %v448 = vpow.pop %v447
  %v449 = vadd.f32 %v448, 1.0
  %v450 = vrcp.pop %v449
  %v451 = vmul.f32 %v449, %v450
  %v452 = vsub.f32 1.0, %v451
  %v453 = vmul.f32 %v450, %v452
  %v454 = vadd.f32 %v450, %v453
  %vm455 = vweird.f32 %v449
  %vm456 = vweird.f32 %v450
  %vm457 = vmor %vm455, %vm456
  %v458 = vsel %vm457, %v450, %v454
  %v459 = vand.u32 2147483647, %v449
  %vm460 = vcmp.eq.f32.partialorder %v459, 8.507059e+37
  %v461 = vand.u32 %v449, 2147483648
  %v462 = vor.u32 1.1754944e-38, %v461
  %v463 = vsel %vm460, %v462, %v458
  %v464 = vmul.f32 1.0, %v463
  %465 = vmatpush.msra.mxu0 0.0
  %466 = vmatpush.msra.mxu0 0.0
  %467 = vmatpush.msra.mxu0 0.0
  %468 = vmatpush.msra.mxu0 0.0
  %469 = vmatpush.msra.mxu0 0.0
  %470 = vmatpush.msra.mxu0 0.0
  %471 = vmatpush.msra.mxu0 0.0
  %472 = vmatpush.msra.mxu0 0.0
  %473 = vmatpush.msra.mxu0 0.0
  %474 = vmatpush.msra.mxu0 0.0
  %475 = vmatpush.msra.mxu0 0.0
  %476 = vmatpush.msra.mxu0 0.0
  %477 = vmatpush.msra.mxu0 %v74
  %478 = vmatpush.msra.mxu0 %v73
  %479 = vmatpush.msra.mxu0 %v72
  %480 = vmatpush.msra.mxu0 %v71
  %481 = vmatmul.f32.gmra.mxu0 %v423
  %v482 = vpop.f32.mrf.mxu0
  %v483 = vadd.f32 0.0, %v482
  %484 = vdwg.mxu0
  %v485 = vadd.f32 %v419, %v483
  %v486 = vxor.u32 %v485, 2147483648
  %v487 = vmul.f32 %v486, 1.442695
  %v488 = vpow.pop %v487
  %v489 = vadd.f32 %v488, 1.0
  %v490 = vrcp.pop %v489
  %v491 = vmul.f32 %v489, %v490
  %v492 = vsub.f32 1.0, %v491
  %v493 = vmul.f32 %v490, %v492
  %v494 = vadd.f32 %v490, %v493
  %vm495 = vweird.f32 %v489
  %vm496 = vweird.f32 %v490
  %vm497 = vmor %vm495, %vm496
  %v498 = vsel %vm497, %v490, %v494
  %v499 = vand.u32 2147483647, %v489
  %vm500 = vcmp.eq.f32.partialorder %v499, 8.507059e+37
  %v501 = vand.u32 %v489, 2147483648
  %v502 = vor.u32 1.1754944e-38, %v501
  %v503 = vsel %vm500, %v502, %v498
  %v504 = vmul.f32 1.0, %v503
  %505 = vmatpush.msra.mxu0 0.0
  %506 = vmatpush.msra.mxu0 0.0
  %507 = vmatpush.msra.mxu0 0.0
  %508 = vmatpush.msra.mxu0 0.0
  %509 = vmatpush.msra.mxu0 0.0
  %510 = vmatpush.msra.mxu0 0.0
  %511 = vmatpush.msra.mxu0 0.0
  %512 = vmatpush.msra.mxu0 0.0
  %513 = vmatpush.msra.mxu0 0.0
  %514 = vmatpush.msra.mxu0 0.0
  %515 = vmatpush.msra.mxu0 0.0
  %516 = vmatpush.msra.mxu0 0.0
  %517 = vmatpush.msra.mxu0 %v78
  %518 = vmatpush.msra.mxu0 %v77
  %519 = vmatpush.msra.mxu0 %v76
  %520 = vmatpush.msra.mxu0 %v75
  %521 = vmatmul.f32.gmra.mxu0 %v423
  %v522 = vpop.f32.mrf.mxu0
  %v523 = vadd.f32 0.0, %v522
  %524 = vdwg.mxu0
  %v525 = vadd.f32 %v420, %v523
  %v526 = vtanh.pop %v525
  %527 = vmatpush.msra.mxu0 0.0
  %528 = vmatpush.msra.mxu0 0.0
  %529 = vmatpush.msra.mxu0 0.0
  %530 = vmatpush.msra.mxu0 0.0
  %531 = vmatpush.msra.mxu0 0.0
  %532 = vmatpush.msra.mxu0 0.0
  %533 = vmatpush.msra.mxu0 0.0
  %534 = vmatpush.msra.mxu0 0.0
  %535 = vmatpush.msra.mxu0 0.0
  %536 = vmatpush.msra.mxu0 0.0
  %537 = vmatpush.msra.mxu0 0.0
  %538 = vmatpush.msra.mxu0 0.0
  %539 = vmatpush.msra.mxu0 %v82
  %540 = vmatpush.msra.mxu0 %v81
  %541 = vmatpush.msra.mxu0 %v80
  %542 = vmatpush.msra.mxu0 %v79
  %543 = vmatmul.f32.gmra.mxu0 %v423
  %v544 = vpop.f32.mrf.mxu0
  %v545 = vadd.f32 0.0, %v544
  %546 = vdwg.mxu0
  %v547 = vadd.f32 %v421, %v545
  %v548 = vxor.u32 %v547, 2147483648
  %v549 = vmul.f32 %v548, 1.442695
  %v550 = vpow.pop %v549
  %v551 = vadd.f32 %v550, 1.0
  %v552 = vrcp.pop %v551
  %v553 = vmul.f32 %v551, %v552
  %v554 = vsub.f32 1.0, %v553
  %v555 = vmul.f32 %v552, %v554
  %v556 = vadd.f32 %v552, %v555
  %vm557 = vweird.f32 %v551
  %vm558 = vweird.f32 %v552
  %vm559 = vmor %vm557, %vm558
  %v560 = vsel %vm559, %v552, %v556
  %v561 = vand.u32 2147483647, %v551
  %vm562 = vcmp.eq.f32.partialorder %v561, 8.507059e+37
  %v563 = vand.u32 %v551, 2147483648
  %v564 = vor.u32 1.1754944e-38, %v563
  %v565 = vsel %vm562, %v564, %v560
  %v566 = vmul.f32 1.0, %v565
  %v567 = vmul.f32 %v504, %v255
  %v568 = vmul.f32 %v464, %v526
  %v569 = vadd.f32 %v567, %v568
  %v570 = vtanh.pop %v569
  %v571 = vmul.f32 %v566, %v570
  %s572 = scalar_lea.vmem %s4, 2
  %573 = vst.msk [vmem:[%s572] sm:$0x3] %vm258, %v571
  %s574 = scalar_lea.vmem %s47, 48
  %v575 = vld [vmem:[%s574] sm:$0x3]
  %v576 = vld [vmem:[%s574 + $0x2] sm:$0x3]
  %v577 = vld [vmem:[%s574 + $0x4] sm:$0x3]
  %v578 = vld [vmem:[%s574 + $0x6] sm:$0x3]
  %v580 = vsel %vm107, %v414, 0
  %582 = vmatpush.msra.mxu0 0.0
  %583 = vmatpush.msra.mxu0 0.0
  %584 = vmatpush.msra.mxu0 0.0
  %585 = vmatpush.msra.mxu0 0.0
  %586 = vmatpush.msra.mxu0 0.0
  %587 = vmatpush.msra.mxu0 0.0
  %588 = vmatpush.msra.mxu0 0.0
  %589 = vmatpush.msra.mxu0 0.0
  %590 = vmatpush.msra.mxu0 0.0
  %591 = vmatpush.msra.mxu0 0.0
  %592 = vmatpush.msra.mxu0 0.0
  %593 = vmatpush.msra.mxu0 0.0
  %594 = vmatpush.msra.mxu0 %v86
  %595 = vmatpush.msra.mxu0 %v85
  %596 = vmatpush.msra.mxu0 %v84
  %597 = vmatpush.msra.mxu0 %v83
  %598 = vmatmul.f32.gmra.mxu0 %v580
  %v599 = vpop.f32.mrf.mxu0
  %v600 = vadd.f32 0.0, %v599
  %601 = vdwg.mxu0
  %v602 = vadd.f32 %v575, %v600
  %v603 = vxor.u32 %v602, 2147483648
  %v604 = vmul.f32 %v603, 1.442695
  %v605 = vpow.pop %v604
  %v606 = vadd.f32 %v605, 1.0
  %v607 = vrcp.pop %v606
  %v608 = vmul.f32 %v606, %v607
  %v609 = vsub.f32 1.0, %v608
  %v610 = vmul.f32 %v607, %v609
  %v611 = vadd.f32 %v607, %v610
  %vm612 = vweird.f32 %v606
  %vm613 = vweird.f32 %v607
  %vm614 = vmor %vm612, %vm613
  %v615 = vsel %vm614, %v607, %v611
  %v616 = vand.u32 2147483647, %v606
  %vm617 = vcmp.eq.f32.partialorder %v616, 8.507059e+37
  %v618 = vand.u32 %v606, 2147483648
  %v619 = vor.u32 1.1754944e-38, %v618
  %v620 = vsel %vm617, %v619, %v615
  %v621 = vmul.f32 1.0, %v620
  %622 = vmatpush.msra.mxu0 0.0
  %623 = vmatpush.msra.mxu0 0.0
  %624 = vmatpush.msra.mxu0 0.0
  %625 = vmatpush.msra.mxu0 0.0
  %626 = vmatpush.msra.mxu0 0.0
  %627 = vmatpush.msra.mxu0 0.0
  %628 = vmatpush.msra.mxu0 0.0
  %629 = vmatpush.msra.mxu0 0.0
  %630 = vmatpush.msra.mxu0 0.0
  %631 = vmatpush.msra.mxu0 0.0
  %632 = vmatpush.msra.mxu0 0.0
  %633 = vmatpush.msra.mxu0 0.0
  %634 = vmatpush.msra.mxu0 %v90
  %635 = vmatpush.msra.mxu0 %v89
  %636 = vmatpush.msra.mxu0 %v88
  %637 = vmatpush.msra.mxu0 %v87
  %638 = vmatmul.f32.gmra.mxu0 %v580
  %v639 = vpop.f32.mrf.mxu0
  %v640 = vadd.f32 0.0, %v639
  %641 = vdwg.mxu0
  %v642 = vadd.f32 %v576, %v640
  %v643 = vxor.u32 %v642, 2147483648
  %v644 = vmul.f32 %v643, 1.442695
  %v645 = vpow.pop %v644
  %v646 = vadd.f32 %v645, 1.0
  %v647 = vrcp.pop %v646
  %v648 = vmul.f32 %v646, %v647
  %v649 = vsub.f32 1.0, %v648
  %v650 = vmul.f32 %v647, %v649
  %v651 = vadd.f32 %v647, %v650
  %vm652 = vweird.f32 %v646
  %vm653 = vweird.f32 %v647
  %vm654 = vmor %vm652, %vm653
  %v655 = vsel %vm654, %v647, %v651
  %v656 = vand.u32 2147483647, %v646
  %vm657 = vcmp.eq.f32.partialorder %v656, 8.507059e+37
  %v658 = vand.u32 %v646, 2147483648
  %v659 = vor.u32 1.1754944e-38, %v658
  %v660 = vsel %vm657, %v659, %v655
  %v661 = vmul.f32 1.0, %v660
  %662 = vmatpush.msra.mxu0 0.0
  %663 = vmatpush.msra.mxu0 0.0
  %664 = vmatpush.msra.mxu0 0.0
  %665 = vmatpush.msra.mxu0 0.0
  %666 = vmatpush.msra.mxu0 0.0
  %667 = vmatpush.msra.mxu0 0.0
  %668 = vmatpush.msra.mxu0 0.0
  %669 = vmatpush.msra.mxu0 0.0
  %670 = vmatpush.msra.mxu0 0.0
  %671 = vmatpush.msra.mxu0 0.0
  %672 = vmatpush.msra.mxu0 0.0
  %673 = vmatpush.msra.mxu0 0.0
  %674 = vmatpush.msra.mxu0 %v94
  %675 = vmatpush.msra.mxu0 %v93
  %676 = vmatpush.msra.mxu0 %v92
  %677 = vmatpush.msra.mxu0 %v91
  %678 = vmatmul.f32.gmra.mxu0 %v580
  %v679 = vpop.f32.mrf.mxu0
  %v680 = vadd.f32 0.0, %v679
  %681 = vdwg.mxu0
  %v682 = vadd.f32 %v577, %v680
  %v683 = vtanh.pop %v682
  %684 = vmatpush.msra.mxu0 0.0
  %685 = vmatpush.msra.mxu0 0.0
  %686 = vmatpush.msra.mxu0 0.0
  %687 = vmatpush.msra.mxu0 0.0
  %688 = vmatpush.msra.mxu0 0.0
  %689 = vmatpush.msra.mxu0 0.0
  %690 = vmatpush.msra.mxu0 0.0
  %691 = vmatpush.msra.mxu0 0.0
  %692 = vmatpush.msra.mxu0 0.0
  %693 = vmatpush.msra.mxu0 0.0
  %694 = vmatpush.msra.mxu0 0.0
  %695 = vmatpush.msra.mxu0 0.0
  %696 = vmatpush.msra.mxu0 %v98
  %697 = vmatpush.msra.mxu0 %v97
  %698 = vmatpush.msra.mxu0 %v96
  %699 = vmatpush.msra.mxu0 %v95
  %700 = vmatmul.f32.gmra.mxu0 %v580
  %v701 = vpop.f32.mrf.mxu0
  %v702 = vadd.f32 0.0, %v701
  %703 = vdwg.mxu0
  %v704 = vadd.f32 %v578, %v702
  %v705 = vxor.u32 %v704, 2147483648
  %v706 = vmul.f32 %v705, 1.442695
  %v707 = vpow.pop %v706
  %v708 = vadd.f32 %v707, 1.0
  %v709 = vrcp.pop %v708
  %v710 = vmul.f32 %v708, %v709
  %v711 = vsub.f32 1.0, %v710
  %v712 = vmul.f32 %v709, %v711
  %v713 = vadd.f32 %v709, %v712
  %vm714 = vweird.f32 %v708
  %vm715 = vweird.f32 %v709
  %vm716 = vmor %vm714, %vm715
  %v717 = vsel %vm716, %v709, %v713
  %v718 = vand.u32 2147483647, %v708
  %vm719 = vcmp.eq.f32.partialorder %v718, 8.507059e+37
  %v720 = vand.u32 %v708, 2147483648
  %v721 = vor.u32 1.1754944e-38, %v720
  %v722 = vsel %vm719, %v721, %v717
  %v723 = vmul.f32 1.0, %v722
  %v724 = vmul.f32 %v661, %v412
  %v725 = vmul.f32 %v621, %v683
  %v726 = vadd.f32 %v724, %v725
  %v727 = vtanh.pop %v726
  %v728 = vmul.f32 %v723, %v727
  %s729 = scalar_lea.vmem %s55, 12
  %730 = vst.msk [vmem:[%s729] sm:$0x3] %vm258, %v728
  %s731 = scalar_lea.vmem %s0, 16
  %v732 = vld [vmem:[%s731] sm:$0x3]
  %v733 = vld [vmem:[%s731 + $0x2] sm:$0x3]
  %v734 = vld [vmem:[%s731 + $0x4] sm:$0x3]
  %v735 = vld [vmem:[%s731 + $0x6] sm:$0x3]
  %v737 = vsel %vm107, %v571, 0
  %739 = vmatpush.msra.mxu0 0.0
  %740 = vmatpush.msra.mxu0 0.0
  %741 = vmatpush.msra.mxu0 0.0
  %742 = vmatpush.msra.mxu0 0.0
  %743 = vmatpush.msra.mxu0 0.0
  %744 = vmatpush.msra.mxu0 0.0
  %745 = vmatpush.msra.mxu0 0.0
  %746 = vmatpush.msra.mxu0 0.0
  %747 = vmatpush.msra.mxu0 0.0
  %748 = vmatpush.msra.mxu0 0.0
  %749 = vmatpush.msra.mxu0 0.0
  %750 = vmatpush.msra.mxu0 0.0
  %751 = vmatpush.msra.mxu0 %v70
  %752 = vmatpush.msra.mxu0 %v69
  %753 = vmatpush.msra.mxu0 %v68
  %754 = vmatpush.msra.mxu0 %v67
  %755 = vmatmul.f32.gmra.mxu0 %v737
  %v756 = vpop.f32.mrf.mxu0
  %v757 = vadd.f32 0.0, %v756
  %758 = vdwg.mxu0
  %v759 = vadd.f32 %v732, %v757
  %v760 = vxor.u32 %v759, 2147483648
  %v761 = vmul.f32 %v760, 1.442695
  %v762 = vpow.pop %v761
  %v763 = vadd.f32 %v762, 1.0
  %v764 = vrcp.pop %v763
  %v765 = vmul.f32 %v763, %v764
  %v766 = vsub.f32 1.0, %v765
  %v767 = vmul.f32 %v764, %v766
  %v768 = vadd.f32 %v764, %v767
  %vm769 = vweird.f32 %v763
  %vm770 = vweird.f32 %v764
  %vm771 = vmor %vm769, %vm770
  %v772 = vsel %vm771, %v764, %v768
  %v773 = vand.u32 2147483647, %v763
  %vm774 = vcmp.eq.f32.partialorder %v773, 8.507059e+37
  %v775 = vand.u32 %v763, 2147483648
  %v776 = vor.u32 1.1754944e-38, %v775
  %v777 = vsel %vm774, %v776, %v772
  %v778 = vmul.f32 1.0, %v777
  %779 = vmatpush.msra.mxu0 0.0
  %780 = vmatpush.msra.mxu0 0.0
  %781 = vmatpush.msra.mxu0 0.0
  %782 = vmatpush.msra.mxu0 0.0
  %783 = vmatpush.msra.mxu0 0.0
  %784 = vmatpush.msra.mxu0 0.0
  %785 = vmatpush.msra.mxu0 0.0
  %786 = vmatpush.msra.mxu0 0.0
  %787 = vmatpush.msra.mxu0 0.0
  %788 = vmatpush.msra.mxu0 0.0
  %789 = vmatpush.msra.mxu0 0.0
  %790 = vmatpush.msra.mxu0 0.0
  %791 = vmatpush.msra.mxu0 %v74
  %792 = vmatpush.msra.mxu0 %v73
  %793 = vmatpush.msra.mxu0 %v72
  %794 = vmatpush.msra.mxu0 %v71
  %795 = vmatmul.f32.gmra.mxu0 %v737
  %v796 = vpop.f32.mrf.mxu0
  %v797 = vadd.f32 0.0, %v796
  %798 = vdwg.mxu0
  %v799 = vadd.f32 %v733, %v797
  %v800 = vxor.u32 %v799, 2147483648
  %v801 = vmul.f32 %v800, 1.442695
  %v802 = vpow.pop %v801
  %v803 = vadd.f32 %v802, 1.0
  %v804 = vrcp.pop %v803
  %v805 = vmul.f32 %v803, %v804
  %v806 = vsub.f32 1.0, %v805
  %v807 = vmul.f32 %v804, %v806
  %v808 = vadd.f32 %v804, %v807
  %vm809 = vweird.f32 %v803
  %vm810 = vweird.f32 %v804
  %vm811 = vmor %vm809, %vm810
  %v812 = vsel %vm811, %v804, %v808
  %v813 = vand.u32 2147483647, %v803
  %vm814 = vcmp.eq.f32.partialorder %v813, 8.507059e+37
  %v815 = vand.u32 %v803, 2147483648
  %v816 = vor.u32 1.1754944e-38, %v815
  %v817 = vsel %vm814, %v816, %v812
  %v818 = vmul.f32 1.0, %v817
  %819 = vmatpush.msra.mxu0 0.0
  %820 = vmatpush.msra.mxu0 0.0
  %821 = vmatpush.msra.mxu0 0.0
  %822 = vmatpush.msra.mxu0 0.0
  %823 = vmatpush.msra.mxu0 0.0
  %824 = vmatpush.msra.mxu0 0.0
  %825 = vmatpush.msra.mxu0 0.0
  %826 = vmatpush.msra.mxu0 0.0
  %827 = vmatpush.msra.mxu0 0.0
  %828 = vmatpush.msra.mxu0 0.0
  %829 = vmatpush.msra.mxu0 0.0
  %830 = vmatpush.msra.mxu0 0.0
  %831 = vmatpush.msra.mxu0 %v78
  %832 = vmatpush.msra.mxu0 %v77
  %833 = vmatpush.msra.mxu0 %v76
  %834 = vmatpush.msra.mxu0 %v75
  %835 = vmatmul.f32.gmra.mxu0 %v737
  %v836 = vpop.f32.mrf.mxu0
  %v837 = vadd.f32 0.0, %v836
  %838 = vdwg.mxu0
  %v839 = vadd.f32 %v734, %v837
  %v840 = vtanh.pop %v839
  %841 = vmatpush.msra.mxu0 0.0
  %842 = vmatpush.msra.mxu0 0.0
  %843 = vmatpush.msra.mxu0 0.0
  %844 = vmatpush.msra.mxu0 0.0
  %845 = vmatpush.msra.mxu0 0.0
  %846 = vmatpush.msra.mxu0 0.0
  %847 = vmatpush.msra.mxu0 0.0
  %848 = vmatpush.msra.mxu0 0.0
  %849 = vmatpush.msra.mxu0 0.0
  %850 = vmatpush.msra.mxu0 0.0
  %851 = vmatpush.msra.mxu0 0.0
  %852 = vmatpush.msra.mxu0 0.0
  %853 = vmatpush.msra.mxu0 %v82
  %854 = vmatpush.msra.mxu0 %v81
  %855 = vmatpush.msra.mxu0 %v80
  %856 = vmatpush.msra.mxu0 %v79
  %857 = vmatmul.f32.gmra.mxu0 %v737
  %v858 = vpop.f32.mrf.mxu0
  %v859 = vadd.f32 0.0, %v858
  %860 = vdwg.mxu0
  %v861 = vadd.f32 %v735, %v859
  %v862 = vxor.u32 %v861, 2147483648
  %v863 = vmul.f32 %v862, 1.442695
  %v864 = vpow.pop %v863
  %v865 = vadd.f32 %v864, 1.0
  %v866 = vrcp.pop %v865
  %v867 = vmul.f32 %v865, %v866
  %v868 = vsub.f32 1.0, %v867
  %v869 = vmul.f32 %v866, %v868
  %v870 = vadd.f32 %v866, %v869
  %vm871 = vweird.f32 %v865
  %vm872 = vweird.f32 %v866
  %vm873 = vmor %vm871, %vm872
  %v874 = vsel %vm873, %v866, %v870
  %v875 = vand.u32 2147483647, %v865
  %vm876 = vcmp.eq.f32.partialorder %v875, 8.507059e+37
  %v877 = vand.u32 %v865, 2147483648
  %v878 = vor.u32 1.1754944e-38, %v877
  %v879 = vsel %vm876, %v878, %v874
  %v880 = vmul.f32 1.0, %v879
  %v881 = vmul.f32 %v818, %v569
  %v882 = vmul.f32 %v778, %v840
  %v883 = vadd.f32 %v881, %v882
  %v884 = vtanh.pop %v883
  %v885 = vmul.f32 %v880, %v884
  %s886 = scalar_lea.vmem %s4, 4
  %887 = vst.msk [vmem:[%s886] sm:$0x3] %vm258, %v885
  %s888 = scalar_lea.vmem %s47, 40
  %v889 = vld [vmem:[%s888] sm:$0x3]
  %v890 = vld [vmem:[%s888 + $0x2] sm:$0x3]
  %v891 = vld [vmem:[%s888 + $0x4] sm:$0x3]
  %v892 = vld [vmem:[%s888 + $0x6] sm:$0x3]
  %v894 = vsel %vm107, %v728, 0
  %896 = vmatpush.msra.mxu0 0.0
  %897 = vmatpush.msra.mxu0 0.0
  %898 = vmatpush.msra.mxu0 0.0
  %899 = vmatpush.msra.mxu0 0.0
  %900 = vmatpush.msra.mxu0 0.0
  %901 = vmatpush.msra.mxu0 0.0
  %902 = vmatpush.msra.mxu0 0.0
  %903 = vmatpush.msra.mxu0 0.0
  %904 = vmatpush.msra.mxu0 0.0
  %905 = vmatpush.msra.mxu0 0.0
  %906 = vmatpush.msra.mxu0 0.0
  %907 = vmatpush.msra.mxu0 0.0
  %908 = vmatpush.msra.mxu0 %v86
  %909 = vmatpush.msra.mxu0 %v85
  %910 = vmatpush.msra.mxu0 %v84
  %911 = vmatpush.msra.mxu0 %v83
  %912 = vmatmul.f32.gmra.mxu0 %v894
  %v913 = vpop.f32.mrf.mxu0
  %v914 = vadd.f32 0.0, %v913
  %915 = vdwg.mxu0
  %v916 = vadd.f32 %v889, %v914
  %v917 = vxor.u32 %v916, 2147483648
  %v918 = vmul.f32 %v917, 1.442695
  %v919 = vpow.pop %v918
  %v920 = vadd.f32 %v919, 1.0
  %v921 = vrcp.pop %v920
  %v922 = vmul.f32 %v920, %v921
  %v923 = vsub.f32 1.0, %v922
  %v924 = vmul.f32 %v921, %v923
  %v925 = vadd.f32 %v921, %v924
  %vm926 = vweird.f32 %v920
  %vm927 = vweird.f32 %v921
  %vm928 = vmor %vm926, %vm927
  %v929 = vsel %vm928, %v921, %v925
  %v930 = vand.u32 2147483647, %v920
  %vm931 = vcmp.eq.f32.partialorder %v930, 8.507059e+37
  %v932 = vand.u32 %v920, 2147483648
  %v933 = vor.u32 1.1754944e-38, %v932
  %v934 = vsel %vm931, %v933, %v929
  %v935 = vmul.f32 1.0, %v934
  %936 = vmatpush.msra.mxu0 0.0
  %937 = vmatpush.msra.mxu0 0.0
  %938 = vmatpush.msra.mxu0 0.0
  %939 = vmatpush.msra.mxu0 0.0
  %940 = vmatpush.msra.mxu0 0.0
  %941 = vmatpush.msra.mxu0 0.0
  %942 = vmatpush.msra.mxu0 0.0
  %943 = vmatpush.msra.mxu0 0.0
  %944 = vmatpush.msra.mxu0 0.0
  %945 = vmatpush.msra.mxu0 0.0
  %946 = vmatpush.msra.mxu0 0.0
  %947 = vmatpush.msra.mxu0 0.0
  %948 = vmatpush.msra.mxu0 %v90
  %949 = vmatpush.msra.mxu0 %v89
  %950 = vmatpush.msra.mxu0 %v88
  %951 = vmatpush.msra.mxu0 %v87
  %952 = vmatmul.f32.gmra.mxu0 %v894
  %v953 = vpop.f32.mrf.mxu0
  %v954 = vadd.f32 0.0, %v953
  %955 = vdwg.mxu0
  %v956 = vadd.f32 %v890, %v954
  %v957 = vxor.u32 %v956, 2147483648
  %v958 = vmul.f32 %v957, 1.442695
  %v959 = vpow.pop %v958
  %v960 = vadd.f32 %v959, 1.0
  %v961 = vrcp.pop %v960
  %v962 = vmul.f32 %v960, %v961
  %v963 = vsub.f32 1.0, %v962
  %v964 = vmul.f32 %v961, %v963
  %v965 = vadd.f32 %v961, %v964
  %vm966 = vweird.f32 %v960
  %vm967 = vweird.f32 %v961
  %vm968 = vmor %vm966, %vm967
  %v969 = vsel %vm968, %v961, %v965
  %v970 = vand.u32 2147483647, %v960
  %vm971 = vcmp.eq.f32.partialorder %v970, 8.507059e+37
  %v972 = vand.u32 %v960, 2147483648
  %v973 = vor.u32 1.1754944e-38, %v972
  %v974 = vsel %vm971, %v973, %v969
  %v975 = vmul.f32 1.0, %v974
  %976 = vmatpush.msra.mxu0 0.0
  %977 = vmatpush.msra.mxu0 0.0
  %978 = vmatpush.msra.mxu0 0.0
  %979 = vmatpush.msra.mxu0 0.0
  %980 = vmatpush.msra.mxu0 0.0
  %981 = vmatpush.msra.mxu0 0.0
  %982 = vmatpush.msra.mxu0 0.0
  %983 = vmatpush.msra.mxu0 0.0
  %984 = vmatpush.msra.mxu0 0.0
  %985 = vmatpush.msra.mxu0 0.0
  %986 = vmatpush.msra.mxu0 0.0
  %987 = vmatpush.msra.mxu0 0.0
  %988 = vmatpush.msra.mxu0 %v94
  %989 = vmatpush.msra.mxu0 %v93
  %990 = vmatpush.msra.mxu0 %v92
  %991 = vmatpush.msra.mxu0 %v91
  %992 = vmatmul.f32.gmra.mxu0 %v894
  %v993 = vpop.f32.mrf.mxu0
  %v994 = vadd.f32 0.0, %v993
  %995 = vdwg.mxu0
  %v996 = vadd.f32 %v891, %v994
  %v997 = vtanh.pop %v996
  %998 = vmatpush.msra.mxu0 0.0
  %999 = vmatpush.msra.mxu0 0.0
  %1000 = vmatpush.msra.mxu0 0.0
  %1001 = vmatpush.msra.mxu0 0.0
  %1002 = vmatpush.msra.mxu0 0.0
  %1003 = vmatpush.msra.mxu0 0.0
  %1004 = vmatpush.msra.mxu0 0.0
  %1005 = vmatpush.msra.mxu0 0.0
  %1006 = vmatpush.msra.mxu0 0.0
  %1007 = vmatpush.msra.mxu0 0.0
  %1008 = vmatpush.msra.mxu0 0.0
  %1009 = vmatpush.msra.mxu0 0.0
  %1010 = vmatpush.msra.mxu0 %v98
  %1011 = vmatpush.msra.mxu0 %v97
  %1012 = vmatpush.msra.mxu0 %v96
  %1013 = vmatpush.msra.mxu0 %v95
  %1014 = vmatmul.f32.gmra.mxu0 %v894
  %v1015 = vpop.f32.mrf.mxu0
  %v1016 = vadd.f32 0.0, %v1015
  %1017 = vdwg.mxu0
  %v1018 = vadd.f32 %v892, %v1016
  %v1019 = vxor.u32 %v1018, 2147483648
  %v1020 = vmul.f32 %v1019, 1.442695
  %v1021 = vpow.pop %v1020
  %v1022 = vadd.f32 %v1021, 1.0
  %v1023 = vrcp.pop %v1022
  %v1024 = vmul.f32 %v1022, %v1023
  %v1025 = vsub.f32 1.0, %v1024
  %v1026 = vmul.f32 %v1023, %v1025
  %v1027 = vadd.f32 %v1023, %v1026
  %vm1028 = vweird.f32 %v1022
  %vm1029 = vweird.f32 %v1023
  %vm1030 = vmor %vm1028, %vm1029
  %v1031 = vsel %vm1030, %v1023, %v1027
  %v1032 = vand.u32 2147483647, %v1022
  %vm1033 = vcmp.eq.f32.partialorder %v1032, 8.507059e+37
  %v1034 = vand.u32 %v1022, 2147483648
  %v1035 = vor.u32 1.1754944e-38, %v1034
  %v1036 = vsel %vm1033, %v1035, %v1031
  %v1037 = vmul.f32 1.0, %v1036
  %v1038 = vmul.f32 %v975, %v726
  %v1039 = vmul.f32 %v935, %v997
  %v1040 = vadd.f32 %v1038, %v1039
  %v1041 = vtanh.pop %v1040
  %v1042 = vmul.f32 %v1037, %v1041
  %s1043 = scalar_lea.vmem %s55, 10
  %1044 = vst.msk [vmem:[%s1043] sm:$0x3] %vm258, %v1042
  %s1045 = scalar_lea.vmem %s0, 24
  %v1046 = vld [vmem:[%s1045] sm:$0x3]
  %v1047 = vld [vmem:[%s1045 + $0x2] sm:$0x3]
  %v1048 = vld [vmem:[%s1045 + $0x4] sm:$0x3]
  %v1049 = vld [vmem:[%s1045 + $0x6] sm:$0x3]
  %v1051 = vsel %vm107, %v885, 0
  %1053 = vmatpush.msra.mxu0 0.0
  %1054 = vmatpush.msra.mxu0 0.0
  %1055 = vmatpush.msra.mxu0 0.0
  %1056 = vmatpush.msra.mxu0 0.0
  %1057 = vmatpush.msra.mxu0 0.0
  %1058 = vmatpush.msra.mxu0 0.0
  %1059 = vmatpush.msra.mxu0 0.0
  %1060 = vmatpush.msra.mxu0 0.0
  %1061 = vmatpush.msra.mxu0 0.0
  %1062 = vmatpush.msra.mxu0 0.0
  %1063 = vmatpush.msra.mxu0 0.0
  %1064 = vmatpush.msra.mxu0 0.0
  %1065 = vmatpush.msra.mxu0 %v70
  %1066 = vmatpush.msra.mxu0 %v69
  %1067 = vmatpush.msra.mxu0 %v68
  %1068 = vmatpush.msra.mxu0 %v67
  %1069 = vmatmul.f32.gmra.mxu0 %v1051
  %v1070 = vpop.f32.mrf.mxu0
  %v1071 = vadd.f32 0.0, %v1070
  %1072 = vdwg.mxu0
  %v1073 = vadd.f32 %v1046, %v1071
  %v1074 = vxor.u32 %v1073, 2147483648
  %v1075 = vmul.f32 %v1074, 1.442695
  %v1076 = vpow.pop %v1075
  %v1077 = vadd.f32 %v1076, 1.0
  %v1078 = vrcp.pop %v1077
  %v1079 = vmul.f32 %v1077, %v1078
  %v1080 = vsub.f32 1.0, %v1079
  %v1081 = vmul.f32 %v1078, %v1080
  %v1082 = vadd.f32 %v1078, %v1081
  %vm1083 = vweird.f32 %v1077
  %vm1084 = vweird.f32 %v1078
  %vm1085 = vmor %vm1083, %vm1084
  %v1086 = vsel %vm1085, %v1078, %v1082
  %v1087 = vand.u32 2147483647, %v1077
  %vm1088 = vcmp.eq.f32.partialorder %v1087, 8.507059e+37
  %v1089 = vand.u32 %v1077, 2147483648
  %v1090 = vor.u32 1.1754944e-38, %v1089
  %v1091 = vsel %vm1088, %v1090, %v1086
  %v1092 = vmul.f32 1.0, %v1091
  %1093 = vmatpush.msra.mxu0 0.0
  %1094 = vmatpush.msra.mxu0 0.0
  %1095 = vmatpush.msra.mxu0 0.0
  %1096 = vmatpush.msra.mxu0 0.0
  %1097 = vmatpush.msra.mxu0 0.0
  %1098 = vmatpush.msra.mxu0 0.0
  %1099 = vmatpush.msra.mxu0 0.0
  %1100 = vmatpush.msra.mxu0 0.0
  %1101 = vmatpush.msra.mxu0 0.0
  %1102 = vmatpush.msra.mxu0 0.0
  %1103 = vmatpush.msra.mxu0 0.0
  %1104 = vmatpush.msra.mxu0 0.0
  %1105 = vmatpush.msra.mxu0 %v74
  %1106 = vmatpush.msra.mxu0 %v73
  %1107 = vmatpush.msra.mxu0 %v72
  %1108 = vmatpush.msra.mxu0 %v71
  %1109 = vmatmul.f32.gmra.mxu0 %v1051
  %v1110 = vpop.f32.mrf.mxu0
  %v1111 = vadd.f32 0.0, %v1110
  %1112 = vdwg.mxu0
  %v1113 = vadd.f32 %v1047, %v1111
  %v1114 = vxor.u32 %v1113, 2147483648
  %v1115 = vmul.f32 %v1114, 1.442695
  %v1116 = vpow.pop %v1115
  %v1117 = vadd.f32 %v1116, 1.0
  %v1118 = vrcp.pop %v1117
  %v1119 = vmul.f32 %v1117, %v1118
  %v1120 = vsub.f32 1.0, %v1119
  %v1121 = vmul.f32 %v1118, %v1120
  %v1122 = vadd.f32 %v1118, %v1121
  %vm1123 = vweird.f32 %v1117
  %vm1124 = vweird.f32 %v1118
  %vm1125 = vmor %vm1123, %vm1124
  %v1126 = vsel %vm1125, %v1118, %v1122
  %v1127 = vand.u32 2147483647, %v1117
  %vm1128 = vcmp.eq.f32.partialorder %v1127, 8.507059e+37
  %v1129 = vand.u32 %v1117, 2147483648
  %v1130 = vor.u32 1.1754944e-38, %v1129
  %v1131 = vsel %vm1128, %v1130, %v1126
  %v1132 = vmul.f32 1.0, %v1131
  %1133 = vmatpush.msra.mxu0 0.0
  %1134 = vmatpush.msra.mxu0 0.0
  %1135 = vmatpush.msra.mxu0 0.0
  %1136 = vmatpush.msra.mxu0 0.0
  %1137 = vmatpush.msra.mxu0 0.0
  %1138 = vmatpush.msra.mxu0 0.0
  %1139 = vmatpush.msra.mxu0 0.0
  %1140 = vmatpush.msra.mxu0 0.0
  %1141 = vmatpush.msra.mxu0 0.0
  %1142 = vmatpush.msra.mxu0 0.0
  %1143 = vmatpush.msra.mxu0 0.0
  %1144 = vmatpush.msra.mxu0 0.0
  %1145 = vmatpush.msra.mxu0 %v78
  %1146 = vmatpush.msra.mxu0 %v77
  %1147 = vmatpush.msra.mxu0 %v76
  %1148 = vmatpush.msra.mxu0 %v75
  %1149 = vmatmul.f32.gmra.mxu0 %v1051
  %v1150 = vpop.f32.mrf.mxu0
  %v1151 = vadd.f32 0.0, %v1150
  %1152 = vdwg.mxu0
  %v1153 = vadd.f32 %v1048, %v1151
  %v1154 = vtanh.pop %v1153
  %1155 = vmatpush.msra.mxu0 0.0
  %1156 = vmatpush.msra.mxu0 0.0
  %1157 = vmatpush.msra.mxu0 0.0
  %1158 = vmatpush.msra.mxu0 0.0
  %1159 = vmatpush.msra.mxu0 0.0
  %1160 = vmatpush.msra.mxu0 0.0
  %1161 = vmatpush.msra.mxu0 0.0
  %1162 = vmatpush.msra.mxu0 0.0
  %1163 = vmatpush.msra.mxu0 0.0
  %1164 = vmatpush.msra.mxu0 0.0
  %1165 = vmatpush.msra.mxu0 0.0
  %1166 = vmatpush.msra.mxu0 0.0
  %1167 = vmatpush.msra.mxu0 %v82
  %1168 = vmatpush.msra.mxu0 %v81
  %1169 = vmatpush.msra.mxu0 %v80
  %1170 = vmatpush.msra.mxu0 %v79
  %1171 = vmatmul.f32.gmra.mxu0 %v1051
  %v1172 = vpop.f32.mrf.mxu0
  %v1173 = vadd.f32 0.0, %v1172
  %1174 = vdwg.mxu0
  %v1175 = vadd.f32 %v1049, %v1173
  %v1176 = vxor.u32 %v1175, 2147483648
  %v1177 = vmul.f32 %v1176, 1.442695
  %v1178 = vpow.pop %v1177
  %v1179 = vadd.f32 %v1178, 1.0
  %v1180 = vrcp.pop %v1179
  %v1181 = vmul.f32 %v1179, %v1180
  %v1182 = vsub.f32 1.0, %v1181
  %v1183 = vmul.f32 %v1180, %v1182
  %v1184 = vadd.f32 %v1180, %v1183
  %vm1185 = vweird.f32 %v1179
  %vm1186 = vweird.f32 %v1180
  %vm1187 = vmor %vm1185, %vm1186
  %v1188 = vsel %vm1187, %v1180, %v1184
  %v1189 = vand.u32 2147483647, %v1179
  %vm1190 = vcmp.eq.f32.partialorder %v1189, 8.507059e+37
  %v1191 = vand.u32 %v1179, 2147483648
  %v1192 = vor.u32 1.1754944e-38, %v1191
  %v1193 = vsel %vm1190, %v1192, %v1188
  %v1194 = vmul.f32 1.0, %v1193
  %v1195 = vmul.f32 %v1132, %v883
  %v1196 = vmul.f32 %v1092, %v1154
  %v1197 = vadd.f32 %v1195, %v1196
  %v1198 = vtanh.pop %v1197
  %v1199 = vmul.f32 %v1194, %v1198
  %s1200 = scalar_lea.vmem %s4, 6
  %1201 = vst.msk [vmem:[%s1200] sm:$0x3] %vm258, %v1199
  %s1202 = scalar_lea.vmem %s47, 32
  %v1203 = vld [vmem:[%s1202] sm:$0x3]
  %v1204 = vld [vmem:[%s1202 + $0x2] sm:$0x3]
  %v1205 = vld [vmem:[%s1202 + $0x4] sm:$0x3]
  %v1206 = vld [vmem:[%s1202 + $0x6] sm:$0x3]
  %v1208 = vsel %vm107, %v1042, 0
  %1210 = vmatpush.msra.mxu0 0.0
  %1211 = vmatpush.msra.mxu0 0.0
  %1212 = vmatpush.msra.mxu0 0.0
  %1213 = vmatpush.msra.mxu0 0.0
  %1214 = vmatpush.msra.mxu0 0.0
  %1215 = vmatpush.msra.mxu0 0.0
  %1216 = vmatpush.msra.mxu0 0.0
  %1217 = vmatpush.msra.mxu0 0.0
  %1218 = vmatpush.msra.mxu0 0.0
  %1219 = vmatpush.msra.mxu0 0.0
  %1220 = vmatpush.msra.mxu0 0.0
  %1221 = vmatpush.msra.mxu0 0.0
  %1222 = vmatpush.msra.mxu0 %v86
  %1223 = vmatpush.msra.mxu0 %v85
  %1224 = vmatpush.msra.mxu0 %v84
  %1225 = vmatpush.msra.mxu0 %v83
  %1226 = vmatmul.f32.gmra.mxu0 %v1208
  %v1227 = vpop.f32.mrf.mxu0
  %v1228 = vadd.f32 0.0, %v1227
  %1229 = vdwg.mxu0
  %v1230 = vadd.f32 %v1203, %v1228
  %v1231 = vxor.u32 %v1230, 2147483648
  %v1232 = vmul.f32 %v1231, 1.442695
  %v1233 = vpow.pop %v1232
  %v1234 = vadd.f32 %v1233, 1.0
  %v1235 = vrcp.pop %v1234
  %v1236 = vmul.f32 %v1234, %v1235
  %v1237 = vsub.f32 1.0, %v1236
  %v1238 = vmul.f32 %v1235, %v1237
  %v1239 = vadd.f32 %v1235, %v1238
  %vm1240 = vweird.f32 %v1234
  %vm1241 = vweird.f32 %v1235
  %vm1242 = vmor %vm1240, %vm1241
  %v1243 = vsel %vm1242, %v1235, %v1239
  %v1244 = vand.u32 2147483647, %v1234
  %vm1245 = vcmp.eq.f32.partialorder %v1244, 8.507059e+37
  %v1246 = vand.u32 %v1234, 2147483648
  %v1247 = vor.u32 1.1754944e-38, %v1246
  %v1248 = vsel %vm1245, %v1247, %v1243
  %v1249 = vmul.f32 1.0, %v1248
  %1250 = vmatpush.msra.mxu0 0.0
  %1251 = vmatpush.msra.mxu0 0.0
  %1252 = vmatpush.msra.mxu0 0.0
  %1253 = vmatpush.msra.mxu0 0.0
  %1254 = vmatpush.msra.mxu0 0.0
  %1255 = vmatpush.msra.mxu0 0.0
  %1256 = vmatpush.msra.mxu0 0.0
  %1257 = vmatpush.msra.mxu0 0.0
  %1258 = vmatpush.msra.mxu0 0.0
  %1259 = vmatpush.msra.mxu0 0.0
  %1260 = vmatpush.msra.mxu0 0.0
  %1261 = vmatpush.msra.mxu0 0.0
  %1262 = vmatpush.msra.mxu0 %v90
  %1263 = vmatpush.msra.mxu0 %v89
  %1264 = vmatpush.msra.mxu0 %v88
  %1265 = vmatpush.msra.mxu0 %v87
  %1266 = vmatmul.f32.gmra.mxu0 %v1208
  %v1267 = vpop.f32.mrf.mxu0
  %v1268 = vadd.f32 0.0, %v1267
  %1269 = vdwg.mxu0
  %v1270 = vadd.f32 %v1204, %v1268
  %v1271 = vxor.u32 %v1270, 2147483648
  %v1272 = vmul.f32 %v1271, 1.442695
  %v1273 = vpow.pop %v1272
  %v1274 = vadd.f32 %v1273, 1.0
  %v1275 = vrcp.pop %v1274
  %v1276 = vmul.f32 %v1274, %v1275
  %v1277 = vsub.f32 1.0, %v1276
  %v1278 = vmul.f32 %v1275, %v1277
  %v1279 = vadd.f32 %v1275, %v1278
  %vm1280 = vweird.f32 %v1274
  %vm1281 = vweird.f32 %v1275
  %vm1282 = vmor %vm1280, %vm1281
  %v1283 = vsel %vm1282, %v1275, %v1279
  %v1284 = vand.u32 2147483647, %v1274
  %vm1285 = vcmp.eq.f32.partialorder %v1284, 8.507059e+37
  %v1286 = vand.u32 %v1274, 2147483648
  %v1287 = vor.u32 1.1754944e-38, %v1286
  %v1288 = vsel %vm1285, %v1287, %v1283
  %v1289 = vmul.f32 1.0, %v1288
  %1290 = vmatpush.msra.mxu0 0.0
  %1291 = vmatpush.msra.mxu0 0.0
  %1292 = vmatpush.msra.mxu0 0.0
  %1293 = vmatpush.msra.mxu0 0.0
  %1294 = vmatpush.msra.mxu0 0.0
  %1295 = vmatpush.msra.mxu0 0.0
  %1296 = vmatpush.msra.mxu0 0.0
  %1297 = vmatpush.msra.mxu0 0.0
  %1298 = vmatpush.msra.mxu0 0.0
  %1299 = vmatpush.msra.mxu0 0.0
  %1300 = vmatpush.msra.mxu0 0.0
  %1301 = vmatpush.msra.mxu0 0.0
  %1302 = vmatpush.msra.mxu0 %v94
  %1303 = vmatpush.msra.mxu0 %v93
  %1304 = vmatpush.msra.mxu0 %v92
  %1305 = vmatpush.msra.mxu0 %v91
  %1306 = vmatmul.f32.gmra.mxu0 %v1208
  %v1307 = vpop.f32.mrf.mxu0
  %v1308 = vadd.f32 0.0, %v1307
  %1309 = vdwg.mxu0
  %v1310 = vadd.f32 %v1205, %v1308
  %v1311 = vtanh.pop %v1310
  %1312 = vmatpush.msra.mxu0 0.0
  %1313 = vmatpush.msra.mxu0 0.0
  %1314 = vmatpush.msra.mxu0 0.0
  %1315 = vmatpush.msra.mxu0 0.0
  %1316 = vmatpush.msra.mxu0 0.0
  %1317 = vmatpush.msra.mxu0 0.0
  %1318 = vmatpush.msra.mxu0 0.0
  %1319 = vmatpush.msra.mxu0 0.0
  %1320 = vmatpush.msra.mxu0 0.0
  %1321 = vmatpush.msra.mxu0 0.0
  %1322 = vmatpush.msra.mxu0 0.0
  %1323 = vmatpush.msra.mxu0 0.0
  %1324 = vmatpush.msra.mxu0 %v98
  %1325 = vmatpush.msra.mxu0 %v97
  %1326 = vmatpush.msra.mxu0 %v96
  %1327 = vmatpush.msra.mxu0 %v95
  %1328 = vmatmul.f32.gmra.mxu0 %v1208
  %v1329 = vpop.f32.mrf.mxu0
  %v1330 = vadd.f32 0.0, %v1329
  %1331 = vdwg.mxu0
  %v1332 = vadd.f32 %v1206, %v1330
  %v1333 = vxor.u32 %v1332, 2147483648
  %v1334 = vmul.f32 %v1333, 1.442695
  %v1335 = vpow.pop %v1334
  %v1336 = vadd.f32 %v1335, 1.0
  %v1337 = vrcp.pop %v1336
  %v1338 = vmul.f32 %v1336, %v1337
  %v1339 = vsub.f32 1.0, %v1338
  %v1340 = vmul.f32 %v1337, %v1339
  %v1341 = vadd.f32 %v1337, %v1340
  %vm1342 = vweird.f32 %v1336
  %vm1343 = vweird.f32 %v1337
  %vm1344 = vmor %vm1342, %vm1343
  %v1345 = vsel %vm1344, %v1337, %v1341
  %v1346 = vand.u32 2147483647, %v1336
  %vm1347 = vcmp.eq.f32.partialorder %v1346, 8.507059e+37
  %v1348 = vand.u32 %v1336, 2147483648
  %v1349 = vor.u32 1.1754944e-38, %v1348
  %v1350 = vsel %vm1347, %v1349, %v1345
  %v1351 = vmul.f32 1.0, %v1350
  %v1352 = vmul.f32 %v1289, %v1040
  %v1353 = vmul.f32 %v1249, %v1311
  %v1354 = vadd.f32 %v1352, %v1353
  %v1355 = vtanh.pop %v1354
  %v1356 = vmul.f32 %v1351, %v1355
  %s1357 = scalar_lea.vmem %s55, 8
  %1358 = vst.msk [vmem:[%s1357] sm:$0x3] %vm258, %v1356
  %s1359 = scalar_lea.vmem %s0, 32
  %v1360 = vld [vmem:[%s1359] sm:$0x3]
  %v1361 = vld [vmem:[%s1359 + $0x2] sm:$0x3]
  %v1362 = vld [vmem:[%s1359 + $0x4] sm:$0x3]
  %v1363 = vld [vmem:[%s1359 + $0x6] sm:$0x3]
  %v1365 = vsel %vm107, %v1199, 0
  %1367 = vmatpush.msra.mxu0 0.0
  %1368 = vmatpush.msra.mxu0 0.0
  %1369 = vmatpush.msra.mxu0 0.0
  %1370 = vmatpush.msra.mxu0 0.0
  %1371 = vmatpush.msra.mxu0 0.0
  %1372 = vmatpush.msra.mxu0 0.0
  %1373 = vmatpush.msra.mxu0 0.0
  %1374 = vmatpush.msra.mxu0 0.0
  %1375 = vmatpush.msra.mxu0 0.0
  %1376 = vmatpush.msra.mxu0 0.0
  %1377 = vmatpush.msra.mxu0 0.0
  %1378 = vmatpush.msra.mxu0 0.0
  %1379 = vmatpush.msra.mxu0 %v70
  %1380 = vmatpush.msra.mxu0 %v69
  %1381 = vmatpush.msra.mxu0 %v68
  %1382 = vmatpush.msra.mxu0 %v67
  %1383 = vmatmul.f32.gmra.mxu0 %v1365
  %v1384 = vpop.f32.mrf.mxu0
  %v1385 = vadd.f32 0.0, %v1384
  %1386 = vdwg.mxu0
  %v1387 = vadd.f32 %v1360, %v1385
  %v1388 = vxor.u32 %v1387, 2147483648
  %v1389 = vmul.f32 %v1388, 1.442695
  %v1390 = vpow.pop %v1389
  %v1391 = vadd.f32 %v1390, 1.0
  %v1392 = vrcp.pop %v1391
  %v1393 = vmul.f32 %v1391, %v1392
  %v1394 = vsub.f32 1.0, %v1393
  %v1395 = vmul.f32 %v1392, %v1394
  %v1396 = vadd.f32 %v1392, %v1395
  %vm1397 = vweird.f32 %v1391
  %vm1398 = vweird.f32 %v1392
  %vm1399 = vmor %vm1397, %vm1398
  %v1400 = vsel %vm1399, %v1392, %v1396
  %v1401 = vand.u32 2147483647, %v1391
  %vm1402 = vcmp.eq.f32.partialorder %v1401, 8.507059e+37
  %v1403 = vand.u32 %v1391, 2147483648
  %v1404 = vor.u32 1.1754944e-38, %v1403
  %v1405 = vsel %vm1402, %v1404, %v1400
  %v1406 = vmul.f32 1.0, %v1405
  %1407 = vmatpush.msra.mxu0 0.0
  %1408 = vmatpush.msra.mxu0 0.0
  %1409 = vmatpush.msra.mxu0 0.0
  %1410 = vmatpush.msra.mxu0 0.0
  %1411 = vmatpush.msra.mxu0 0.0
  %1412 = vmatpush.msra.mxu0 0.0
  %1413 = vmatpush.msra.mxu0 0.0
  %1414 = vmatpush.msra.mxu0 0.0
  %1415 = vmatpush.msra.mxu0 0.0
  %1416 = vmatpush.msra.mxu0 0.0
  %1417 = vmatpush.msra.mxu0 0.0
  %1418 = vmatpush.msra.mxu0 0.0
  %1419 = vmatpush.msra.mxu0 %v74
  %1420 = vmatpush.msra.mxu0 %v73
  %1421 = vmatpush.msra.mxu0 %v72
  %1422 = vmatpush.msra.mxu0 %v71
  %1423 = vmatmul.f32.gmra.mxu0 %v1365
  %v1424 = vpop.f32.mrf.mxu0
  %v1425 = vadd.f32 0.0, %v1424
  %1426 = vdwg.mxu0
  %v1427 = vadd.f32 %v1361, %v1425
  %v1428 = vxor.u32 %v1427, 2147483648
  %v1429 = vmul.f32 %v1428, 1.442695
  %v1430 = vpow.pop %v1429
  %v1431 = vadd.f32 %v1430, 1.0
  %v1432 = vrcp.pop %v1431
  %v1433 = vmul.f32 %v1431, %v1432
  %v1434 = vsub.f32 1.0, %v1433
  %v1435 = vmul.f32 %v1432, %v1434
  %v1436 = vadd.f32 %v1432, %v1435
  %vm1437 = vweird.f32 %v1431
  %vm1438 = vweird.f32 %v1432
  %vm1439 = vmor %vm1437, %vm1438
  %v1440 = vsel %vm1439, %v1432, %v1436
  %v1441 = vand.u32 2147483647, %v1431
  %vm1442 = vcmp.eq.f32.partialorder %v1441, 8.507059e+37
  %v1443 = vand.u32 %v1431, 2147483648
  %v1444 = vor.u32 1.1754944e-38, %v1443
  %v1445 = vsel %vm1442, %v1444, %v1440
  %v1446 = vmul.f32 1.0, %v1445
  %1447 = vmatpush.msra.mxu0 0.0
  %1448 = vmatpush.msra.mxu0 0.0
  %1449 = vmatpush.msra.mxu0 0.0
  %1450 = vmatpush.msra.mxu0 0.0
  %1451 = vmatpush.msra.mxu0 0.0
  %1452 = vmatpush.msra.mxu0 0.0
  %1453 = vmatpush.msra.mxu0 0.0
  %1454 = vmatpush.msra.mxu0 0.0
  %1455 = vmatpush.msra.mxu0 0.0
  %1456 = vmatpush.msra.mxu0 0.0
  %1457 = vmatpush.msra.mxu0 0.0
  %1458 = vmatpush.msra.mxu0 0.0
  %1459 = vmatpush.msra.mxu0 %v78
  %1460 = vmatpush.msra.mxu0 %v77
  %1461 = vmatpush.msra.mxu0 %v76
  %1462 = vmatpush.msra.mxu0 %v75
  %1463 = vmatmul.f32.gmra.mxu0 %v1365
  %v1464 = vpop.f32.mrf.mxu0
  %v1465 = vadd.f32 0.0, %v1464
  %1466 = vdwg.mxu0
  %v1467 = vadd.f32 %v1362, %v1465
  %v1468 = vtanh.pop %v1467
  %1469 = vmatpush.msra.mxu0 0.0
  %1470 = vmatpush.msra.mxu0 0.0
  %1471 = vmatpush.msra.mxu0 0.0
  %1472 = vmatpush.msra.mxu0 0.0
  %1473 = vmatpush.msra.mxu0 0.0
  %1474 = vmatpush.msra.mxu0 0.0
  %1475 = vmatpush.msra.mxu0 0.0
  %1476 = vmatpush.msra.mxu0 0.0
  %1477 = vmatpush.msra.mxu0 0.0
  %1478 = vmatpush.msra.mxu0 0.0
  %1479 = vmatpush.msra.mxu0 0.0
  %1480 = vmatpush.msra.mxu0 0.0
  %1481 = vmatpush.msra.mxu0 %v82
  %1482 = vmatpush.msra.mxu0 %v81
  %1483 = vmatpush.msra.mxu0 %v80
  %1484 = vmatpush.msra.mxu0 %v79
  %1485 = vmatmul.f32.gmra.mxu0 %v1365
  %v1486 = vpop.f32.mrf.mxu0
  %v1487 = vadd.f32 0.0, %v1486
  %1488 = vdwg.mxu0
  %v1489 = vadd.f32 %v1363, %v1487
  %v1490 = vxor.u32 %v1489, 2147483648
  %v1491 = vmul.f32 %v1490, 1.442695
  %v1492 = vpow.pop %v1491
  %v1493 = vadd.f32 %v1492, 1.0
  %v1494 = vrcp.pop %v1493
  %v1495 = vmul.f32 %v1493, %v1494
  %v1496 = vsub.f32 1.0, %v1495
  %v1497 = vmul.f32 %v1494, %v1496
  %v1498 = vadd.f32 %v1494, %v1497
  %vm1499 = vweird.f32 %v1493
  %vm1500 = vweird.f32 %v1494
  %vm1501 = vmor %vm1499, %vm1500
  %v1502 = vsel %vm1501, %v1494, %v1498
  %v1503 = vand.u32 2147483647, %v1493
  %vm1504 = vcmp.eq.f32.partialorder %v1503, 8.507059e+37
  %v1505 = vand.u32 %v1493, 2147483648
  %v1506 = vor.u32 1.1754944e-38, %v1505
  %v1507 = vsel %vm1504, %v1506, %v1502
  %v1508 = vmul.f32 1.0, %v1507
  %v1509 = vmul.f32 %v1446, %v1197
  %v1510 = vmul.f32 %v1406, %v1468
  %v1511 = vadd.f32 %v1509, %v1510
  %v1512 = vtanh.pop %v1511
  %v1513 = vmul.f32 %v1508, %v1512
  %s1514 = scalar_lea.vmem %s4, 8
  %1515 = vst.msk [vmem:[%s1514] sm:$0x3] %vm258, %v1513
  %s1516 = scalar_lea.vmem %s47, 24
  %v1517 = vld [vmem:[%s1516] sm:$0x3]
  %v1518 = vld [vmem:[%s1516 + $0x2] sm:$0x3]
  %v1519 = vld [vmem:[%s1516 + $0x4] sm:$0x3]
  %v1520 = vld [vmem:[%s1516 + $0x6] sm:$0x3]
  %v1522 = vsel %vm107, %v1356, 0
  %1524 = vmatpush.msra.mxu0 0.0
  %1525 = vmatpush.msra.mxu0 0.0
  %1526 = vmatpush.msra.mxu0 0.0
  %1527 = vmatpush.msra.mxu0 0.0
  %1528 = vmatpush.msra.mxu0 0.0
  %1529 = vmatpush.msra.mxu0 0.0
  %1530 = vmatpush.msra.mxu0 0.0
  %1531 = vmatpush.msra.mxu0 0.0
  %1532 = vmatpush.msra.mxu0 0.0
  %1533 = vmatpush.msra.mxu0 0.0
  %1534 = vmatpush.msra.mxu0 0.0
  %1535 = vmatpush.msra.mxu0 0.0
  %1536 = vmatpush.msra.mxu0 %v86
  %1537 = vmatpush.msra.mxu0 %v85
  %1538 = vmatpush.msra.mxu0 %v84
  %1539 = vmatpush.msra.mxu0 %v83
  %1540 = vmatmul.f32.gmra.mxu0 %v1522
  %v1541 = vpop.f32.mrf.mxu0
  %v1542 = vadd.f32 0.0, %v1541
  %1543 = vdwg.mxu0
  %v1544 = vadd.f32 %v1517, %v1542
  %v1545 = vxor.u32 %v1544, 2147483648
  %v1546 = vmul.f32 %v1545, 1.442695
  %v1547 = vpow.pop %v1546
  %v1548 = vadd.f32 %v1547, 1.0
  %v1549 = vrcp.pop %v1548
  %v1550 = vmul.f32 %v1548, %v1549
  %v1551 = vsub.f32 1.0, %v1550
  %v1552 = vmul.f32 %v1549, %v1551
  %v1553 = vadd.f32 %v1549, %v1552
  %vm1554 = vweird.f32 %v1548
  %vm1555 = vweird.f32 %v1549
  %vm1556 = vmor %vm1554, %vm1555
  %v1557 = vsel %vm1556, %v1549, %v1553
  %v1558 = vand.u32 2147483647, %v1548
  %vm1559 = vcmp.eq.f32.partialorder %v1558, 8.507059e+37
  %v1560 = vand.u32 %v1548, 2147483648
  %v1561 = vor.u32 1.1754944e-38, %v1560
  %v1562 = vsel %vm1559, %v1561, %v1557
  %v1563 = vmul.f32 1.0, %v1562
  %1564 = vmatpush.msra.mxu0 0.0
  %1565 = vmatpush.msra.mxu0 0.0
  %1566 = vmatpush.msra.mxu0 0.0
  %1567 = vmatpush.msra.mxu0 0.0
  %1568 = vmatpush.msra.mxu0 0.0
  %1569 = vmatpush.msra.mxu0 0.0
  %1570 = vmatpush.msra.mxu0 0.0
  %1571 = vmatpush.msra.mxu0 0.0
  %1572 = vmatpush.msra.mxu0 0.0
  %1573 = vmatpush.msra.mxu0 0.0
  %1574 = vmatpush.msra.mxu0 0.0
  %1575 = vmatpush.msra.mxu0 0.0
  %1576 = vmatpush.msra.mxu0 %v90
  %1577 = vmatpush.msra.mxu0 %v89
  %1578 = vmatpush.msra.mxu0 %v88
  %1579 = vmatpush.msra.mxu0 %v87
  %1580 = vmatmul.f32.gmra.mxu0 %v1522
  %v1581 = vpop.f32.mrf.mxu0
  %v1582 = vadd.f32 0.0, %v1581
  %1583 = vdwg.mxu0
  %v1584 = vadd.f32 %v1518, %v1582
  %v1585 = vxor.u32 %v1584, 2147483648
  %v1586 = vmul.f32 %v1585, 1.442695
  %v1587 = vpow.pop %v1586
  %v1588 = vadd.f32 %v1587, 1.0
  %v1589 = vrcp.pop %v1588
  %v1590 = vmul.f32 %v1588, %v1589
  %v1591 = vsub.f32 1.0, %v1590
  %v1592 = vmul.f32 %v1589, %v1591
  %v1593 = vadd.f32 %v1589, %v1592
  %vm1594 = vweird.f32 %v1588
  %vm1595 = vweird.f32 %v1589
  %vm1596 = vmor %vm1594, %vm1595
  %v1597 = vsel %vm1596, %v1589, %v1593
  %v1598 = vand.u32 2147483647, %v1588
  %vm1599 = vcmp.eq.f32.partialorder %v1598, 8.507059e+37
  %v1600 = vand.u32 %v1588, 2147483648
  %v1601 = vor.u32 1.1754944e-38, %v1600
  %v1602 = vsel %vm1599, %v1601, %v1597
  %v1603 = vmul.f32 1.0, %v1602
  %1604 = vmatpush.msra.mxu0 0.0
  %1605 = vmatpush.msra.mxu0 0.0
  %1606 = vmatpush.msra.mxu0 0.0
  %1607 = vmatpush.msra.mxu0 0.0
  %1608 = vmatpush.msra.mxu0 0.0
  %1609 = vmatpush.msra.mxu0 0.0
  %1610 = vmatpush.msra.mxu0 0.0
  %1611 = vmatpush.msra.mxu0 0.0
  %1612 = vmatpush.msra.mxu0 0.0
  %1613 = vmatpush.msra.mxu0 0.0
  %1614 = vmatpush.msra.mxu0 0.0
  %1615 = vmatpush.msra.mxu0 0.0
  %1616 = vmatpush.msra.mxu0 %v94
  %1617 = vmatpush.msra.mxu0 %v93
  %1618 = vmatpush.msra.mxu0 %v92
  %1619 = vmatpush.msra.mxu0 %v91
  %1620 = vmatmul.f32.gmra.mxu0 %v1522
  %v1621 = vpop.f32.mrf.mxu0
  %v1622 = vadd.f32 0.0, %v1621
  %1623 = vdwg.mxu0
  %v1624 = vadd.f32 %v1519, %v1622
  %v1625 = vtanh.pop %v1624
  %1626 = vmatpush.msra.mxu0 0.0
  %1627 = vmatpush.msra.mxu0 0.0
  %1628 = vmatpush.msra.mxu0 0.0
  %1629 = vmatpush.msra.mxu0 0.0
  %1630 = vmatpush.msra.mxu0 0.0
  %1631 = vmatpush.msra.mxu0 0.0
  %1632 = vmatpush.msra.mxu0 0.0
  %1633 = vmatpush.msra.mxu0 0.0
  %1634 = vmatpush.msra.mxu0 0.0
  %1635 = vmatpush.msra.mxu0 0.0
  %1636 = vmatpush.msra.mxu0 0.0
  %1637 = vmatpush.msra.mxu0 0.0
  %1638 = vmatpush.msra.mxu0 %v98
  %1639 = vmatpush.msra.mxu0 %v97
  %1640 = vmatpush.msra.mxu0 %v96
  %1641 = vmatpush.msra.mxu0 %v95
  %1642 = vmatmul.f32.gmra.mxu0 %v1522
  %v1643 = vpop.f32.mrf.mxu0
  %v1644 = vadd.f32 0.0, %v1643
  %1645 = vdwg.mxu0
  %v1646 = vadd.f32 %v1520, %v1644
  %v1647 = vxor.u32 %v1646, 2147483648
  %v1648 = vmul.f32 %v1647, 1.442695
  %v1649 = vpow.pop %v1648
  %v1650 = vadd.f32 %v1649, 1.0
  %v1651 = vrcp.pop %v1650
  %v1652 = vmul.f32 %v1650, %v1651
  %v1653 = vsub.f32 1.0, %v1652
  %v1654 = vmul.f32 %v1651, %v1653
  %v1655 = vadd.f32 %v1651, %v1654
  %vm1656 = vweird.f32 %v1650
  %vm1657 = vweird.f32 %v1651
  %vm1658 = vmor %vm1656, %vm1657
  %v1659 = vsel %vm1658, %v1651, %v1655
  %v1660 = vand.u32 2147483647, %v1650
  %vm1661 = vcmp.eq.f32.partialorder %v1660, 8.507059e+37
  %v1662 = vand.u32 %v1650, 2147483648
  %v1663 = vor.u32 1.1754944e-38, %v1662
  %v1664 = vsel %vm1661, %v1663, %v1659
  %v1665 = vmul.f32 1.0, %v1664
  %v1666 = vmul.f32 %v1603, %v1354
  %v1667 = vmul.f32 %v1563, %v1625
  %v1668 = vadd.f32 %v1666, %v1667
  %v1669 = vtanh.pop %v1668
  %v1670 = vmul.f32 %v1665, %v1669
  %s1671 = scalar_lea.vmem %s55, 6
  %1672 = vst.msk [vmem:[%s1671] sm:$0x3] %vm258, %v1670
  %s1673 = scalar_lea.vmem %s0, 40
  %v1674 = vld [vmem:[%s1673] sm:$0x3]
  %v1675 = vld [vmem:[%s1673 + $0x2] sm:$0x3]
  %v1676 = vld [vmem:[%s1673 + $0x4] sm:$0x3]
  %v1677 = vld [vmem:[%s1673 + $0x6] sm:$0x3]
  %v1679 = vsel %vm107, %v1513, 0
  %1681 = vmatpush.msra.mxu0 0.0
  %1682 = vmatpush.msra.mxu0 0.0
  %1683 = vmatpush.msra.mxu0 0.0
  %1684 = vmatpush.msra.mxu0 0.0
  %1685 = vmatpush.msra.mxu0 0.0
  %1686 = vmatpush.msra.mxu0 0.0
  %1687 = vmatpush.msra.mxu0 0.0
  %1688 = vmatpush.msra.mxu0 0.0
  %1689 = vmatpush.msra.mxu0 0.0
  %1690 = vmatpush.msra.mxu0 0.0
  %1691 = vmatpush.msra.mxu0 0.0
  %1692 = vmatpush.msra.mxu0 0.0
  %1693 = vmatpush.msra.mxu0 %v70
  %1694 = vmatpush.msra.mxu0 %v69
  %1695 = vmatpush.msra.mxu0 %v68
  %1696 = vmatpush.msra.mxu0 %v67
  %1697 = vmatmul.f32.gmra.mxu0 %v1679
  %v1698 = vpop.f32.mrf.mxu0
  %v1699 = vadd.f32 0.0, %v1698
  %1700 = vdwg.mxu0
  %v1701 = vadd.f32 %v1674, %v1699
  %v1702 = vxor.u32 %v1701, 2147483648
  %v1703 = vmul.f32 %v1702, 1.442695
  %v1704 = vpow.pop %v1703
  %v1705 = vadd.f32 %v1704, 1.0
  %v1706 = vrcp.pop %v1705
  %v1707 = vmul.f32 %v1705, %v1706
  %v1708 = vsub.f32 1.0, %v1707
  %v1709 = vmul.f32 %v1706, %v1708
  %v1710 = vadd.f32 %v1706, %v1709
  %vm1711 = vweird.f32 %v1705
  %vm1712 = vweird.f32 %v1706
  %vm1713 = vmor %vm1711, %vm1712
  %v1714 = vsel %vm1713, %v1706, %v1710
  %v1715 = vand.u32 2147483647, %v1705
  %vm1716 = vcmp.eq.f32.partialorder %v1715, 8.507059e+37
  %v1717 = vand.u32 %v1705, 2147483648
  %v1718 = vor.u32 1.1754944e-38, %v1717
  %v1719 = vsel %vm1716, %v1718, %v1714
  %v1720 = vmul.f32 1.0, %v1719
  %1721 = vmatpush.msra.mxu0 0.0
  %1722 = vmatpush.msra.mxu0 0.0
  %1723 = vmatpush.msra.mxu0 0.0
  %1724 = vmatpush.msra.mxu0 0.0
  %1725 = vmatpush.msra.mxu0 0.0
  %1726 = vmatpush.msra.mxu0 0.0
  %1727 = vmatpush.msra.mxu0 0.0
  %1728 = vmatpush.msra.mxu0 0.0
  %1729 = vmatpush.msra.mxu0 0.0
  %1730 = vmatpush.msra.mxu0 0.0
  %1731 = vmatpush.msra.mxu0 0.0
  %1732 = vmatpush.msra.mxu0 0.0
  %1733 = vmatpush.msra.mxu0 %v74
  %1734 = vmatpush.msra.mxu0 %v73
  %1735 = vmatpush.msra.mxu0 %v72
  %1736 = vmatpush.msra.mxu0 %v71
  %1737 = vmatmul.f32.gmra.mxu0 %v1679
  %v1738 = vpop.f32.mrf.mxu0
  %v1739 = vadd.f32 0.0, %v1738
  %1740 = vdwg.mxu0
  %v1741 = vadd.f32 %v1675, %v1739
  %v1742 = vxor.u32 %v1741, 2147483648
  %v1743 = vmul.f32 %v1742, 1.442695
  %v1744 = vpow.pop %v1743
  %v1745 = vadd.f32 %v1744, 1.0
  %v1746 = vrcp.pop %v1745
  %v1747 = vmul.f32 %v1745, %v1746
  %v1748 = vsub.f32 1.0, %v1747
  %v1749 = vmul.f32 %v1746, %v1748
  %v1750 = vadd.f32 %v1746, %v1749
  %vm1751 = vweird.f32 %v1745
  %vm1752 = vweird.f32 %v1746
  %vm1753 = vmor %vm1751, %vm1752
  %v1754 = vsel %vm1753, %v1746, %v1750
  %v1755 = vand.u32 2147483647, %v1745
  %vm1756 = vcmp.eq.f32.partialorder %v1755, 8.507059e+37
  %v1757 = vand.u32 %v1745, 2147483648
  %v1758 = vor.u32 1.1754944e-38, %v1757
  %v1759 = vsel %vm1756, %v1758, %v1754
  %v1760 = vmul.f32 1.0, %v1759
  %1761 = vmatpush.msra.mxu0 0.0
  %1762 = vmatpush.msra.mxu0 0.0
  %1763 = vmatpush.msra.mxu0 0.0
  %1764 = vmatpush.msra.mxu0 0.0
  %1765 = vmatpush.msra.mxu0 0.0
  %1766 = vmatpush.msra.mxu0 0.0
  %1767 = vmatpush.msra.mxu0 0.0
  %1768 = vmatpush.msra.mxu0 0.0
  %1769 = vmatpush.msra.mxu0 0.0
  %1770 = vmatpush.msra.mxu0 0.0
  %1771 = vmatpush.msra.mxu0 0.0
  %1772 = vmatpush.msra.mxu0 0.0
  %1773 = vmatpush.msra.mxu0 %v78
  %1774 = vmatpush.msra.mxu0 %v77
  %1775 = vmatpush.msra.mxu0 %v76
  %1776 = vmatpush.msra.mxu0 %v75
  %1777 = vmatmul.f32.gmra.mxu0 %v1679
  %v1778 = vpop.f32.mrf.mxu0
  %v1779 = vadd.f32 0.0, %v1778
  %1780 = vdwg.mxu0
  %v1781 = vadd.f32 %v1676, %v1779
  %v1782 = vtanh.pop %v1781
  %1783 = vmatpush.msra.mxu0 0.0
  %1784 = vmatpush.msra.mxu0 0.0
  %1785 = vmatpush.msra.mxu0 0.0
  %1786 = vmatpush.msra.mxu0 0.0
  %1787 = vmatpush.msra.mxu0 0.0
  %1788 = vmatpush.msra.mxu0 0.0
  %1789 = vmatpush.msra.mxu0 0.0
  %1790 = vmatpush.msra.mxu0 0.0
  %1791 = vmatpush.msra.mxu0 0.0
  %1792 = vmatpush.msra.mxu0 0.0
  %1793 = vmatpush.msra.mxu0 0.0
  %1794 = vmatpush.msra.mxu0 0.0
  %1795 = vmatpush.msra.mxu0 %v82
  %1796 = vmatpush.msra.mxu0 %v81
  %1797 = vmatpush.msra.mxu0 %v80
  %1798 = vmatpush.msra.mxu0 %v79
  %1799 = vmatmul.f32.gmra.mxu0 %v1679
  %v1800 = vpop.f32.mrf.mxu0
  %v1801 = vadd.f32 0.0, %v1800
  %1802 = vdwg.mxu0
  %v1803 = vadd.f32 %v1677, %v1801
  %v1804 = vxor.u32 %v1803, 2147483648
  %v1805 = vmul.f32 %v1804, 1.442695
  %v1806 = vpow.pop %v1805
  %v1807 = vadd.f32 %v1806, 1.0
  %v1808 = vrcp.pop %v1807
  %v1809 = vmul.f32 %v1807, %v1808
  %v1810 = vsub.f32 1.0, %v1809
  %v1811 = vmul.f32 %v1808, %v1810
  %v1812 = vadd.f32 %v1808, %v1811
  %vm1813 = vweird.f32 %v1807
  %vm1814 = vweird.f32 %v1808
  %vm1815 = vmor %vm1813, %vm1814
  %v1816 = vsel %vm1815, %v1808, %v1812
  %v1817 = vand.u32 2147483647, %v1807
  %vm1818 = vcmp.eq.f32.partialorder %v1817, 8.507059e+37
  %v1819 = vand.u32 %v1807, 2147483648
  %v1820 = vor.u32 1.1754944e-38, %v1819
  %v1821 = vsel %vm1818, %v1820, %v1816
  %v1822 = vmul.f32 1.0, %v1821
  %v1823 = vmul.f32 %v1760, %v1511
  %v1824 = vmul.f32 %v1720, %v1782
  %v1825 = vadd.f32 %v1823, %v1824
  %v1826 = vtanh.pop %v1825
  %v1827 = vmul.f32 %v1822, %v1826
  %s1828 = scalar_lea.vmem %s4, 10
  %1829 = vst.msk [vmem:[%s1828] sm:$0x3] %vm258, %v1827
  %s1830 = scalar_lea.vmem %s47, 16
  %v1831 = vld [vmem:[%s1830] sm:$0x3]
  %v1832 = vld [vmem:[%s1830 + $0x2] sm:$0x3]
  %v1833 = vld [vmem:[%s1830 + $0x4] sm:$0x3]
  %v1834 = vld [vmem:[%s1830 + $0x6] sm:$0x3]
  %v1836 = vsel %vm107, %v1670, 0
  %1838 = vmatpush.msra.mxu0 0.0
  %1839 = vmatpush.msra.mxu0 0.0
  %1840 = vmatpush.msra.mxu0 0.0
  %1841 = vmatpush.msra.mxu0 0.0
  %1842 = vmatpush.msra.mxu0 0.0
  %1843 = vmatpush.msra.mxu0 0.0
  %1844 = vmatpush.msra.mxu0 0.0
  %1845 = vmatpush.msra.mxu0 0.0
  %1846 = vmatpush.msra.mxu0 0.0
  %1847 = vmatpush.msra.mxu0 0.0
  %1848 = vmatpush.msra.mxu0 0.0
  %1849 = vmatpush.msra.mxu0 0.0
  %1850 = vmatpush.msra.mxu0 %v86
  %1851 = vmatpush.msra.mxu0 %v85
  %1852 = vmatpush.msra.mxu0 %v84
  %1853 = vmatpush.msra.mxu0 %v83
  %1854 = vmatmul.f32.gmra.mxu0 %v1836
  %v1855 = vpop.f32.mrf.mxu0
  %v1856 = vadd.f32 0.0, %v1855
  %1857 = vdwg.mxu0
  %v1858 = vadd.f32 %v1831, %v1856
  %v1859 = vxor.u32 %v1858, 2147483648
  %v1860 = vmul.f32 %v1859, 1.442695
  %v1861 = vpow.pop %v1860
  %v1862 = vadd.f32 %v1861, 1.0
  %v1863 = vrcp.pop %v1862
  %v1864 = vmul.f32 %v1862, %v1863
  %v1865 = vsub.f32 1.0, %v1864
  %v1866 = vmul.f32 %v1863, %v1865
  %v1867 = vadd.f32 %v1863, %v1866
  %vm1868 = vweird.f32 %v1862
  %vm1869 = vweird.f32 %v1863
  %vm1870 = vmor %vm1868, %vm1869
  %v1871 = vsel %vm1870, %v1863, %v1867
  %v1872 = vand.u32 2147483647, %v1862
  %vm1873 = vcmp.eq.f32.partialorder %v1872, 8.507059e+37
  %v1874 = vand.u32 %v1862, 2147483648
  %v1875 = vor.u32 1.1754944e-38, %v1874
  %v1876 = vsel %vm1873, %v1875, %v1871
  %v1877 = vmul.f32 1.0, %v1876
  %1878 = vmatpush.msra.mxu0 0.0
  %1879 = vmatpush.msra.mxu0 0.0
  %1880 = vmatpush.msra.mxu0 0.0
  %1881 = vmatpush.msra.mxu0 0.0
  %1882 = vmatpush.msra.mxu0 0.0
  %1883 = vmatpush.msra.mxu0 0.0
  %1884 = vmatpush.msra.mxu0 0.0
  %1885 = vmatpush.msra.mxu0 0.0
  %1886 = vmatpush.msra.mxu0 0.0
  %1887 = vmatpush.msra.mxu0 0.0
  %1888 = vmatpush.msra.mxu0 0.0
  %1889 = vmatpush.msra.mxu0 0.0
  %1890 = vmatpush.msra.mxu0 %v90
  %1891 = vmatpush.msra.mxu0 %v89
  %1892 = vmatpush.msra.mxu0 %v88
  %1893 = vmatpush.msra.mxu0 %v87
  %1894 = vmatmul.f32.gmra.mxu0 %v1836
  %v1895 = vpop.f32.mrf.mxu0
  %v1896 = vadd.f32 0.0, %v1895
  %1897 = vdwg.mxu0
  %v1898 = vadd.f32 %v1832, %v1896
  %v1899 = vxor.u32 %v1898, 2147483648
  %v1900 = vmul.f32 %v1899, 1.442695
  %v1901 = vpow.pop %v1900
  %v1902 = vadd.f32 %v1901, 1.0
  %v1903 = vrcp.pop %v1902
  %v1904 = vmul.f32 %v1902, %v1903
  %v1905 = vsub.f32 1.0, %v1904
  %v1906 = vmul.f32 %v1903, %v1905
  %v1907 = vadd.f32 %v1903, %v1906
  %vm1908 = vweird.f32 %v1902
  %vm1909 = vweird.f32 %v1903
  %vm1910 = vmor %vm1908, %vm1909
  %v1911 = vsel %vm1910, %v1903, %v1907
  %v1912 = vand.u32 2147483647, %v1902
  %vm1913 = vcmp.eq.f32.partialorder %v1912, 8.507059e+37
  %v1914 = vand.u32 %v1902, 2147483648
  %v1915 = vor.u32 1.1754944e-38, %v1914
  %v1916 = vsel %vm1913, %v1915, %v1911
  %v1917 = vmul.f32 1.0, %v1916
  %1918 = vmatpush.msra.mxu0 0.0
  %1919 = vmatpush.msra.mxu0 0.0
  %1920 = vmatpush.msra.mxu0 0.0
  %1921 = vmatpush.msra.mxu0 0.0
  %1922 = vmatpush.msra.mxu0 0.0
  %1923 = vmatpush.msra.mxu0 0.0
  %1924 = vmatpush.msra.mxu0 0.0
  %1925 = vmatpush.msra.mxu0 0.0
  %1926 = vmatpush.msra.mxu0 0.0
  %1927 = vmatpush.msra.mxu0 0.0
  %1928 = vmatpush.msra.mxu0 0.0
  %1929 = vmatpush.msra.mxu0 0.0
  %1930 = vmatpush.msra.mxu0 %v94
  %1931 = vmatpush.msra.mxu0 %v93
  %1932 = vmatpush.msra.mxu0 %v92
  %1933 = vmatpush.msra.mxu0 %v91
  %1934 = vmatmul.f32.gmra.mxu0 %v1836
  %v1935 = vpop.f32.mrf.mxu0
  %v1936 = vadd.f32 0.0, %v1935
  %1937 = vdwg.mxu0
  %v1938 = vadd.f32 %v1833, %v1936
  %v1939 = vtanh.pop %v1938
  %1940 = vmatpush.msra.mxu0 0.0
  %1941 = vmatpush.msra.mxu0 0.0
  %1942 = vmatpush.msra.mxu0 0.0
  %1943 = vmatpush.msra.mxu0 0.0
  %1944 = vmatpush.msra.mxu0 0.0
  %1945 = vmatpush.msra.mxu0 0.0
  %1946 = vmatpush.msra.mxu0 0.0
  %1947 = vmatpush.msra.mxu0 0.0
  %1948 = vmatpush.msra.mxu0 0.0
  %1949 = vmatpush.msra.mxu0 0.0
  %1950 = vmatpush.msra.mxu0 0.0
  %1951 = vmatpush.msra.mxu0 0.0
  %1952 = vmatpush.msra.mxu0 %v98
  %1953 = vmatpush.msra.mxu0 %v97
  %1954 = vmatpush.msra.mxu0 %v96
  %1955 = vmatpush.msra.mxu0 %v95
  %1956 = vmatmul.f32.gmra.mxu0 %v1836
  %v1957 = vpop.f32.mrf.mxu0
  %v1958 = vadd.f32 0.0, %v1957
  %1959 = vdwg.mxu0
  %v1960 = vadd.f32 %v1834, %v1958
  %v1961 = vxor.u32 %v1960, 2147483648
  %v1962 = vmul.f32 %v1961, 1.442695
  %v1963 = vpow.pop %v1962
  %v1964 = vadd.f32 %v1963, 1.0
  %v1965 = vrcp.pop %v1964
  %v1966 = vmul.f32 %v1964, %v1965
  %v1967 = vsub.f32 1.0, %v1966
  %v1968 = vmul.f32 %v1965, %v1967
  %v1969 = vadd.f32 %v1965, %v1968
  %vm1970 = vweird.f32 %v1964
  %vm1971 = vweird.f32 %v1965
  %vm1972 = vmor %vm1970, %vm1971
  %v1973 = vsel %vm1972, %v1965, %v1969
  %v1974 = vand.u32 2147483647, %v1964
  %vm1975 = vcmp.eq.f32.partialorder %v1974, 8.507059e+37
  %v1976 = vand.u32 %v1964, 2147483648
  %v1977 = vor.u32 1.1754944e-38, %v1976
  %v1978 = vsel %vm1975, %v1977, %v1973
  %v1979 = vmul.f32 1.0, %v1978
  %v1980 = vmul.f32 %v1917, %v1668
  %v1981 = vmul.f32 %v1877, %v1939
  %v1982 = vadd.f32 %v1980, %v1981
  %v1983 = vtanh.pop %v1982
  %v1984 = vmul.f32 %v1979, %v1983
  %s1985 = scalar_lea.vmem %s55, 4
  %1986 = vst.msk [vmem:[%s1985] sm:$0x3] %vm258, %v1984
  %s1987 = scalar_lea.vmem %s0, 48
  %v1988 = vld [vmem:[%s1987] sm:$0x3]
  %v1989 = vld [vmem:[%s1987 + $0x2] sm:$0x3]
  %v1990 = vld [vmem:[%s1987 + $0x4] sm:$0x3]
  %v1991 = vld [vmem:[%s1987 + $0x6] sm:$0x3]
  %v1993 = vsel %vm107, %v1827, 0
  %1995 = vmatpush.msra.mxu0 0.0
  %1996 = vmatpush.msra.mxu0 0.0
  %1997 = vmatpush.msra.mxu0 0.0
  %1998 = vmatpush.msra.mxu0 0.0
  %1999 = vmatpush.msra.mxu0 0.0
  %2000 = vmatpush.msra.mxu0 0.0
  %2001 = vmatpush.msra.mxu0 0.0
  %2002 = vmatpush.msra.mxu0 0.0
  %2003 = vmatpush.msra.mxu0 0.0
  %2004 = vmatpush.msra.mxu0 0.0
  %2005 = vmatpush.msra.mxu0 0.0
  %2006 = vmatpush.msra.mxu0 0.0
  %2007 = vmatpush.msra.mxu0 %v70
  %2008 = vmatpush.msra.mxu0 %v69
  %2009 = vmatpush.msra.mxu0 %v68
  %2010 = vmatpush.msra.mxu0 %v67
  %2011 = vmatmul.f32.gmra.mxu0 %v1993
  %v2012 = vpop.f32.mrf.mxu0
  %v2013 = vadd.f32 0.0, %v2012
  %2014 = vdwg.mxu0
  %v2015 = vadd.f32 %v1988, %v2013
  %v2016 = vxor.u32 %v2015, 2147483648
  %v2017 = vmul.f32 %v2016, 1.442695
  %v2018 = vpow.pop %v2017
  %v2019 = vadd.f32 %v2018, 1.0
  %v2020 = vrcp.pop %v2019
  %v2021 = vmul.f32 %v2019, %v2020
  %v2022 = vsub.f32 1.0, %v2021
  %v2023 = vmul.f32 %v2020, %v2022
  %v2024 = vadd.f32 %v2020, %v2023
  %vm2025 = vweird.f32 %v2019
  %vm2026 = vweird.f32 %v2020
  %vm2027 = vmor %vm2025, %vm2026
  %v2028 = vsel %vm2027, %v2020, %v2024
  %v2029 = vand.u32 2147483647, %v2019
  %vm2030 = vcmp.eq.f32.partialorder %v2029, 8.507059e+37
  %v2031 = vand.u32 %v2019, 2147483648
  %v2032 = vor.u32 1.1754944e-38, %v2031
  %v2033 = vsel %vm2030, %v2032, %v2028
  %v2034 = vmul.f32 1.0, %v2033
  %2035 = vmatpush.msra.mxu0 0.0
  %2036 = vmatpush.msra.mxu0 0.0
  %2037 = vmatpush.msra.mxu0 0.0
  %2038 = vmatpush.msra.mxu0 0.0
  %2039 = vmatpush.msra.mxu0 0.0
  %2040 = vmatpush.msra.mxu0 0.0
  %2041 = vmatpush.msra.mxu0 0.0
  %2042 = vmatpush.msra.mxu0 0.0
  %2043 = vmatpush.msra.mxu0 0.0
  %2044 = vmatpush.msra.mxu0 0.0
  %2045 = vmatpush.msra.mxu0 0.0
  %2046 = vmatpush.msra.mxu0 0.0
  %2047 = vmatpush.msra.mxu0 %v74
  %2048 = vmatpush.msra.mxu0 %v73
  %2049 = vmatpush.msra.mxu0 %v72
  %2050 = vmatpush.msra.mxu0 %v71
  %2051 = vmatmul.f32.gmra.mxu0 %v1993
  %v2052 = vpop.f32.mrf.mxu0
  %v2053 = vadd.f32 0.0, %v2052
  %2054 = vdwg.mxu0
  %v2055 = vadd.f32 %v1989, %v2053
  %v2056 = vxor.u32 %v2055, 2147483648
  %v2057 = vmul.f32 %v2056, 1.442695
  %v2058 = vpow.pop %v2057
  %v2059 = vadd.f32 %v2058, 1.0
  %v2060 = vrcp.pop %v2059
  %v2061 = vmul.f32 %v2059, %v2060
  %v2062 = vsub.f32 1.0, %v2061
  %v2063 = vmul.f32 %v2060, %v2062
  %v2064 = vadd.f32 %v2060, %v2063
  %vm2065 = vweird.f32 %v2059
  %vm2066 = vweird.f32 %v2060
  %vm2067 = vmor %vm2065, %vm2066
  %v2068 = vsel %vm2067, %v2060, %v2064
  %v2069 = vand.u32 2147483647, %v2059
  %vm2070 = vcmp.eq.f32.partialorder %v2069, 8.507059e+37
  %v2071 = vand.u32 %v2059, 2147483648
  %v2072 = vor.u32 1.1754944e-38, %v2071
  %v2073 = vsel %vm2070, %v2072, %v2068
  %v2074 = vmul.f32 1.0, %v2073
  %2075 = vmatpush.msra.mxu0 0.0
  %2076 = vmatpush.msra.mxu0 0.0
  %2077 = vmatpush.msra.mxu0 0.0
  %2078 = vmatpush.msra.mxu0 0.0
  %2079 = vmatpush.msra.mxu0 0.0
  %2080 = vmatpush.msra.mxu0 0.0
  %2081 = vmatpush.msra.mxu0 0.0
  %2082 = vmatpush.msra.mxu0 0.0
  %2083 = vmatpush.msra.mxu0 0.0
  %2084 = vmatpush.msra.mxu0 0.0
  %2085 = vmatpush.msra.mxu0 0.0
  %2086 = vmatpush.msra.mxu0 0.0
  %2087 = vmatpush.msra.mxu0 %v78
  %2088 = vmatpush.msra.mxu0 %v77
  %2089 = vmatpush.msra.mxu0 %v76
  %2090 = vmatpush.msra.mxu0 %v75
  %2091 = vmatmul.f32.gmra.mxu0 %v1993
  %v2092 = vpop.f32.mrf.mxu0
  %v2093 = vadd.f32 0.0, %v2092
  %2094 = vdwg.mxu0
  %v2095 = vadd.f32 %v1990, %v2093
  %v2096 = vtanh.pop %v2095
  %2097 = vmatpush.msra.mxu0 0.0
  %2098 = vmatpush.msra.mxu0 0.0
  %2099 = vmatpush.msra.mxu0 0.0
  %2100 = vmatpush.msra.mxu0 0.0
  %2101 = vmatpush.msra.mxu0 0.0
  %2102 = vmatpush.msra.mxu0 0.0
  %2103 = vmatpush.msra.mxu0 0.0
  %2104 = vmatpush.msra.mxu0 0.0
  %2105 = vmatpush.msra.mxu0 0.0
  %2106 = vmatpush.msra.mxu0 0.0
  %2107 = vmatpush.msra.mxu0 0.0
  %2108 = vmatpush.msra.mxu0 0.0
  %2109 = vmatpush.msra.mxu0 %v82
  %2110 = vmatpush.msra.mxu0 %v81
  %2111 = vmatpush.msra.mxu0 %v80
  %2112 = vmatpush.msra.mxu0 %v79
  %2113 = vmatmul.f32.gmra.mxu0 %v1993
  %v2114 = vpop.f32.mrf.mxu0
  %v2115 = vadd.f32 0.0, %v2114
  %2116 = vdwg.mxu0
  %v2117 = vadd.f32 %v1991, %v2115
  %v2118 = vxor.u32 %v2117, 2147483648
  %v2119 = vmul.f32 %v2118, 1.442695
  %v2120 = vpow.pop %v2119
  %v2121 = vadd.f32 %v2120, 1.0
  %v2122 = vrcp.pop %v2121
  %v2123 = vmul.f32 %v2121, %v2122
  %v2124 = vsub.f32 1.0, %v2123
  %v2125 = vmul.f32 %v2122, %v2124
  %v2126 = vadd.f32 %v2122, %v2125
  %vm2127 = vweird.f32 %v2121
  %vm2128 = vweird.f32 %v2122
  %vm2129 = vmor %vm2127, %vm2128
  %v2130 = vsel %vm2129, %v2122, %v2126
  %v2131 = vand.u32 2147483647, %v2121
  %vm2132 = vcmp.eq.f32.partialorder %v2131, 8.507059e+37
  %v2133 = vand.u32 %v2121, 2147483648
  %v2134 = vor.u32 1.1754944e-38, %v2133
  %v2135 = vsel %vm2132, %v2134, %v2130
  %v2136 = vmul.f32 1.0, %v2135
  %v2137 = vmul.f32 %v2074, %v1825
  %v2138 = vmul.f32 %v2034, %v2096
  %v2139 = vadd.f32 %v2137, %v2138
  %v2140 = vtanh.pop %v2139
  %v2141 = vmul.f32 %v2136, %v2140
  %s2142 = scalar_lea.vmem %s4, 12
  %2143 = vst.msk [vmem:[%s2142] sm:$0x3] %vm258, %v2141
  %s2144 = scalar_lea.vmem %s47, 8
  %v2145 = vld [vmem:[%s2144] sm:$0x3]
  %v2146 = vld [vmem:[%s2144 + $0x2] sm:$0x3]
  %v2147 = vld [vmem:[%s2144 + $0x4] sm:$0x3]
  %v2148 = vld [vmem:[%s2144 + $0x6] sm:$0x3]
  %v2150 = vsel %vm107, %v1984, 0
  %2152 = vmatpush.msra.mxu0 0.0
  %2153 = vmatpush.msra.mxu0 0.0
  %2154 = vmatpush.msra.mxu0 0.0
  %2155 = vmatpush.msra.mxu0 0.0
  %2156 = vmatpush.msra.mxu0 0.0
  %2157 = vmatpush.msra.mxu0 0.0
  %2158 = vmatpush.msra.mxu0 0.0
  %2159 = vmatpush.msra.mxu0 0.0
  %2160 = vmatpush.msra.mxu0 0.0
  %2161 = vmatpush.msra.mxu0 0.0
  %2162 = vmatpush.msra.mxu0 0.0
  %2163 = vmatpush.msra.mxu0 0.0
  %2164 = vmatpush.msra.mxu0 %v86
  %2165 = vmatpush.msra.mxu0 %v85
  %2166 = vmatpush.msra.mxu0 %v84
  %2167 = vmatpush.msra.mxu0 %v83
  %2168 = vmatmul.f32.gmra.mxu0 %v2150
  %v2169 = vpop.f32.mrf.mxu0
  %v2170 = vadd.f32 0.0, %v2169
  %2171 = vdwg.mxu0
  %v2172 = vadd.f32 %v2145, %v2170
  %v2173 = vxor.u32 %v2172, 2147483648
  %v2174 = vmul.f32 %v2173, 1.442695
  %v2175 = vpow.pop %v2174
  %v2176 = vadd.f32 %v2175, 1.0
  %v2177 = vrcp.pop %v2176
  %v2178 = vmul.f32 %v2176, %v2177
  %v2179 = vsub.f32 1.0, %v2178
  %v2180 = vmul.f32 %v2177, %v2179
  %v2181 = vadd.f32 %v2177, %v2180
  %vm2182 = vweird.f32 %v2176
  %vm2183 = vweird.f32 %v2177
  %vm2184 = vmor %vm2182, %vm2183
  %v2185 = vsel %vm2184, %v2177, %v2181
  %v2186 = vand.u32 2147483647, %v2176
  %vm2187 = vcmp.eq.f32.partialorder %v2186, 8.507059e+37
  %v2188 = vand.u32 %v2176, 2147483648
  %v2189 = vor.u32 1.1754944e-38, %v2188
  %v2190 = vsel %vm2187, %v2189, %v2185
  %v2191 = vmul.f32 1.0, %v2190
  %2192 = vmatpush.msra.mxu0 0.0
  %2193 = vmatpush.msra.mxu0 0.0
  %2194 = vmatpush.msra.mxu0 0.0
  %2195 = vmatpush.msra.mxu0 0.0
  %2196 = vmatpush.msra.mxu0 0.0
  %2197 = vmatpush.msra.mxu0 0.0
  %2198 = vmatpush.msra.mxu0 0.0
  %2199 = vmatpush.msra.mxu0 0.0
  %2200 = vmatpush.msra.mxu0 0.0
  %2201 = vmatpush.msra.mxu0 0.0
  %2202 = vmatpush.msra.mxu0 0.0
  %2203 = vmatpush.msra.mxu0 0.0
  %2204 = vmatpush.msra.mxu0 %v90
  %2205 = vmatpush.msra.mxu0 %v89
  %2206 = vmatpush.msra.mxu0 %v88
  %2207 = vmatpush.msra.mxu0 %v87
  %2208 = vmatmul.f32.gmra.mxu0 %v2150
  %v2209 = vpop.f32.mrf.mxu0
  %v2210 = vadd.f32 0.0, %v2209
  %2211 = vdwg.mxu0
  %v2212 = vadd.f32 %v2146, %v2210
  %v2213 = vxor.u32 %v2212, 2147483648
  %v2214 = vmul.f32 %v2213, 1.442695
  %v2215 = vpow.pop %v2214
  %v2216 = vadd.f32 %v2215, 1.0
  %v2217 = vrcp.pop %v2216
  %v2218 = vmul.f32 %v2216, %v2217
  %v2219 = vsub.f32 1.0, %v2218
  %v2220 = vmul.f32 %v2217, %v2219
  %v2221 = vadd.f32 %v2217, %v2220
  %vm2222 = vweird.f32 %v2216
  %vm2223 = vweird.f32 %v2217
  %vm2224 = vmor %vm2222, %vm2223
  %v2225 = vsel %vm2224, %v2217, %v2221
  %v2226 = vand.u32 2147483647, %v2216
  %vm2227 = vcmp.eq.f32.partialorder %v2226, 8.507059e+37
  %v2228 = vand.u32 %v2216, 2147483648
  %v2229 = vor.u32 1.1754944e-38, %v2228
  %v2230 = vsel %vm2227, %v2229, %v2225
  %v2231 = vmul.f32 1.0, %v2230
  %2232 = vmatpush.msra.mxu0 0.0
  %2233 = vmatpush.msra.mxu0 0.0
  %2234 = vmatpush.msra.mxu0 0.0
  %2235 = vmatpush.msra.mxu0 0.0
  %2236 = vmatpush.msra.mxu0 0.0
  %2237 = vmatpush.msra.mxu0 0.0
  %2238 = vmatpush.msra.mxu0 0.0
  %2239 = vmatpush.msra.mxu0 0.0
  %2240 = vmatpush.msra.mxu0 0.0
  %2241 = vmatpush.msra.mxu0 0.0
  %2242 = vmatpush.msra.mxu0 0.0
  %2243 = vmatpush.msra.mxu0 0.0
  %2244 = vmatpush.msra.mxu0 %v94
  %2245 = vmatpush.msra.mxu0 %v93
  %2246 = vmatpush.msra.mxu0 %v92
  %2247 = vmatpush.msra.mxu0 %v91
  %2248 = vmatmul.f32.gmra.mxu0 %v2150
  %v2249 = vpop.f32.mrf.mxu0
  %v2250 = vadd.f32 0.0, %v2249
  %2251 = vdwg.mxu0
  %v2252 = vadd.f32 %v2147, %v2250
  %v2253 = vtanh.pop %v2252
  %2254 = vmatpush.msra.mxu0 0.0
  %2255 = vmatpush.msra.mxu0 0.0
  %2256 = vmatpush.msra.mxu0 0.0
  %2257 = vmatpush.msra.mxu0 0.0
  %2258 = vmatpush.msra.mxu0 0.0
  %2259 = vmatpush.msra.mxu0 0.0
  %2260 = vmatpush.msra.mxu0 0.0
  %2261 = vmatpush.msra.mxu0 0.0
  %2262 = vmatpush.msra.mxu0 0.0
  %2263 = vmatpush.msra.mxu0 0.0
  %2264 = vmatpush.msra.mxu0 0.0
  %2265 = vmatpush.msra.mxu0 0.0
  %2266 = vmatpush.msra.mxu0 %v98
  %2267 = vmatpush.msra.mxu0 %v97
  %2268 = vmatpush.msra.mxu0 %v96
  %2269 = vmatpush.msra.mxu0 %v95
  %2270 = vmatmul.f32.gmra.mxu0 %v2150
  %v2271 = vpop.f32.mrf.mxu0
  %v2272 = vadd.f32 0.0, %v2271
  %2273 = vdwg.mxu0
  %v2274 = vadd.f32 %v2148, %v2272
  %v2275 = vxor.u32 %v2274, 2147483648
  %v2276 = vmul.f32 %v2275, 1.442695
  %v2277 = vpow.pop %v2276
  %v2278 = vadd.f32 %v2277, 1.0
  %v2279 = vrcp.pop %v2278
  %v2280 = vmul.f32 %v2278, %v2279
  %v2281 = vsub.f32 1.0, %v2280
  %v2282 = vmul.f32 %v2279, %v2281
  %v2283 = vadd.f32 %v2279, %v2282
  %vm2284 = vweird.f32 %v2278
  %vm2285 = vweird.f32 %v2279
  %vm2286 = vmor %vm2284, %vm2285
  %v2287 = vsel %vm2286, %v2279, %v2283
  %v2288 = vand.u32 2147483647, %v2278
  %vm2289 = vcmp.eq.f32.partialorder %v2288, 8.507059e+37
  %v2290 = vand.u32 %v2278, 2147483648
  %v2291 = vor.u32 1.1754944e-38, %v2290
  %v2292 = vsel %vm2289, %v2291, %v2287
  %v2293 = vmul.f32 1.0, %v2292
  %v2294 = vmul.f32 %v2231, %v1982
  %v2295 = vmul.f32 %v2191, %v2253
  %v2296 = vadd.f32 %v2294, %v2295
  %v2297 = vtanh.pop %v2296
  %v2298 = vmul.f32 %v2293, %v2297
  %s2299 = scalar_lea.vmem %s55, 2
  %2300 = vst.msk [vmem:[%s2299] sm:$0x3] %vm258, %v2298
  %s2301 = scalar_lea.vmem %s0, 56
  %v2302 = vld [vmem:[%s2301] sm:$0x3]
  %v2303 = vld [vmem:[%s2301 + $0x2] sm:$0x3]
  %v2304 = vld [vmem:[%s2301 + $0x4] sm:$0x3]
  %v2305 = vld [vmem:[%s2301 + $0x6] sm:$0x3]
  %v2307 = vsel %vm107, %v2141, 0
  %2309 = vmatpush.msra.mxu0 0.0
  %2310 = vmatpush.msra.mxu0 0.0
  %2311 = vmatpush.msra.mxu0 0.0
  %2312 = vmatpush.msra.mxu0 0.0
  %2313 = vmatpush.msra.mxu0 0.0
  %2314 = vmatpush.msra.mxu0 0.0
  %2315 = vmatpush.msra.mxu0 0.0
  %2316 = vmatpush.msra.mxu0 0.0
  %2317 = vmatpush.msra.mxu0 0.0
  %2318 = vmatpush.msra.mxu0 0.0
  %2319 = vmatpush.msra.mxu0 0.0
  %2320 = vmatpush.msra.mxu0 0.0
  %2321 = vmatpush.msra.mxu0 %v70
  %2322 = vmatpush.msra.mxu0 %v69
  %2323 = vmatpush.msra.mxu0 %v68
  %2324 = vmatpush.msra.mxu0 %v67
  %2325 = vmatmul.f32.gmra.mxu0 %v2307
  %v2326 = vpop.f32.mrf.mxu0
  %v2327 = vadd.f32 0.0, %v2326
  %2328 = vdwg.mxu0
  %v2329 = vadd.f32 %v2302, %v2327
  %v2330 = vxor.u32 %v2329, 2147483648
  %v2331 = vmul.f32 %v2330, 1.442695
  %v2332 = vpow.pop %v2331
  %v2333 = vadd.f32 %v2332, 1.0
  %v2334 = vrcp.pop %v2333
  %v2335 = vmul.f32 %v2333, %v2334
  %v2336 = vsub.f32 1.0, %v2335
  %v2337 = vmul.f32 %v2334, %v2336
  %v2338 = vadd.f32 %v2334, %v2337
  %vm2339 = vweird.f32 %v2333
  %vm2340 = vweird.f32 %v2334
  %vm2341 = vmor %vm2339, %vm2340
  %v2342 = vsel %vm2341, %v2334, %v2338
  %v2343 = vand.u32 2147483647, %v2333
  %vm2344 = vcmp.eq.f32.partialorder %v2343, 8.507059e+37
  %v2345 = vand.u32 %v2333, 2147483648
  %v2346 = vor.u32 1.1754944e-38, %v2345
  %v2347 = vsel %vm2344, %v2346, %v2342
  %v2348 = vmul.f32 1.0, %v2347
  %2349 = vmatpush.msra.mxu0 0.0
  %2350 = vmatpush.msra.mxu0 0.0
  %2351 = vmatpush.msra.mxu0 0.0
  %2352 = vmatpush.msra.mxu0 0.0
  %2353 = vmatpush.msra.mxu0 0.0
  %2354 = vmatpush.msra.mxu0 0.0
  %2355 = vmatpush.msra.mxu0 0.0
  %2356 = vmatpush.msra.mxu0 0.0
  %2357 = vmatpush.msra.mxu0 0.0
  %2358 = vmatpush.msra.mxu0 0.0
  %2359 = vmatpush.msra.mxu0 0.0
  %2360 = vmatpush.msra.mxu0 0.0
  %2361 = vmatpush.msra.mxu0 %v74
  %2362 = vmatpush.msra.mxu0 %v73
  %2363 = vmatpush.msra.mxu0 %v72
  %2364 = vmatpush.msra.mxu0 %v71
  %2365 = vmatmul.f32.gmra.mxu0 %v2307
  %v2366 = vpop.f32.mrf.mxu0
  %v2367 = vadd.f32 0.0, %v2366
  %2368 = vdwg.mxu0
  %v2369 = vadd.f32 %v2303, %v2367
  %v2370 = vxor.u32 %v2369, 2147483648
  %v2371 = vmul.f32 %v2370, 1.442695
  %v2372 = vpow.pop %v2371
  %v2373 = vadd.f32 %v2372, 1.0
  %v2374 = vrcp.pop %v2373
  %v2375 = vmul.f32 %v2373, %v2374
  %v2376 = vsub.f32 1.0, %v2375
  %v2377 = vmul.f32 %v2374, %v2376
  %v2378 = vadd.f32 %v2374, %v2377
  %vm2379 = vweird.f32 %v2373
  %vm2380 = vweird.f32 %v2374
  %vm2381 = vmor %vm2379, %vm2380
  %v2382 = vsel %vm2381, %v2374, %v2378
  %v2383 = vand.u32 2147483647, %v2373
  %vm2384 = vcmp.eq.f32.partialorder %v2383, 8.507059e+37
  %v2385 = vand.u32 %v2373, 2147483648
  %v2386 = vor.u32 1.1754944e-38, %v2385
  %v2387 = vsel %vm2384, %v2386, %v2382
  %v2388 = vmul.f32 1.0, %v2387
  %2389 = vmatpush.msra.mxu0 0.0
  %2390 = vmatpush.msra.mxu0 0.0
  %2391 = vmatpush.msra.mxu0 0.0
  %2392 = vmatpush.msra.mxu0 0.0
  %2393 = vmatpush.msra.mxu0 0.0
  %2394 = vmatpush.msra.mxu0 0.0
  %2395 = vmatpush.msra.mxu0 0.0
  %2396 = vmatpush.msra.mxu0 0.0
  %2397 = vmatpush.msra.mxu0 0.0
  %2398 = vmatpush.msra.mxu0 0.0
  %2399 = vmatpush.msra.mxu0 0.0
  %2400 = vmatpush.msra.mxu0 0.0
  %2401 = vmatpush.msra.mxu0 %v78
  %2402 = vmatpush.msra.mxu0 %v77
  %2403 = vmatpush.msra.mxu0 %v76
  %2404 = vmatpush.msra.mxu0 %v75
  %2405 = vmatmul.f32.gmra.mxu0 %v2307
  %v2406 = vpop.f32.mrf.mxu0
  %v2407 = vadd.f32 0.0, %v2406
  %2408 = vdwg.mxu0
  %v2409 = vadd.f32 %v2304, %v2407
  %v2410 = vtanh.pop %v2409
  %2411 = vmatpush.msra.mxu0 0.0
  %2412 = vmatpush.msra.mxu0 0.0
  %2413 = vmatpush.msra.mxu0 0.0
  %2414 = vmatpush.msra.mxu0 0.0
  %2415 = vmatpush.msra.mxu0 0.0
  %2416 = vmatpush.msra.mxu0 0.0
  %2417 = vmatpush.msra.mxu0 0.0
  %2418 = vmatpush.msra.mxu0 0.0
  %2419 = vmatpush.msra.mxu0 0.0
  %2420 = vmatpush.msra.mxu0 0.0
  %2421 = vmatpush.msra.mxu0 0.0
  %2422 = vmatpush.msra.mxu0 0.0
  %2423 = vmatpush.msra.mxu0 %v82
  %2424 = vmatpush.msra.mxu0 %v81
  %2425 = vmatpush.msra.mxu0 %v80
  %2426 = vmatpush.msra.mxu0 %v79
  %2427 = vmatmul.f32.gmra.mxu0 %v2307
  %v2428 = vpop.f32.mrf.mxu0
  %v2429 = vadd.f32 0.0, %v2428
  %2430 = vdwg.mxu0
  %v2431 = vadd.f32 %v2305, %v2429
  %v2432 = vxor.u32 %v2431, 2147483648
  %v2433 = vmul.f32 %v2432, 1.442695
  %v2434 = vpow.pop %v2433
  %v2435 = vadd.f32 %v2434, 1.0
  %v2436 = vrcp.pop %v2435
  %v2437 = vmul.f32 %v2435, %v2436
  %v2438 = vsub.f32 1.0, %v2437
  %v2439 = vmul.f32 %v2436, %v2438
  %v2440 = vadd.f32 %v2436, %v2439
  %vm2441 = vweird.f32 %v2435
  %vm2442 = vweird.f32 %v2436
  %vm2443 = vmor %vm2441, %vm2442
  %v2444 = vsel %vm2443, %v2436, %v2440
  %v2445 = vand.u32 2147483647, %v2435
  %vm2446 = vcmp.eq.f32.partialorder %v2445, 8.507059e+37
  %v2447 = vand.u32 %v2435, 2147483648
  %v2448 = vor.u32 1.1754944e-38, %v2447
  %v2449 = vsel %vm2446, %v2448, %v2444
  %v2450 = vmul.f32 1.0, %v2449
  %v2451 = vmul.f32 %v2388, %v2139
  %v2452 = vmul.f32 %v2348, %v2410
  %v2453 = vadd.f32 %v2451, %v2452
  %v2454 = vtanh.pop %v2453
  %v2455 = vmul.f32 %v2450, %v2454
  %s2456 = scalar_lea.vmem %s4, 14
  %2457 = vst.msk [vmem:[%s2456] sm:$0x3] %vm258, %v2455
  %v2458 = vld [vmem:[%s47] sm:$0x3]
  %v2459 = vld [vmem:[%s47 + $0x2] sm:$0x3]
  %v2460 = vld [vmem:[%s47 + $0x4] sm:$0x3]
  %v2461 = vld [vmem:[%s47 + $0x6] sm:$0x3]
  %v2463 = vsel %vm107, %v2298, 0
  %2465 = vmatpush.msra.mxu0 0.0
  %2466 = vmatpush.msra.mxu0 0.0
  %2467 = vmatpush.msra.mxu0 0.0
  %2468 = vmatpush.msra.mxu0 0.0
  %2469 = vmatpush.msra.mxu0 0.0
  %2470 = vmatpush.msra.mxu0 0.0
  %2471 = vmatpush.msra.mxu0 0.0
  %2472 = vmatpush.msra.mxu0 0.0
  %2473 = vmatpush.msra.mxu0 0.0
  %2474 = vmatpush.msra.mxu0 0.0
  %2475 = vmatpush.msra.mxu0 0.0
  %2476 = vmatpush.msra.mxu0 0.0
  %2477 = vmatpush.msra.mxu0 %v86
  %2478 = vmatpush.msra.mxu0 %v85
  %2479 = vmatpush.msra.mxu0 %v84
  %2480 = vmatpush.msra.mxu0 %v83
  %2481 = vmatmul.f32.gmra.mxu0 %v2463
  %v2482 = vpop.f32.mrf.mxu0
  %v2483 = vadd.f32 0.0, %v2482
  %2484 = vdwg.mxu0
  %v2485 = vadd.f32 %v2458, %v2483
  %v2486 = vxor.u32 %v2485, 2147483648
  %v2487 = vmul.f32 %v2486, 1.442695
  %v2488 = vpow.pop %v2487
  %v2489 = vadd.f32 %v2488, 1.0
  %v2490 = vrcp.pop %v2489
  %v2491 = vmul.f32 %v2489, %v2490
  %v2492 = vsub.f32 1.0, %v2491
  %v2493 = vmul.f32 %v2490, %v2492
  %v2494 = vadd.f32 %v2490, %v2493
  %vm2495 = vweird.f32 %v2489
  %vm2496 = vweird.f32 %v2490
  %vm2497 = vmor %vm2495, %vm2496
  %v2498 = vsel %vm2497, %v2490, %v2494
  %v2499 = vand.u32 2147483647, %v2489
  %vm2500 = vcmp.eq.f32.partialorder %v2499, 8.507059e+37
  %v2501 = vand.u32 %v2489, 2147483648
  %v2502 = vor.u32 1.1754944e-38, %v2501
  %v2503 = vsel %vm2500, %v2502, %v2498
  %v2504 = vmul.f32 1.0, %v2503
  %2505 = vmatpush.msra.mxu0 0.0
  %2506 = vmatpush.msra.mxu0 0.0
  %2507 = vmatpush.msra.mxu0 0.0
  %2508 = vmatpush.msra.mxu0 0.0
  %2509 = vmatpush.msra.mxu0 0.0
  %2510 = vmatpush.msra.mxu0 0.0
  %2511 = vmatpush.msra.mxu0 0.0
  %2512 = vmatpush.msra.mxu0 0.0
  %2513 = vmatpush.msra.mxu0 0.0
  %2514 = vmatpush.msra.mxu0 0.0
  %2515 = vmatpush.msra.mxu0 0.0
  %2516 = vmatpush.msra.mxu0 0.0
  %2517 = vmatpush.msra.mxu0 %v90
  %2518 = vmatpush.msra.mxu0 %v89
  %2519 = vmatpush.msra.mxu0 %v88
  %2520 = vmatpush.msra.mxu0 %v87
  %2521 = vmatmul.f32.gmra.mxu0 %v2463
  %v2522 = vpop.f32.mrf.mxu0
  %v2523 = vadd.f32 0.0, %v2522
  %2524 = vdwg.mxu0
  %v2525 = vadd.f32 %v2459, %v2523
  %v2526 = vxor.u32 %v2525, 2147483648
  %v2527 = vmul.f32 %v2526, 1.442695
  %v2528 = vpow.pop %v2527
  %v2529 = vadd.f32 %v2528, 1.0
  %v2530 = vrcp.pop %v2529
  %v2531 = vmul.f32 %v2529, %v2530
  %v2532 = vsub.f32 1.0, %v2531
  %v2533 = vmul.f32 %v2530, %v2532
  %v2534 = vadd.f32 %v2530, %v2533
  %vm2535 = vweird.f32 %v2529
  %vm2536 = vweird.f32 %v2530
  %vm2537 = vmor %vm2535, %vm2536
  %v2538 = vsel %vm2537, %v2530, %v2534
  %v2539 = vand.u32 2147483647, %v2529
  %vm2540 = vcmp.eq.f32.partialorder %v2539, 8.507059e+37
  %v2541 = vand.u32 %v2529, 2147483648
  %v2542 = vor.u32 1.1754944e-38, %v2541
  %v2543 = vsel %vm2540, %v2542, %v2538
  %v2544 = vmul.f32 1.0, %v2543
  %2545 = vmatpush.msra.mxu0 0.0
  %2546 = vmatpush.msra.mxu0 0.0
  %2547 = vmatpush.msra.mxu0 0.0
  %2548 = vmatpush.msra.mxu0 0.0
  %2549 = vmatpush.msra.mxu0 0.0
  %2550 = vmatpush.msra.mxu0 0.0
  %2551 = vmatpush.msra.mxu0 0.0
  %2552 = vmatpush.msra.mxu0 0.0
  %2553 = vmatpush.msra.mxu0 0.0
  %2554 = vmatpush.msra.mxu0 0.0
  %2555 = vmatpush.msra.mxu0 0.0
  %2556 = vmatpush.msra.mxu0 0.0
  %2557 = vmatpush.msra.mxu0 %v94
  %2558 = vmatpush.msra.mxu0 %v93
  %2559 = vmatpush.msra.mxu0 %v92
  %2560 = vmatpush.msra.mxu0 %v91
  %2561 = vmatmul.f32.gmra.mxu0 %v2463
  %v2562 = vpop.f32.mrf.mxu0
  %v2563 = vadd.f32 0.0, %v2562
  %2564 = vdwg.mxu0
  %v2565 = vadd.f32 %v2460, %v2563
  %v2566 = vtanh.pop %v2565
  %2567 = vmatpush.msra.mxu0 0.0
  %2568 = vmatpush.msra.mxu0 0.0
  %2569 = vmatpush.msra.mxu0 0.0
  %2570 = vmatpush.msra.mxu0 0.0
  %2571 = vmatpush.msra.mxu0 0.0
  %2572 = vmatpush.msra.mxu0 0.0
  %2573 = vmatpush.msra.mxu0 0.0
  %2574 = vmatpush.msra.mxu0 0.0
  %2575 = vmatpush.msra.mxu0 0.0
  %2576 = vmatpush.msra.mxu0 0.0
  %2577 = vmatpush.msra.mxu0 0.0
  %2578 = vmatpush.msra.mxu0 0.0
  %2579 = vmatpush.msra.mxu0 %v98
  %2580 = vmatpush.msra.mxu0 %v97
  %2581 = vmatpush.msra.mxu0 %v96
  %2582 = vmatpush.msra.mxu0 %v95
  %2583 = vmatmul.f32.gmra.mxu0 %v2463
  %v2584 = vpop.f32.mrf.mxu0
  %v2585 = vadd.f32 0.0, %v2584
  %2586 = vdwg.mxu0
  %v2587 = vadd.f32 %v2461, %v2585
  %v2588 = vxor.u32 %v2587, 2147483648
  %v2589 = vmul.f32 %v2588, 1.442695
  %v2590 = vpow.pop %v2589
  %v2591 = vadd.f32 %v2590, 1.0
  %v2592 = vrcp.pop %v2591
  %v2593 = vmul.f32 %v2591, %v2592
  %v2594 = vsub.f32 1.0, %v2593
  %v2595 = vmul.f32 %v2592, %v2594
  %v2596 = vadd.f32 %v2592, %v2595
  %vm2597 = vweird.f32 %v2591
  %vm2598 = vweird.f32 %v2592
  %vm2599 = vmor %vm2597, %vm2598
  %v2600 = vsel %vm2599, %v2592, %v2596
  %v2601 = vand.u32 2147483647, %v2591
  %vm2602 = vcmp.eq.f32.partialorder %v2601, 8.507059e+37
  %v2603 = vand.u32 %v2591, 2147483648
  %v2604 = vor.u32 1.1754944e-38, %v2603
  %v2605 = vsel %vm2602, %v2604, %v2600
  %v2606 = vmul.f32 1.0, %v2605
  %v2607 = vmul.f32 %v2544, %v2296
  %v2608 = vmul.f32 %v2504, %v2566
  %v2609 = vadd.f32 %v2607, %v2608
  %v2610 = vtanh.pop %v2609
  %v2611 = vmul.f32 %v2606, %v2610
  %2612 = vst.msk [vmem:[%s55] sm:$0x3] %vm258, %v2611
  %2613 = vst.msk [vmem:[#allocation2] sm:$0x3] %vm258, %v2455
  %2614 = vst.msk [vmem:[#allocation3] sm:$0x3] %vm258, %v2453
  %2615 = vst.msk [vmem:[#allocation4] sm:$0x3] %vm258, %v2611
  %2616 = vst.msk [vmem:[#allocation5] sm:$0x3] %vm258, %v2609
  %s2617 = ssub.s32 0, 0
  %s2618 = smul.u32 8, %s2617
  %p2619 = scmp.lt.s32.totalorder %s2618, 7
  %s2620 = scalar_select %p2619, %s2618, 7
  %s2621 = smul.addr %s2620, 2
  %s2622 = scalar_lea.vmem %s5, %s2621
  // Predicated region
  $region22: #{lstm_encoder_forward.4} parent=0 // pred_check
    _
  $region23: #{lstm_encoder_forward.4} parent=0 // pred_check_branch
    %2624 = sbr.rel (0) target = $region25
  $region24: #{lstm_encoder_forward.4} parent=0 // pred_region
    _
  $region25: #{lstm_encoder_forward.4} parent=0 // pred_fallthru
    _
  // Predicated region
  $region26: #{lstm_encoder_forward.4} parent=0 // pred_check
    _
  $region27: #{lstm_encoder_forward.4} parent=0 // pred_check_branch
    %2626 = sbr.rel (0) target = $region29
  $region28: #{lstm_encoder_forward.4} parent=0 // pred_region
    %s2627 = ssub.s32 0, 0
    %s2628 = smul.u32 8, %s2627
  $region29: #{lstm_encoder_forward.4} parent=0 // pred_fallthru
    _
  // Predicated region
  $region30: #{lstm_encoder_forward.4} parent=0 // pred_check
    _
  $region31: #{lstm_encoder_forward.4} parent=0 // pred_check_branch
    %2630 = sbr.rel (0) target = $region33
  $region32: #{lstm_encoder_forward.4} parent=0 // pred_region
    _
  $region33: #{lstm_encoder_forward.4} parent=0 // pred_fallthru
    _
  // Predicated region
  $region34: #{lstm_encoder_forward.4} parent=0 // pred_check
    _
  $region35: #{lstm_encoder_forward.4} parent=0 // pred_check_branch
    %2632 = sbr.rel (0) target = $region37
  $region36: #{lstm_encoder_forward.4} parent=0 // pred_region
    %s2633 = ssub.s32 0, 0
    %s2634 = smul.u32 8, %s2633
    %p2635 = scmp.lt.s32.totalorder %s2634, 7
    %s2636 = scalar_select %p2635, %s2634, 7
    %s2637 = smul.addr %s2636, 2
    %s2638 = scalar_lea.vmem %s5, %s2637
  $region37: #{lstm_encoder_forward.4} parent=0 // pred_fallthru
    _

</llo_original>
